<compile_context>
chip_gen: v5e
topology: v5e:2x2
jax: 0.10.0
libtpu: 0.0.40
codegen_flags: <defaults>
</compile_context>

<pallas_src>
import functools
import math

import jax
import jax.numpy as jnp
from jax import lax
from jax.experimental import pallas as pl
from jax.experimental.pallas import tpu as pltpu

_MM_DTYPE = jnp.bfloat16          # MXU input dtype (accumulation is always f32)
_VMEM_LIMIT = 32 * 1024 * 1024    # portable across v5e / v6e / v7x at these sizes


def _mm(a, b):
    """Matmul contracting a's last dim with b's first dim; bf16 MXU inputs, f32 accumulation."""
    return lax.dot_general(a.astype(_MM_DTYPE), b.astype(_MM_DTYPE),
                           (((a.ndim - 1,), (0,)), ((), ())),
                           preferred_element_type=jnp.float32)


def _layernorm(x, gamma, beta, eps=1e-5):
    mu = jnp.mean(x, axis=-1, keepdims=True)
    var = jnp.mean(jnp.square(x - mu), axis=-1, keepdims=True)
    return (x - mu) * lax.rsqrt(var + eps) * gamma + beta


# ------------------------------ fused TCN stack --------------------------------
def _shift_rows(z, s):
    """out[t] = z[t - s] (rows wrap around; caller masks the first s rows of each sequence).
    Static two-slice concat == jnp.roll(z, s, axis=0); lowers to a cheap sublane rotate."""
    n = z.shape[0]
    return jnp.concatenate([z[n - s:, :], z[:n - s, :]], axis=0)


def _causal_conv(xb, w_ref, b_ref, K, dil, tmod):
    """Dilated causal conv as K accumulated full-width matmuls (no im2col concatenate, no
    padded staging buffer).  xb: (B*L, Cin) bf16; w_ref: (K, Cin, Cout); tmod: (B*L, 1) = t%L."""
    acc = _mm(xb, w_ref[K - 1])                              # tap K-1: zero shift
    for k in range(K - 1):
        s = (K - 1 - k) * dil
        z = _shift_rows(_mm(xb, w_ref[k]), s)                # in-register causal shift
        acc = acc + jnp.where(tmod >= s, z, 0.0)             # zero the pre-sequence taps
    return acc + b_ref[...]


def _tcn_stack_kernel(*refs, plan, L):
    """Every residual TCN block in ONE launch; activations never leave registers/VMEM.
    refs = (x, [w1, b1, w2, b2(, wd, bd)] per block ..., out); batch folded into rows."""
    x_ref, o_ref, wrefs = refs[0], refs[-1], refs[1:-1]
    h = x_ref[...]                                           # (B*L, C0) f32
    tmod = lax.broadcasted_iota(jnp.int32, (h.shape[0], 1), 0) % L
    i = 0
    for (K, dil, has_down) in plan:
        w1, b1, w2, b2 = wrefs[i], wrefs[i + 1], wrefs[i + 2], wrefs[i + 3]
        i += 4
        hb = h.astype(_MM_DTYPE)                             # cast once per block
        y1 = jnp.maximum(_causal_conv(hb, w1, b1, K, dil, tmod), 0.0)
        y2 = jnp.maximum(_causal_conv(y1.astype(_MM_DTYPE), w2, b2, K, dil, tmod), 0.0)
        if has_down:                                         # 1x1 downsample residual
            wd, bd = wrefs[i], wrefs[i + 1]
            i += 2
            res = _mm(hb, wd[...]) + bd[...]
        else:
            res = h
        h = jnp.maximum(y2 + res, 0.0)
    o_ref[...] = h


def _tcn_stack(x2d, tcn_args, plan, L):
    c_last = tcn_args[-1].shape[-1]
    return pl.pallas_call(
        functools.partial(_tcn_stack_kernel, plan=plan, L=L),
        out_shape=jax.ShapeDtypeStruct((x2d.shape[0], c_last), jnp.float32),
        compiler_params=pltpu.CompilerParams(vmem_limit_bytes=_VMEM_LIMIT),
    )(x2d, *tcn_args)


# ----------------- fused transformer stack (embed + layers + head) ------------
# Packed per-layer vector rows (inside the single (NL, 8, W) "vecs" tensor):
_R_BQKV, _R_BO, _R_B1, _R_B2, _R_G1, _R_BE1, _R_G2, _R_BE2 = range(8)


def _transformer_stack_kernel(x_ref, we_ref, be_ref, pe_ref,
                              wqkv_ref, wo_ref, w1_ref, w2_ref, vec_ref,
                              fcw_ref, fcb_ref, o_ref, h_ref, *, B, S, D, F, H):
    """grid = (layer,). One encoder layer per step; the (B*S, D) activation lives in h_ref.
    Layer 0 also applies embedding + positional encoding; the last layer applies the
    last-token Linear(d_model -> 1) head."""
    layer = pl.program_id(0)
    hd = D // H
    BS = B * S

    @pl.when(layer == 0)
    def _embed():
        e = _mm(x_ref[...], we_ref[...]) + be_ref[...]                   # (BS, D)
        h_ref[...] = (e.reshape(B, S, D) + pe_ref[...]).reshape(BS, D)   # + positional enc.

    h = h_ref[...]                                                       # (BS, D) f32
    hb = h.astype(_MM_DTYPE)                                             # cast once

    # --- self-attention: fused full-width QKV projection (1/sqrt(hd) folded into Q slab) ---
    qkv = _mm(hb, wqkv_ref[...]) + vec_ref[_R_BQKV:_R_BQKV + 1, 0:3 * D]  # (BS, 3D) f32
    qkv = qkv.reshape(B, S, 3 * D).astype(_MM_DTYPE)                      # cast once

    ctx = []
    for i in range(H):                                                    # per-head scores/context
        qh = qkv[:, :, i * hd:(i + 1) * hd]                               # (B, S, hd)
        kh = qkv[:, :, D + i * hd:D + (i + 1) * hd]
        vh = qkv[:, :, 2 * D + i * hd:2 * D + (i + 1) * hd]
        s = lax.dot_general(qh, kh, (((2,), (2,)), ((0,), (0,))),
                            preferred_element_type=jnp.float32)           # (B, S, S)
        s = s - jnp.max(s, axis=-1, keepdims=True)
        p = jnp.exp(s)
        p = p * pl.reciprocal(jnp.sum(p, axis=-1, keepdims=True), approx=True)
        ctx.append(lax.dot_general(p.astype(_MM_DTYPE), vh,
                                   (((2,), (1,)), ((0,), (0,))),
                                   preferred_element_type=jnp.float32))   # (B, S, hd)
    ctx = jnp.concatenate(ctx, axis=-1).reshape(BS, D)
    attn = _mm(ctx, wo_ref[...]) + vec_ref[_R_BO:_R_BO + 1, 0:D]          # single (D,D) out proj

    # --- post-LN residual 1 + feed-forward + post-LN residual 2 (PyTorch defaults) ---
    h1 = _layernorm(h + attn, vec_ref[_R_G1:_R_G1 + 1, 0:D], vec_ref[_R_BE1:_R_BE1 + 1, 0:D])
    f = jnp.maximum(_mm(h1, w1_ref[...]) + vec_ref[_R_B1:_R_B1 + 1, 0:F], 0.0)
    f = _mm(f, w2_ref[...]) + vec_ref[_R_B2:_R_B2 + 1, 0:D]
    h2 = _layernorm(h1 + f, vec_ref[_R_G2:_R_G2 + 1, 0:D], vec_ref[_R_BE2:_R_BE2 + 1, 0:D])
    h_ref[...] = h2

    @pl.when(layer == pl.num_programs(0) - 1)
    def _head():
        # Select the last token of each sequence with a one-hot matmul (no odd-offset slices),
        # then apply the Linear(d_model -> 1) head.
        r = lax.broadcasted_iota(jnp.int32, (B, BS), 1)
        b = lax.broadcasted_iota(jnp.int32, (B, BS), 0)
        sel = (r == b * S + (S - 1)).astype(_MM_DTYPE)                    # (B, BS)
        feats = _mm(sel, h2)                                              # (B, D) last-token rows
        o_ref[...] = _mm(feats, fcw_ref[...]) + fcb_ref[...]              # (B, 1)


def _transformer(h2d, tf, *, B, S, D, F, H, NL):
    BS, C = h2d.shape
    W = tf['vecs'].shape[-1]

    def const2(shape):
        return pl.BlockSpec(shape, lambda l: (0, 0))

    def layer3(shape):
        return pl.BlockSpec((None,) + shape, lambda l: (l, 0, 0))

    return pl.pallas_call(
        functools.partial(_transformer_stack_kernel, B=B, S=S, D=D, F=F, H=H),
        out_shape=jax.ShapeDtypeStruct((B, 1), jnp.float32),
        grid=(NL,),
        in_specs=[
            const2((BS, C)),                                   # TCN output (fetched once)
            const2((C, D)), const2((1, D)), const2((S, D)),    # We, be, pe
            layer3((D, 3 * D)),                                # fused QKV weights
            layer3((D, D)),                                    # output projection
            layer3((D, F)), layer3((F, D)),                    # feed-forward
            layer3((8, W)),                                    # packed biases + LN params
            const2((D, 1)), const2((1, 1)),                    # fc head
        ],
        out_specs=const2((B, 1)),
        scratch_shapes=[pltpu.VMEM((BS, D), jnp.float32)],     # layer-resident activation
        # Single sequential layer axis on one TensorCore: at these shapes the kernel is
        # overhead-bound, so splitting batch across v7x's two cores would not pay.
        compiler_params=pltpu.CompilerParams(
            dimension_semantics=("arbitrary",),
            vmem_limit_bytes=_VMEM_LIMIT),
    )(h2d, tf['We'], tf['be'], tf['pe'],
      tf['wqkv'], tf['wo'], tf['w1'], tf['w2'], tf['vecs'],
      tf['fcw'], tf['fcb'])


# --------------------------------- forward ------------------------------------
def tcn_transformer_forward(x, arrays, *, cfg):
    """x: (B, num_inputs, L) -- PyTorch NCW conv input. Exactly two kernel launches."""
    B, Cin, L = x.shape
    x2d = jnp.transpose(x, (0, 2, 1)).reshape(B * L, Cin)      # channels-last, batch folded
    h2d = _tcn_stack(x2d, arrays['tcn'], cfg['plan'], L)       # (B*L, C_last)
    D, F, H, NL = cfg['dims']
    return _transformer(h2d, arrays['tf'], B=B, S=L, D=D, F=F, H=H, NL=NL)   # (B, 1)


# ------------------------- one-time parameter packing --------------------------
def prepare_params(params, nhead, seq_len):
    """Repack the readable parameter tree into kernel-ready arrays ONCE (layer stacking,
    fused QKV, 1/sqrt(hd) folding, bf16 casts, packed bias/LN vectors).  Nothing here runs
    inside the jitted forward pass."""
    # --- TCN ---
    plan, tcn_args = [], []
    for i, blk in enumerate(params['tcn']):
        K, cin, cout = blk['w1'].shape
        has_down = 'wd' in blk
        plan.append((K, 2 ** i, has_down))
        tcn_args += [blk['w1'].astype(_MM_DTYPE), blk['b1'].reshape(1, cout),
                     blk['w2'].astype(_MM_DTYPE), blk['b2'].reshape(1, cout)]
        if has_down:
            tcn_args += [blk['wd'].reshape(cin, cout).astype(_MM_DTYPE),
                         blk['bd'].reshape(1, cout)]

    # --- transformer ---
    tp = params['transformer']
    layers = tp['layers']
    D = tp['We'].shape[1]
    F = layers[0]['w1'].shape[1]
    NL = len(layers)
    scale = 1.0 / math.sqrt(D // nhead)
    W = max(3 * D, F)

    def row(v):
        v = jnp.asarray(v).reshape(1, -1)
        return jnp.pad(v, ((0, 0), (0, W - v.shape[1])))

    wqkv = jnp.stack([jnp.concatenate([lp['wq'] * scale, lp['wk'], lp['wv']], axis=1)
                      for lp in layers]).astype(_MM_DTYPE)                    # (NL, D, 3D)
    wo = jnp.stack([lp['wo'] for lp in layers]).astype(_MM_DTYPE)             # (NL, D, D)
    w1 = jnp.stack([lp['w1'] for lp in layers]).astype(_MM_DTYPE)             # (NL, D, F)
    w2 = jnp.stack([lp['w2'] for lp in layers]).astype(_MM_DTYPE)             # (NL, F, D)
    vecs = jnp.stack([
        jnp.concatenate([row(jnp.concatenate([lp['bq'] * scale, lp['bk'], lp['bv']])),
                         row(lp['bo']), row(lp['b1']), row(lp['b2']),
                         row(lp['g1']), row(lp['be1']), row(lp['g2']), row(lp['be2'])],
                        axis=0)
        for lp in layers])                                                    # (NL, 8, W)

    tf = {'We': tp['We'].astype(_MM_DTYPE), 'be': tp['be'].reshape(1, D),
          'pe': tp['pe'][:seq_len],
          'wqkv': wqkv, 'wo': wo, 'w1': w1, 'w2': w2, 'vecs': vecs,
          'fcw': params['fc_w'].astype(_MM_DTYPE), 'fcb': params['fc_b'].reshape(1, 1)}

    cfg = {'plan': tuple(plan), 'dims': (D, F, nhead, NL)}      # static Python config
    arrays = {'tcn': tuple(tcn_args), 'tf': tf}                 # jit-traced array pytree
    return cfg, arrays


# ----------------------------- parameter setup --------------------------------
def make_pe(max_len, d_model):
    pos = jnp.arange(max_len, dtype=jnp.float32)[:, None]
    div = jnp.exp(jnp.arange(0, d_model, 2, dtype=jnp.float32) *
                  (-math.log(10000.0) / d_model))
    pe = jnp.zeros((max_len, d_model), jnp.float32)
    pe = pe.at[:, 0::2].set(jnp.sin(pos * div))
    pe = pe.at[:, 1::2].set(jnp.cos(pos * div))
    return pe


def _uniform(key, shape, fan_in):
    bound = 1.0 / math.sqrt(fan_in)
    return jax.random.uniform(key, shape, jnp.float32, -bound, bound)


def init_params(key, num_inputs, num_channels, ksize, d_model, nhead,
                num_layers, dim_ff, max_len=5000):
    keys = iter(jax.random.split(key, 256))
    nxt = lambda: next(keys)

    tcn = []
    cin = num_inputs
    for cout in num_channels:
        blk = {
            'w1': _uniform(nxt(), (ksize, cin, cout), cin * ksize),
            'b1': _uniform(nxt(), (cout,), cin * ksize),
            'w2': _uniform(nxt(), (ksize, cout, cout), cout * ksize),
            'b2': _uniform(nxt(), (cout,), cout * ksize),
        }
        if cin != cout:
            blk['wd'] = _uniform(nxt(), (1, cin, cout), cin)
            blk['bd'] = _uniform(nxt(), (cout,), cin)
        tcn.append(blk)
        cin = cout

    C = num_channels[-1]
    layers = []
    for _ in range(num_layers):
        layers.append({
            'wq': _uniform(nxt(), (d_model, d_model), d_model),
            'bq': _uniform(nxt(), (d_model,), d_model),
            'wk': _uniform(nxt(), (d_model, d_model), d_model),
            'bk': _uniform(nxt(), (d_model,), d_model),
            'wv': _uniform(nxt(), (d_model, d_model), d_model),
            'bv': _uniform(nxt(), (d_model,), d_model),
            'wo': _uniform(nxt(), (d_model, d_model), d_model),
            'bo': _uniform(nxt(), (d_model,), d_model),
            'w1': _uniform(nxt(), (d_model, dim_ff), d_model),
            'b1': _uniform(nxt(), (dim_ff,), d_model),
            'w2': _uniform(nxt(), (dim_ff, d_model), dim_ff),
            'b2': _uniform(nxt(), (d_model,), dim_ff),
            'g1': jnp.ones((d_model,), jnp.float32),
            'be1': jnp.zeros((d_model,), jnp.float32),
            'g2': jnp.ones((d_model,), jnp.float32),
            'be2': jnp.zeros((d_model,), jnp.float32),
        })

    transformer = {
        'We': _uniform(nxt(), (C, d_model), C),
        'be': _uniform(nxt(), (d_model,), C),
        'pe': make_pe(max_len, d_model),
        'layers': layers,
    }

    return {
        'tcn': tcn,
        'transformer': transformer,
        'fc_w': _uniform(nxt(), (d_model, 1), d_model),
        'fc_b': _uniform(nxt(), (1,), d_model),
    }


# ----------------------------------- main --------------------------------------
if __name__ == "__main__":
    B, num_inputs, L = 2, 4, 16
    num_channels = [8, 16]          # TCN channels; transformer input_size = 16
    ksize = 3
    d_model, nhead, num_layers, dim_ff = 32, 4, 2, 64

    key = jax.random.PRNGKey(0)
    kp, kx = jax.random.split(key)
    params = init_params(kp, num_inputs, num_channels, ksize,
                         d_model, nhead, num_layers, dim_ff, max_len=128)
    x = jax.random.normal(kx, (B, num_inputs, L), jnp.float32)

    cfg, arrays = prepare_params(params, nhead, seq_len=L)   # one-time weight packing
    fwd = jax.jit(functools.partial(tcn_transformer_forward, cfg=cfg))
    out = fwd(x, arrays)
    jax.block_until_ready(out)
    assert out.shape == (B, 1) and out.dtype == jnp.float32
    assert bool(jnp.all(jnp.isfinite(out)))
    print("KERNEL_OK")
</pallas_src>

<mosaic_0001>
module attributes {stable_mosaic.version = 11 : i64} {
  func.func @_tcn_stack_kernel(%arg0: memref<32x4xf32, #tpu.memory_space<vmem>>, %arg1: memref<3x4x8xbf16, #tpu.memory_space<vmem>>, %arg2: memref<1x8xf32, #tpu.memory_space<vmem>>, %arg3: memref<3x8x8xbf16, #tpu.memory_space<vmem>>, %arg4: memref<1x8xf32, #tpu.memory_space<vmem>>, %arg5: memref<4x8xbf16, #tpu.memory_space<vmem>>, %arg6: memref<1x8xf32, #tpu.memory_space<vmem>>, %arg7: memref<3x8x16xbf16, #tpu.memory_space<vmem>>, %arg8: memref<1x16xf32, #tpu.memory_space<vmem>>, %arg9: memref<3x16x16xbf16, #tpu.memory_space<vmem>>, %arg10: memref<1x16xf32, #tpu.memory_space<vmem>>, %arg11: memref<8x16xbf16, #tpu.memory_space<vmem>>, %arg12: memref<1x16xf32, #tpu.memory_space<vmem>>, %arg13: memref<32x16xf32, #tpu.memory_space<vmem>>) attributes {dimension_semantics = [], scalar_prefetch = 0 : i64, scratch_operands = 0 : i64, tpu.core_type = #tpu.core_type<tc>} {
    %c0 = arith.constant 0 : index
    %c0_0 = arith.constant 0 : index
    %0 = vector.load %arg0[%c0, %c0_0] : memref<32x4xf32, #tpu.memory_space<vmem>>, vector<32x4xf32>
    %1 = tpu.iota {dimensions = array<i32: 0>} : vector<32x1xi32>
    %c16_i32 = arith.constant 16 : i32
    %c0_i32 = arith.constant 0 : i32
    %2 = arith.cmpi eq, %c16_i32, %c0_i32 : i32
    %c1_i32 = arith.constant 1 : i32
    %3 = arith.select %2, %c1_i32, %c16_i32 : i32
    %4 = vector.broadcast %3 : i32 to vector<32x1xi32>
    %5 = arith.remsi %1, %4 : vector<32x1xi32>
    %c0_i32_1 = arith.constant 0 : i32
    %6 = vector.broadcast %c0_i32_1 : i32 to vector<32x1xi32>
    %7 = arith.cmpi ne, %5, %6 : vector<32x1xi32>
    %c0_i32_2 = arith.constant 0 : i32
    %8 = vector.broadcast %c0_i32_2 : i32 to vector<32x1xi32>
    %9 = arith.cmpi slt, %5, %8 : vector<32x1xi32>
    %c0_i32_3 = arith.constant 0 : i32
    %10 = arith.cmpi slt, %3, %c0_i32_3 : i32
    %11 = vector.broadcast %10 : i1 to vector<32x1xi1>
    %12 = vector.broadcast %11 : vector<32x1xi1> to vector<32x1xi1>
    %13 = arith.xori %9, %12 : vector<32x1xi1>
    %14 = arith.andi %13, %7 : vector<32x1xi1>
    %15 = vector.broadcast %3 : i32 to vector<32x1xi32>
    %16 = arith.addi %5, %15 : vector<32x1xi32>
    %17 = arith.select %14, %16, %5 : vector<32x1xi1>, vector<32x1xi32>
    %18 = arith.truncf %0 : vector<32x4xf32> to vector<32x4xbf16>
    %c2 = arith.constant 2 : index
    %c0_4 = arith.constant 0 : index
    %c0_5 = arith.constant 0 : index
    %19 = vector.load %arg1[%c2, %c0_4, %c0_5] : memref<3x4x8xbf16, #tpu.memory_space<vmem>>, vector<1x4x8xbf16>
    %20 = vector.shape_cast %19 : vector<1x4x8xbf16> to vector<4x8xbf16>
    %cst = arith.constant dense<0.000000e+00> : vector<32x8xf32>
    %21 = tpu.matmul %18, %20, %cst {dimension_numbers = #tpu.dot_dimension_numbers<[1], [0], [0], [1], [0, 0, 1, 1], [], []>} : vector<32x4xbf16>, vector<4x8xbf16>, vector<32x8xf32> -> vector<32x8xf32>
    %c0_6 = arith.constant 0 : index
    %c0_7 = arith.constant 0 : index
    %c0_8 = arith.constant 0 : index
    %22 = vector.load %arg1[%c0_6, %c0_7, %c0_8] : memref<3x4x8xbf16, #tpu.memory_space<vmem>>, vector<1x4x8xbf16>
    %23 = vector.shape_cast %22 : vector<1x4x8xbf16> to vector<4x8xbf16>
    %cst_9 = arith.constant dense<0.000000e+00> : vector<32x8xf32>
    %24 = tpu.matmul %18, %23, %cst_9 {dimension_numbers = #tpu.dot_dimension_numbers<[1], [0], [0], [1], [0, 0, 1, 1], [], []>} : vector<32x4xbf16>, vector<4x8xbf16>, vector<32x8xf32> -> vector<32x8xf32>
    %25 = vector.extract_strided_slice %24 {offsets = [30, 0], sizes = [2, 8], strides = [1, 1]} : vector<32x8xf32> to vector<2x8xf32>
    %26 = vector.extract_strided_slice %24 {offsets = [0, 0], sizes = [30, 8], strides = [1, 1]} : vector<32x8xf32> to vector<30x8xf32>
    %27 = tpu.concatenate %25, %26 in 0 : vector<2x8xf32>, vector<30x8xf32> -> vector<32x8xf32>
    %c2_i32 = arith.constant 2 : i32
    %28 = vector.broadcast %c2_i32 : i32 to vector<32x1xi32>
    %29 = arith.cmpi sge, %17, %28 : vector<32x1xi32>
    %cst_10 = arith.constant 0.000000e+00 : f32
    %30 = vector.shape_cast %29 : vector<32x1xi1> to vector<32x1xi1>
    %31 = vector.broadcast %30 : vector<32x1xi1> to vector<32x8xi1>
    %32 = vector.broadcast %cst_10 : f32 to vector<32x8xf32>
    %33 = arith.select %31, %27, %32 : vector<32x8xi1>, vector<32x8xf32>
    %34 = arith.addf %21, %33 : vector<32x8xf32>
    %c1 = arith.constant 1 : index
    %c0_11 = arith.constant 0 : index
    %c0_12 = arith.constant 0 : index
    %35 = vector.load %arg1[%c1, %c0_11, %c0_12] : memref<3x4x8xbf16, #tpu.memory_space<vmem>>, vector<1x4x8xbf16>
    %36 = vector.shape_cast %35 : vector<1x4x8xbf16> to vector<4x8xbf16>
    %cst_13 = arith.constant dense<0.000000e+00> : vector<32x8xf32>
    %37 = tpu.matmul %18, %36, %cst_13 {dimension_numbers = #tpu.dot_dimension_numbers<[1], [0], [0], [1], [0, 0, 1, 1], [], []>} : vector<32x4xbf16>, vector<4x8xbf16>, vector<32x8xf32> -> vector<32x8xf32>
    %38 = vector.extract_strided_slice %37 {offsets = [31, 0], sizes = [1, 8], strides = [1, 1]} : vector<32x8xf32> to vector<1x8xf32>
    %39 = vector.extract_strided_slice %37 {offsets = [0, 0], sizes = [31, 8], strides = [1, 1]} : vector<32x8xf32> to vector<31x8xf32>
    %40 = tpu.concatenate %38, %39 in 0 : vector<1x8xf32>, vector<31x8xf32> -> vector<32x8xf32>
    %c1_i32_14 = arith.constant 1 : i32
    %41 = vector.broadcast %c1_i32_14 : i32 to vector<32x1xi32>
    %42 = arith.cmpi sge, %17, %41 : vector<32x1xi32>
    %cst_15 = arith.constant 0.000000e+00 : f32
    %43 = vector.shape_cast %42 : vector<32x1xi1> to vector<32x1xi1>
    %44 = vector.broadcast %43 : vector<32x1xi1> to vector<32x8xi1>
    %45 = vector.broadcast %cst_15 : f32 to vector<32x8xf32>
    %46 = arith.select %44, %40, %45 : vector<32x8xi1>, vector<32x8xf32>
    %47 = arith.addf %34, %46 : vector<32x8xf32>
    %c0_16 = arith.constant 0 : index
    %c0_17 = arith.constant 0 : index
    %48 = vector.load %arg2[%c0_16, %c0_17] : memref<1x8xf32, #tpu.memory_space<vmem>>, vector<1x8xf32>
    %49 = vector.broadcast %48 : vector<1x8xf32> to vector<32x8xf32>
    %50 = arith.addf %47, %49 : vector<32x8xf32>
    %cst_18 = arith.constant 0.000000e+00 : f32
    %51 = vector.broadcast %cst_18 : f32 to vector<32x8xf32>
    %52 = arith.maximumf %50, %51 : vector<32x8xf32>
    %53 = arith.truncf %52 : vector<32x8xf32> to vector<32x8xbf16>
    %c2_19 = arith.constant 2 : index
    %c0_20 = arith.constant 0 : index
    %c0_21 = arith.constant 0 : index
    %54 = vector.load %arg3[%c2_19, %c0_20, %c0_21] : memref<3x8x8xbf16, #tpu.memory_space<vmem>>, vector<1x8x8xbf16>
    %55 = vector.shape_cast %54 : vector<1x8x8xbf16> to vector<8x8xbf16>
    %cst_22 = arith.constant dense<0.000000e+00> : vector<32x8xf32>
    %56 = tpu.matmul %53, %55, %cst_22 {dimension_numbers = #tpu.dot_dimension_numbers<[1], [0], [0], [1], [0, 0, 1, 1], [], []>} : vector<32x8xbf16>, vector<8x8xbf16>, vector<32x8xf32> -> vector<32x8xf32>
    %c0_23 = arith.constant 0 : index
    %c0_24 = arith.constant 0 : index
    %c0_25 = arith.constant 0 : index
    %57 = vector.load %arg3[%c0_23, %c0_24, %c0_25] : memref<3x8x8xbf16, #tpu.memory_space<vmem>>, vector<1x8x8xbf16>
    %58 = vector.shape_cast %57 : vector<1x8x8xbf16> to vector<8x8xbf16>
    %cst_26 = arith.constant dense<0.000000e+00> : vector<32x8xf32>
    %59 = tpu.matmul %53, %58, %cst_26 {dimension_numbers = #tpu.dot_dimension_numbers<[1], [0], [0], [1], [0, 0, 1, 1], [], []>} : vector<32x8xbf16>, vector<8x8xbf16>, vector<32x8xf32> -> vector<32x8xf32>
    %60 = vector.extract_strided_slice %59 {offsets = [30, 0], sizes = [2, 8], strides = [1, 1]} : vector<32x8xf32> to vector<2x8xf32>
    %61 = vector.extract_strided_slice %59 {offsets = [0, 0], sizes = [30, 8], strides = [1, 1]} : vector<32x8xf32> to vector<30x8xf32>
    %62 = tpu.concatenate %60, %61 in 0 : vector<2x8xf32>, vector<30x8xf32> -> vector<32x8xf32>
    %c2_i32_27 = arith.constant 2 : i32
    %63 = vector.broadcast %c2_i32_27 : i32 to vector<32x1xi32>
    %64 = arith.cmpi sge, %17, %63 : vector<32x1xi32>
    %cst_28 = arith.constant 0.000000e+00 : f32
    %65 = vector.shape_cast %64 : vector<32x1xi1> to vector<32x1xi1>
    %66 = vector.broadcast %65 : vector<32x1xi1> to vector<32x8xi1>
    %67 = vector.broadcast %cst_28 : f32 to vector<32x8xf32>
    %68 = arith.select %66, %62, %67 : vector<32x8xi1>, vector<32x8xf32>
    %69 = arith.addf %56, %68 : vector<32x8xf32>
    %c1_29 = arith.constant 1 : index
    %c0_30 = arith.constant 0 : index
    %c0_31 = arith.constant 0 : index
    %70 = vector.load %arg3[%c1_29, %c0_30, %c0_31] : memref<3x8x8xbf16, #tpu.memory_space<vmem>>, vector<1x8x8xbf16>
    %71 = vector.shape_cast %70 : vector<1x8x8xbf16> to vector<8x8xbf16>
    %cst_32 = arith.constant dense<0.000000e+00> : vector<32x8xf32>
    %72 = tpu.matmul %53, %71, %cst_32 {dimension_numbers = #tpu.dot_dimension_numbers<[1], [0], [0], [1], [0, 0, 1, 1], [], []>} : vector<32x8xbf16>, vector<8x8xbf16>, vector<32x8xf32> -> vector<32x8xf32>
    %73 = vector.extract_strided_slice %72 {offsets = [31, 0], sizes = [1, 8], strides = [1, 1]} : vector<32x8xf32> to vector<1x8xf32>
    %74 = vector.extract_strided_slice %72 {offsets = [0, 0], sizes = [31, 8], strides = [1, 1]} : vector<32x8xf32> to vector<31x8xf32>
    %75 = tpu.concatenate %73, %74 in 0 : vector<1x8xf32>, vector<31x8xf32> -> vector<32x8xf32>
    %c1_i32_33 = arith.constant 1 : i32
    %76 = vector.broadcast %c1_i32_33 : i32 to vector<32x1xi32>
    %77 = arith.cmpi sge, %17, %76 : vector<32x1xi32>
    %cst_34 = arith.constant 0.000000e+00 : f32
    %78 = vector.shape_cast %77 : vector<32x1xi1> to vector<32x1xi1>
    %79 = vector.broadcast %78 : vector<32x1xi1> to vector<32x8xi1>
    %80 = vector.broadcast %cst_34 : f32 to vector<32x8xf32>
    %81 = arith.select %79, %75, %80 : vector<32x8xi1>, vector<32x8xf32>
    %82 = arith.addf %69, %81 : vector<32x8xf32>
    %c0_35 = arith.constant 0 : index
    %c0_36 = arith.constant 0 : index
    %83 = vector.load %arg4[%c0_35, %c0_36] : memref<1x8xf32, #tpu.memory_space<vmem>>, vector<1x8xf32>
    %84 = vector.broadcast %83 : vector<1x8xf32> to vector<32x8xf32>
    %85 = arith.addf %82, %84 : vector<32x8xf32>
    %cst_37 = arith.constant 0.000000e+00 : f32
    %86 = vector.broadcast %cst_37 : f32 to vector<32x8xf32>
    %87 = arith.maximumf %85, %86 : vector<32x8xf32>
    %c0_38 = arith.constant 0 : index
    %c0_39 = arith.constant 0 : index
    %88 = vector.load %arg5[%c0_38, %c0_39] : memref<4x8xbf16, #tpu.memory_space<vmem>>, vector<4x8xbf16>
    %cst_40 = arith.constant dense<0.000000e+00> : vector<32x8xf32>
    %89 = tpu.matmul %18, %88, %cst_40 {dimension_numbers = #tpu.dot_dimension_numbers<[1], [0], [0], [1], [0, 0, 1, 1], [], []>} : vector<32x4xbf16>, vector<4x8xbf16>, vector<32x8xf32> -> vector<32x8xf32>
    %c0_41 = arith.constant 0 : index
    %c0_42 = arith.constant 0 : index
    %90 = vector.load %arg6[%c0_41, %c0_42] : memref<1x8xf32, #tpu.memory_space<vmem>>, vector<1x8xf32>
    %91 = vector.broadcast %90 : vector<1x8xf32> to vector<32x8xf32>
    %92 = arith.addf %89, %91 : vector<32x8xf32>
    %93 = arith.addf %87, %92 : vector<32x8xf32>
    %cst_43 = arith.constant 0.000000e+00 : f32
    %94 = vector.broadcast %cst_43 : f32 to vector<32x8xf32>
    %95 = arith.maximumf %93, %94 : vector<32x8xf32>
    %96 = arith.truncf %95 : vector<32x8xf32> to vector<32x8xbf16>
    %c2_44 = arith.constant 2 : index
    %c0_45 = arith.constant 0 : index
    %c0_46 = arith.constant 0 : index
    %97 = vector.load %arg7[%c2_44, %c0_45, %c0_46] : memref<3x8x16xbf16, #tpu.memory_space<vmem>>, vector<1x8x16xbf16>
    %98 = vector.shape_cast %97 : vector<1x8x16xbf16> to vector<8x16xbf16>
    %cst_47 = arith.constant dense<0.000000e+00> : vector<32x16xf32>
    %99 = tpu.matmul %96, %98, %cst_47 {dimension_numbers = #tpu.dot_dimension_numbers<[1], [0], [0], [1], [0, 0, 1, 1], [], []>} : vector<32x8xbf16>, vector<8x16xbf16>, vector<32x16xf32> -> vector<32x16xf32>
    %c0_48 = arith.constant 0 : index
    %c0_49 = arith.constant 0 : index
    %c0_50 = arith.constant 0 : index
    %100 = vector.load %arg7[%c0_48, %c0_49, %c0_50] : memref<3x8x16xbf16, #tpu.memory_space<vmem>>, vector<1x8x16xbf16>
    %101 = vector.shape_cast %100 : vector<1x8x16xbf16> to vector<8x16xbf16>
    %cst_51 = arith.constant dense<0.000000e+00> : vector<32x16xf32>
    %102 = tpu.matmul %96, %101, %cst_51 {dimension_numbers = #tpu.dot_dimension_numbers<[1], [0], [0], [1], [0, 0, 1, 1], [], []>} : vector<32x8xbf16>, vector<8x16xbf16>, vector<32x16xf32> -> vector<32x16xf32>
    %103 = vector.extract_strided_slice %102 {offsets = [28, 0], sizes = [4, 16], strides = [1, 1]} : vector<32x16xf32> to vector<4x16xf32>
    %104 = vector.extract_strided_slice %102 {offsets = [0, 0], sizes = [28, 16], strides = [1, 1]} : vector<32x16xf32> to vector<28x16xf32>
    %105 = tpu.concatenate %103, %104 in 0 : vector<4x16xf32>, vector<28x16xf32> -> vector<32x16xf32>
    %c4_i32 = arith.constant 4 : i32
    %106 = vector.broadcast %c4_i32 : i32 to vector<32x1xi32>
    %107 = arith.cmpi sge, %17, %106 : vector<32x1xi32>
    %cst_52 = arith.constant 0.000000e+00 : f32
    %108 = vector.shape_cast %107 : vector<32x1xi1> to vector<32x1xi1>
    %109 = vector.broadcast %108 : vector<32x1xi1> to vector<32x16xi1>
    %110 = vector.broadcast %cst_52 : f32 to vector<32x16xf32>
    %111 = arith.select %109, %105, %110 : vector<32x16xi1>, vector<32x16xf32>
    %112 = arith.addf %99, %111 : vector<32x16xf32>
    %c1_53 = arith.constant 1 : index
    %c0_54 = arith.constant 0 : index
    %c0_55 = arith.constant 0 : index
    %113 = vector.load %arg7[%c1_53, %c0_54, %c0_55] : memref<3x8x16xbf16, #tpu.memory_space<vmem>>, vector<1x8x16xbf16>
    %114 = vector.shape_cast %113 : vector<1x8x16xbf16> to vector<8x16xbf16>
    %cst_56 = arith.constant dense<0.000000e+00> : vector<32x16xf32>
    %115 = tpu.matmul %96, %114, %cst_56 {dimension_numbers = #tpu.dot_dimension_numbers<[1], [0], [0], [1], [0, 0, 1, 1], [], []>} : vector<32x8xbf16>, vector<8x16xbf16>, vector<32x16xf32> -> vector<32x16xf32>
    %116 = vector.extract_strided_slice %115 {offsets = [30, 0], sizes = [2, 16], strides = [1, 1]} : vector<32x16xf32> to vector<2x16xf32>
    %117 = vector.extract_strided_slice %115 {offsets = [0, 0], sizes = [30, 16], strides = [1, 1]} : vector<32x16xf32> to vector<30x16xf32>
    %118 = tpu.concatenate %116, %117 in 0 : vector<2x16xf32>, vector<30x16xf32> -> vector<32x16xf32>
    %c2_i32_57 = arith.constant 2 : i32
    %119 = vector.broadcast %c2_i32_57 : i32 to vector<32x1xi32>
    %120 = arith.cmpi sge, %17, %119 : vector<32x1xi32>
    %cst_58 = arith.constant 0.000000e+00 : f32
    %121 = vector.shape_cast %120 : vector<32x1xi1> to vector<32x1xi1>
    %122 = vector.broadcast %121 : vector<32x1xi1> to vector<32x16xi1>
    %123 = vector.broadcast %cst_58 : f32 to vector<32x16xf32>
    %124 = arith.select %122, %118, %123 : vector<32x16xi1>, vector<32x16xf32>
    %125 = arith.addf %112, %124 : vector<32x16xf32>
    %c0_59 = arith.constant 0 : index
    %c0_60 = arith.constant 0 : index
    %126 = vector.load %arg8[%c0_59, %c0_60] : memref<1x16xf32, #tpu.memory_space<vmem>>, vector<1x16xf32>
    %127 = vector.broadcast %126 : vector<1x16xf32> to vector<32x16xf32>
    %128 = arith.addf %125, %127 : vector<32x16xf32>
    %cst_61 = arith.constant 0.000000e+00 : f32
    %129 = vector.broadcast %cst_61 : f32 to vector<32x16xf32>
    %130 = arith.maximumf %128, %129 : vector<32x16xf32>
    %131 = arith.truncf %130 : vector<32x16xf32> to vector<32x16xbf16>
    %c2_62 = arith.constant 2 : index
    %c0_63 = arith.constant 0 : index
    %c0_64 = arith.constant 0 : index
    %132 = vector.load %arg9[%c2_62, %c0_63, %c0_64] : memref<3x16x16xbf16, #tpu.memory_space<vmem>>, vector<1x16x16xbf16>
    %133 = vector.shape_cast %132 : vector<1x16x16xbf16> to vector<16x16xbf16>
    %cst_65 = arith.constant dense<0.000000e+00> : vector<32x16xf32>
    %134 = tpu.matmul %131, %133, %cst_65 {dimension_numbers = #tpu.dot_dimension_numbers<[1], [0], [0], [1], [0, 0, 1, 1], [], []>} : vector<32x16xbf16>, vector<16x16xbf16>, vector<32x16xf32> -> vector<32x16xf32>
    %c0_66 = arith.constant 0 : index
    %c0_67 = arith.constant 0 : index
    %c0_68 = arith.constant 0 : index
    %135 = vector.load %arg9[%c0_66, %c0_67, %c0_68] : memref<3x16x16xbf16, #tpu.memory_space<vmem>>, vector<1x16x16xbf16>
    %136 = vector.shape_cast %135 : vector<1x16x16xbf16> to vector<16x16xbf16>
    %cst_69 = arith.constant dense<0.000000e+00> : vector<32x16xf32>
    %137 = tpu.matmul %131, %136, %cst_69 {dimension_numbers = #tpu.dot_dimension_numbers<[1], [0], [0], [1], [0, 0, 1, 1], [], []>} : vector<32x16xbf16>, vector<16x16xbf16>, vector<32x16xf32> -> vector<32x16xf32>
    %138 = vector.extract_strided_slice %137 {offsets = [28, 0], sizes = [4, 16], strides = [1, 1]} : vector<32x16xf32> to vector<4x16xf32>
    %139 = vector.extract_strided_slice %137 {offsets = [0, 0], sizes = [28, 16], strides = [1, 1]} : vector<32x16xf32> to vector<28x16xf32>
    %140 = tpu.concatenate %138, %139 in 0 : vector<4x16xf32>, vector<28x16xf32> -> vector<32x16xf32>
    %c4_i32_70 = arith.constant 4 : i32
    %141 = vector.broadcast %c4_i32_70 : i32 to vector<32x1xi32>
    %142 = arith.cmpi sge, %17, %141 : vector<32x1xi32>
    %cst_71 = arith.constant 0.000000e+00 : f32
    %143 = vector.shape_cast %142 : vector<32x1xi1> to vector<32x1xi1>
    %144 = vector.broadcast %143 : vector<32x1xi1> to vector<32x16xi1>
    %145 = vector.broadcast %cst_71 : f32 to vector<32x16xf32>
    %146 = arith.select %144, %140, %145 : vector<32x16xi1>, vector<32x16xf32>
    %147 = arith.addf %134, %146 : vector<32x16xf32>
    %c1_72 = arith.constant 1 : index
    %c0_73 = arith.constant 0 : index
    %c0_74 = arith.constant 0 : index
    %148 = vector.load %arg9[%c1_72, %c0_73, %c0_74] : memref<3x16x16xbf16, #tpu.memory_space<vmem>>, vector<1x16x16xbf16>
    %149 = vector.shape_cast %148 : vector<1x16x16xbf16> to vector<16x16xbf16>
    %cst_75 = arith.constant dense<0.000000e+00> : vector<32x16xf32>
    %150 = tpu.matmul %131, %149, %cst_75 {dimension_numbers = #tpu.dot_dimension_numbers<[1], [0], [0], [1], [0, 0, 1, 1], [], []>} : vector<32x16xbf16>, vector<16x16xbf16>, vector<32x16xf32> -> vector<32x16xf32>
    %151 = vector.extract_strided_slice %150 {offsets = [30, 0], sizes = [2, 16], strides = [1, 1]} : vector<32x16xf32> to vector<2x16xf32>
    %152 = vector.extract_strided_slice %150 {offsets = [0, 0], sizes = [30, 16], strides = [1, 1]} : vector<32x16xf32> to vector<30x16xf32>
    %153 = tpu.concatenate %151, %152 in 0 : vector<2x16xf32>, vector<30x16xf32> -> vector<32x16xf32>
    %c2_i32_76 = arith.constant 2 : i32
    %154 = vector.broadcast %c2_i32_76 : i32 to vector<32x1xi32>
    %155 = arith.cmpi sge, %17, %154 : vector<32x1xi32>
    %cst_77 = arith.constant 0.000000e+00 : f32
    %156 = vector.shape_cast %155 : vector<32x1xi1> to vector<32x1xi1>
    %157 = vector.broadcast %156 : vector<32x1xi1> to vector<32x16xi1>
    %158 = vector.broadcast %cst_77 : f32 to vector<32x16xf32>
    %159 = arith.select %157, %153, %158 : vector<32x16xi1>, vector<32x16xf32>
    %160 = arith.addf %147, %159 : vector<32x16xf32>
    %c0_78 = arith.constant 0 : index
    %c0_79 = arith.constant 0 : index
    %161 = vector.load %arg10[%c0_78, %c0_79] : memref<1x16xf32, #tpu.memory_space<vmem>>, vector<1x16xf32>
    %162 = vector.broadcast %161 : vector<1x16xf32> to vector<32x16xf32>
    %163 = arith.addf %160, %162 : vector<32x16xf32>
    %cst_80 = arith.constant 0.000000e+00 : f32
    %164 = vector.broadcast %cst_80 : f32 to vector<32x16xf32>
    %165 = arith.maximumf %163, %164 : vector<32x16xf32>
    %c0_81 = arith.constant 0 : index
    %c0_82 = arith.constant 0 : index
    %166 = vector.load %arg11[%c0_81, %c0_82] : memref<8x16xbf16, #tpu.memory_space<vmem>>, vector<8x16xbf16>
    %cst_83 = arith.constant dense<0.000000e+00> : vector<32x16xf32>
    %167 = tpu.matmul %96, %166, %cst_83 {dimension_numbers = #tpu.dot_dimension_numbers<[1], [0], [0], [1], [0, 0, 1, 1], [], []>} : vector<32x8xbf16>, vector<8x16xbf16>, vector<32x16xf32> -> vector<32x16xf32>
    %c0_84 = arith.constant 0 : index
    %c0_85 = arith.constant 0 : index
    %168 = vector.load %arg12[%c0_84, %c0_85] : memref<1x16xf32, #tpu.memory_space<vmem>>, vector<1x16xf32>
    %169 = vector.broadcast %168 : vector<1x16xf32> to vector<32x16xf32>
    %170 = arith.addf %167, %169 : vector<32x16xf32>
    %171 = arith.addf %165, %170 : vector<32x16xf32>
    %cst_86 = arith.constant 0.000000e+00 : f32
    %172 = vector.broadcast %cst_86 : f32 to vector<32x16xf32>
    %173 = arith.maximumf %171, %172 : vector<32x16xf32>
    %c0_87 = arith.constant 0 : index
    %c0_88 = arith.constant 0 : index
    %174 = vector.load %arg13[%c0_87, %c0_88] : memref<32x16xf32, #tpu.memory_space<vmem>>, vector<32x16xf32>
    tpu.vector_store %arg13[%c0_87, %c0_88], %173 {strides = array<i32>} : memref<32x16xf32, #tpu.memory_space<vmem>>, vector<32x16xf32>,
    return
  }
}

module attributes {stable_mosaic.version = 11 : i64} {
  func.func @_transformer_stack_kernel(%arg0: i32, %arg1: memref<32x16xf32, #tpu.memory_space<vmem>>, %arg2: memref<16x32xbf16, #tpu.memory_space<vmem>>, %arg3: memref<1x32xf32, #tpu.memory_space<vmem>>, %arg4: memref<16x32xf32, #tpu.memory_space<vmem>>, %arg5: memref<1x32x96xbf16, #tpu.memory_space<vmem>>, %arg6: memref<1x32x32xbf16, #tpu.memory_space<vmem>>, %arg7: memref<1x32x64xbf16, #tpu.memory_space<vmem>>, %arg8: memref<1x64x32xbf16, #tpu.memory_space<vmem>>, %arg9: memref<1x8x96xf32, #tpu.memory_space<vmem>>, %arg10: memref<32x1xbf16, #tpu.memory_space<vmem>>, %arg11: memref<1x1xf32, #tpu.memory_space<vmem>>, %arg12: memref<2x1xf32, #tpu.memory_space<vmem>>, %arg13: memref<32x32xf32, #tpu.memory_space<vmem>>) attributes {dimension_semantics = [#tpu.dimension_semantics<arbitrary>], iteration_bounds = array<i64: 2>, scalar_prefetch = 0 : i64, scratch_operands = 1 : i64, tpu.core_type = #tpu.core_type<tc>, window_params = [{pipeline_mode = #tpu.pipeline_mode<synchronous>, transform_indices = @transform_0, window_bounds = array<i64: 32, 16>}, {pipeline_mode = #tpu.pipeline_mode<synchronous>, transform_indices = @transform_1, window_bounds = array<i64: 16, 32>}, {pipeline_mode = #tpu.pipeline_mode<synchronous>, transform_indices = @transform_2, window_bounds = array<i64: 1, 32>}, {pipeline_mode = #tpu.pipeline_mode<synchronous>, transform_indices = @transform_3, window_bounds = array<i64: 16, 32>}, {transform_indices = @transform_4, window_bounds = array<i64: 1, 32, 96>}, {transform_indices = @transform_5, window_bounds = array<i64: 1, 32, 32>}, {transform_indices = @transform_6, window_bounds = array<i64: 1, 32, 64>}, {transform_indices = @transform_7, window_bounds = array<i64: 1, 64, 32>}, {transform_indices = @transform_8, window_bounds = array<i64: 1, 8, 96>}, {pipeline_mode = #tpu.pipeline_mode<synchronous>, transform_indices = @transform_9, window_bounds = array<i64: 32, 1>}, {pipeline_mode = #tpu.pipeline_mode<synchronous>, transform_indices = @transform_10, window_bounds = array<i64: 1, 1>}, {pipeline_mode = #tpu.pipeline_mode<synchronous>, transform_indices = @transform_11, window_bounds = array<i64: 2, 1>}]} {
    %c0_i32 = arith.constant 0 : i32
    %0 = arith.cmpi eq, %arg0, %c0_i32 : i32
    %1 = arith.extui %0 : i1 to i32
    %c0_i32_0 = arith.constant 0 : i32
    %2 = arith.cmpi ne, %1, %c0_i32_0 : i32
    scf.if %2 {
      %c0_64 = arith.constant 0 : index
      %c0_65 = arith.constant 0 : index
      %164 = vector.load %arg1[%c0_64, %c0_65] : memref<32x16xf32, #tpu.memory_space<vmem>>, vector<32x16xf32>
      %c0_66 = arith.constant 0 : index
      %c0_67 = arith.constant 0 : index
      %165 = vector.load %arg2[%c0_66, %c0_67] : memref<16x32xbf16, #tpu.memory_space<vmem>>, vector<16x32xbf16>
      %166 = arith.truncf %164 : vector<32x16xf32> to vector<32x16xbf16>
      %cst_68 = arith.constant dense<0.000000e+00> : vector<32x32xf32>
      %167 = tpu.matmul %166, %165, %cst_68 {dimension_numbers = #tpu.dot_dimension_numbers<[1], [0], [0], [1], [0, 0, 1, 1], [], []>} : vector<32x16xbf16>, vector<16x32xbf16>, vector<32x32xf32> -> vector<32x32xf32>
      %c0_69 = arith.constant 0 : index
      %c0_70 = arith.constant 0 : index
      %168 = vector.load %arg3[%c0_69, %c0_70] : memref<1x32xf32, #tpu.memory_space<vmem>>, vector<1x32xf32>
      %169 = vector.broadcast %168 : vector<1x32xf32> to vector<32x32xf32>
      %170 = arith.addf %167, %169 : vector<32x32xf32>
      %171 = vector.shape_cast %170 : vector<32x32xf32> to vector<2x16x32xf32>
      %c0_71 = arith.constant 0 : index
      %c0_72 = arith.constant 0 : index
      %172 = vector.load %arg4[%c0_71, %c0_72] : memref<16x32xf32, #tpu.memory_space<vmem>>, vector<16x32xf32>
      %173 = vector.shape_cast %172 : vector<16x32xf32> to vector<1x16x32xf32>
      %174 = vector.broadcast %173 : vector<1x16x32xf32> to vector<2x16x32xf32>
      %175 = arith.addf %171, %174 : vector<2x16x32xf32>
      %176 = vector.shape_cast %175 : vector<2x16x32xf32> to vector<32x32xf32>
      %c0_73 = arith.constant 0 : index
      %c0_74 = arith.constant 0 : index
      %177 = vector.load %arg13[%c0_73, %c0_74] : memref<32x32xf32, #tpu.memory_space<vmem>>, vector<32x32xf32>
      tpu.vector_store %arg13[%c0_73, %c0_74], %176 {strides = array<i32>} : memref<32x32xf32, #tpu.memory_space<vmem>>, vector<32x32xf32>,
    } else {
    }
    %c0 = arith.constant 0 : index
    %c0_1 = arith.constant 0 : index
    %3 = vector.load %arg13[%c0, %c0_1] : memref<32x32xf32, #tpu.memory_space<vmem>>, vector<32x32xf32>
    %4 = arith.truncf %3 : vector<32x32xf32> to vector<32x32xbf16>
    %c0_2 = arith.constant 0 : index
    %c0_3 = arith.constant 0 : index
    %c0_4 = arith.constant 0 : index
    %5 = vector.load %arg5[%c0_2, %c0_3, %c0_4] : memref<1x32x96xbf16, #tpu.memory_space<vmem>>, vector<1x32x96xbf16>
    %6 = vector.shape_cast %5 : vector<1x32x96xbf16> to vector<32x96xbf16>
    %cst = arith.constant dense<0.000000e+00> : vector<32x96xf32>
    %7 = tpu.matmul %4, %6, %cst {dimension_numbers = #tpu.dot_dimension_numbers<[1], [0], [0], [1], [0, 0, 1, 1], [], []>} : vector<32x32xbf16>, vector<32x96xbf16>, vector<32x96xf32> -> vector<32x96xf32>
    %c0_5 = arith.constant 0 : index
    %c0_6 = arith.constant 0 : index
    %c0_7 = arith.constant 0 : index
    %8 = vector.load %arg9[%c0_5, %c0_6, %c0_7] : memref<1x8x96xf32, #tpu.memory_space<vmem>>, vector<1x1x96xf32>
    %9 = vector.shape_cast %8 : vector<1x1x96xf32> to vector<1x96xf32>
    %10 = vector.broadcast %9 : vector<1x96xf32> to vector<32x96xf32>
    %11 = arith.addf %7, %10 : vector<32x96xf32>
    %12 = vector.shape_cast %11 : vector<32x96xf32> to vector<2x16x96xf32>
    %13 = arith.truncf %12 : vector<2x16x96xf32> to vector<2x16x96xbf16>
    %14 = vector.extract_strided_slice %13 {offsets = [0, 0, 0], sizes = [2, 16, 8], strides = [1, 1, 1]} : vector<2x16x96xbf16> to vector<2x16x8xbf16>
    %15 = vector.extract_strided_slice %13 {offsets = [0, 0, 32], sizes = [2, 16, 8], strides = [1, 1, 1]} : vector<2x16x96xbf16> to vector<2x16x8xbf16>
    %16 = vector.extract_strided_slice %13 {offsets = [0, 0, 64], sizes = [2, 16, 8], strides = [1, 1, 1]} : vector<2x16x96xbf16> to vector<2x16x8xbf16>
    %cst_8 = arith.constant dense<0.000000e+00> : vector<2x16x16xf32>
    %17 = tpu.matmul %14, %15, %cst_8 {dimension_numbers = #tpu.dot_dimension_numbers<[2], [2], [1], [1], [0, 0, 0, 1, 1, 1], [0], [0]>} : vector<2x16x8xbf16>, vector<2x16x8xbf16>, vector<2x16x16xf32> -> vector<2x16x16xf32>
    %cst_9 = arith.constant dense<0xFF800000> : vector<2x16xf32>
    %18 = vector.multi_reduction <maximumf>, %17, %cst_9 [2] : vector<2x16x16xf32> to vector<2x16xf32>
    %19 = vector.shape_cast %18 : vector<2x16xf32> to vector<2x16x1xf32>
    %20 = vector.broadcast %19 : vector<2x16x1xf32> to vector<2x16x16xf32>
    %21 = arith.subf %17, %20 : vector<2x16x16xf32>
    %22 = math.exp %21 : vector<2x16x16xf32>
    %cst_10 = arith.constant dense<0.000000e+00> : vector<2x16xf32>
    %23 = vector.multi_reduction <add>, %22, %cst_10 [2] : vector<2x16x16xf32> to vector<2x16xf32>
    %24 = vector.shape_cast %23 : vector<2x16xf32> to vector<2x16x1xf32>
    %25 = tpu.reciprocal %24 {approx = true} : vector<2x16x1xf32> -> vector<2x16x1xf32>
    %26 = vector.broadcast %25 : vector<2x16x1xf32> to vector<2x16x16xf32>
    %27 = arith.mulf %22, %26 : vector<2x16x16xf32>
    %28 = arith.truncf %27 : vector<2x16x16xf32> to vector<2x16x16xbf16>
    %cst_11 = arith.constant dense<0.000000e+00> : vector<2x16x8xf32>
    %29 = tpu.matmul %28, %16, %cst_11 {dimension_numbers = #tpu.dot_dimension_numbers<[2], [1], [1], [2], [0, 0, 0, 1, 1, 2], [0], [0]>} : vector<2x16x16xbf16>, vector<2x16x8xbf16>, vector<2x16x8xf32> -> vector<2x16x8xf32>
    %30 = vector.extract_strided_slice %13 {offsets = [0, 0, 8], sizes = [2, 16, 8], strides = [1, 1, 1]} : vector<2x16x96xbf16> to vector<2x16x8xbf16>
    %31 = vector.extract_strided_slice %13 {offsets = [0, 0, 40], sizes = [2, 16, 8], strides = [1, 1, 1]} : vector<2x16x96xbf16> to vector<2x16x8xbf16>
    %32 = vector.extract_strided_slice %13 {offsets = [0, 0, 72], sizes = [2, 16, 8], strides = [1, 1, 1]} : vector<2x16x96xbf16> to vector<2x16x8xbf16>
    %cst_12 = arith.constant dense<0.000000e+00> : vector<2x16x16xf32>
    %33 = tpu.matmul %30, %31, %cst_12 {dimension_numbers = #tpu.dot_dimension_numbers<[2], [2], [1], [1], [0, 0, 0, 1, 1, 1], [0], [0]>} : vector<2x16x8xbf16>, vector<2x16x8xbf16>, vector<2x16x16xf32> -> vector<2x16x16xf32>
    %cst_13 = arith.constant dense<0xFF800000> : vector<2x16xf32>
    %34 = vector.multi_reduction <maximumf>, %33, %cst_13 [2] : vector<2x16x16xf32> to vector<2x16xf32>
    %35 = vector.shape_cast %34 : vector<2x16xf32> to vector<2x16x1xf32>
    %36 = vector.broadcast %35 : vector<2x16x1xf32> to vector<2x16x16xf32>
    %37 = arith.subf %33, %36 : vector<2x16x16xf32>
    %38 = math.exp %37 : vector<2x16x16xf32>
    %cst_14 = arith.constant dense<0.000000e+00> : vector<2x16xf32>
    %39 = vector.multi_reduction <add>, %38, %cst_14 [2] : vector<2x16x16xf32> to vector<2x16xf32>
    %40 = vector.shape_cast %39 : vector<2x16xf32> to vector<2x16x1xf32>
    %41 = tpu.reciprocal %40 {approx = true} : vector<2x16x1xf32> -> vector<2x16x1xf32>
    %42 = vector.broadcast %41 : vector<2x16x1xf32> to vector<2x16x16xf32>
    %43 = arith.mulf %38, %42 : vector<2x16x16xf32>
    %44 = arith.truncf %43 : vector<2x16x16xf32> to vector<2x16x16xbf16>
    %cst_15 = arith.constant dense<0.000000e+00> : vector<2x16x8xf32>
    %45 = tpu.matmul %44, %32, %cst_15 {dimension_numbers = #tpu.dot_dimension_numbers<[2], [1], [1], [2], [0, 0, 0, 1, 1, 2], [0], [0]>} : vector<2x16x16xbf16>, vector<2x16x8xbf16>, vector<2x16x8xf32> -> vector<2x16x8xf32>
    %46 = vector.extract_strided_slice %13 {offsets = [0, 0, 16], sizes = [2, 16, 8], strides = [1, 1, 1]} : vector<2x16x96xbf16> to vector<2x16x8xbf16>
    %47 = vector.extract_strided_slice %13 {offsets = [0, 0, 48], sizes = [2, 16, 8], strides = [1, 1, 1]} : vector<2x16x96xbf16> to vector<2x16x8xbf16>
    %48 = vector.extract_strided_slice %13 {offsets = [0, 0, 80], sizes = [2, 16, 8], strides = [1, 1, 1]} : vector<2x16x96xbf16> to vector<2x16x8xbf16>
    %cst_16 = arith.constant dense<0.000000e+00> : vector<2x16x16xf32>
    %49 = tpu.matmul %46, %47, %cst_16 {dimension_numbers = #tpu.dot_dimension_numbers<[2], [2], [1], [1], [0, 0, 0, 1, 1, 1], [0], [0]>} : vector<2x16x8xbf16>, vector<2x16x8xbf16>, vector<2x16x16xf32> -> vector<2x16x16xf32>
    %cst_17 = arith.constant dense<0xFF800000> : vector<2x16xf32>
    %50 = vector.multi_reduction <maximumf>, %49, %cst_17 [2] : vector<2x16x16xf32> to vector<2x16xf32>
    %51 = vector.shape_cast %50 : vector<2x16xf32> to vector<2x16x1xf32>
    %52 = vector.broadcast %51 : vector<2x16x1xf32> to vector<2x16x16xf32>
    %53 = arith.subf %49, %52 : vector<2x16x16xf32>
    %54 = math.exp %53 : vector<2x16x16xf32>
    %cst_18 = arith.constant dense<0.000000e+00> : vector<2x16xf32>
    %55 = vector.multi_reduction <add>, %54, %cst_18 [2] : vector<2x16x16xf32> to vector<2x16xf32>
    %56 = vector.shape_cast %55 : vector<2x16xf32> to vector<2x16x1xf32>
    %57 = tpu.reciprocal %56 {approx = true} : vector<2x16x1xf32> -> vector<2x16x1xf32>
    %58 = vector.broadcast %57 : vector<2x16x1xf32> to vector<2x16x16xf32>
    %59 = arith.mulf %54, %58 : vector<2x16x16xf32>
    %60 = arith.truncf %59 : vector<2x16x16xf32> to vector<2x16x16xbf16>
    %cst_19 = arith.constant dense<0.000000e+00> : vector<2x16x8xf32>
    %61 = tpu.matmul %60, %48, %cst_19 {dimension_numbers = #tpu.dot_dimension_numbers<[2], [1], [1], [2], [0, 0, 0, 1, 1, 2], [0], [0]>} : vector<2x16x16xbf16>, vector<2x16x8xbf16>, vector<2x16x8xf32> -> vector<2x16x8xf32>
    %62 = vector.extract_strided_slice %13 {offsets = [0, 0, 24], sizes = [2, 16, 8], strides = [1, 1, 1]} : vector<2x16x96xbf16> to vector<2x16x8xbf16>
    %63 = vector.extract_strided_slice %13 {offsets = [0, 0, 56], sizes = [2, 16, 8], strides = [1, 1, 1]} : vector<2x16x96xbf16> to vector<2x16x8xbf16>
    %64 = vector.extract_strided_slice %13 {offsets = [0, 0, 88], sizes = [2, 16, 8], strides = [1, 1, 1]} : vector<2x16x96xbf16> to vector<2x16x8xbf16>
    %cst_20 = arith.constant dense<0.000000e+00> : vector<2x16x16xf32>
    %65 = tpu.matmul %62, %63, %cst_20 {dimension_numbers = #tpu.dot_dimension_numbers<[2], [2], [1], [1], [0, 0, 0, 1, 1, 1], [0], [0]>} : vector<2x16x8xbf16>, vector<2x16x8xbf16>, vector<2x16x16xf32> -> vector<2x16x16xf32>
    %cst_21 = arith.constant dense<0xFF800000> : vector<2x16xf32>
    %66 = vector.multi_reduction <maximumf>, %65, %cst_21 [2] : vector<2x16x16xf32> to vector<2x16xf32>
    %67 = vector.shape_cast %66 : vector<2x16xf32> to vector<2x16x1xf32>
    %68 = vector.broadcast %67 : vector<2x16x1xf32> to vector<2x16x16xf32>
    %69 = arith.subf %65, %68 : vector<2x16x16xf32>
    %70 = math.exp %69 : vector<2x16x16xf32>
    %cst_22 = arith.constant dense<0.000000e+00> : vector<2x16xf32>
    %71 = vector.multi_reduction <add>, %70, %cst_22 [2] : vector<2x16x16xf32> to vector<2x16xf32>
    %72 = vector.shape_cast %71 : vector<2x16xf32> to vector<2x16x1xf32>
    %73 = tpu.reciprocal %72 {approx = true} : vector<2x16x1xf32> -> vector<2x16x1xf32>
    %74 = vector.broadcast %73 : vector<2x16x1xf32> to vector<2x16x16xf32>
    %75 = arith.mulf %70, %74 : vector<2x16x16xf32>
    %76 = arith.truncf %75 : vector<2x16x16xf32> to vector<2x16x16xbf16>
    %cst_23 = arith.constant dense<0.000000e+00> : vector<2x16x8xf32>
    %77 = tpu.matmul %76, %64, %cst_23 {dimension_numbers = #tpu.dot_dimension_numbers<[2], [1], [1], [2], [0, 0, 0, 1, 1, 2], [0], [0]>} : vector<2x16x16xbf16>, vector<2x16x8xbf16>, vector<2x16x8xf32> -> vector<2x16x8xf32>
    %78 = tpu.concatenate %29, %45, %61, %77 in 2 : vector<2x16x8xf32>, vector<2x16x8xf32>, vector<2x16x8xf32>, vector<2x16x8xf32> -> vector<2x16x32xf32>
    %79 = vector.shape_cast %78 : vector<2x16x32xf32> to vector<32x32xf32>
    %c0_24 = arith.constant 0 : index
    %c0_25 = arith.constant 0 : index
    %c0_26 = arith.constant 0 : index
    %80 = vector.load %arg6[%c0_24, %c0_25, %c0_26] : memref<1x32x32xbf16, #tpu.memory_space<vmem>>, vector<1x32x32xbf16>
    %81 = vector.shape_cast %80 : vector<1x32x32xbf16> to vector<32x32xbf16>
    %82 = arith.truncf %79 : vector<32x32xf32> to vector<32x32xbf16>
    %cst_27 = arith.constant dense<0.000000e+00> : vector<32x32xf32>
    %83 = tpu.matmul %82, %81, %cst_27 {dimension_numbers = #tpu.dot_dimension_numbers<[1], [0], [0], [1], [0, 0, 1, 1], [], []>} : vector<32x32xbf16>, vector<32x32xbf16>, vector<32x32xf32> -> vector<32x32xf32>
    %c0_28 = arith.constant 0 : index
    %c1 = arith.constant 1 : index
    %c0_29 = arith.constant 0 : index
    %84 = vector.load %arg9[%c0_28, %c1, %c0_29] : memref<1x8x96xf32, #tpu.memory_space<vmem>>, vector<1x1x32xf32>
    %85 = vector.shape_cast %84 : vector<1x1x32xf32> to vector<1x32xf32>
    %86 = vector.broadcast %85 : vector<1x32xf32> to vector<32x32xf32>
    %87 = arith.addf %83, %86 : vector<32x32xf32>
    %88 = arith.addf %3, %87 : vector<32x32xf32>
    %c0_30 = arith.constant 0 : index
    %c4 = arith.constant 4 : index
    %c0_31 = arith.constant 0 : index
    %89 = vector.load %arg9[%c0_30, %c4, %c0_31] : memref<1x8x96xf32, #tpu.memory_space<vmem>>, vector<1x1x32xf32>
    %90 = vector.shape_cast %89 : vector<1x1x32xf32> to vector<1x32xf32>
    %c0_32 = arith.constant 0 : index
    %c5 = arith.constant 5 : index
    %c0_33 = arith.constant 0 : index
    %91 = vector.load %arg9[%c0_32, %c5, %c0_33] : memref<1x8x96xf32, #tpu.memory_space<vmem>>, vector<1x1x32xf32>
    %92 = vector.shape_cast %91 : vector<1x1x32xf32> to vector<1x32xf32>
    %cst_34 = arith.constant dense<0.000000e+00> : vector<32xf32>
    %93 = vector.multi_reduction <add>, %88, %cst_34 [1] : vector<32x32xf32> to vector<32xf32>
    %94 = vector.shape_cast %93 : vector<32xf32> to vector<32x1xf32>
    %cst_35 = arith.constant 3.200000e+01 : f32
    %95 = vector.broadcast %cst_35 : f32 to vector<32x1xf32>
    %96 = arith.divf %94, %95 : vector<32x1xf32>
    %97 = vector.broadcast %96 : vector<32x1xf32> to vector<32x32xf32>
    %98 = arith.subf %88, %97 : vector<32x32xf32>
    %99 = arith.mulf %98, %98 : vector<32x32xf32>
    %cst_36 = arith.constant dense<0.000000e+00> : vector<32xf32>
    %100 = vector.multi_reduction <add>, %99, %cst_36 [1] : vector<32x32xf32> to vector<32xf32>
    %101 = vector.shape_cast %100 : vector<32xf32> to vector<32x1xf32>
    %cst_37 = arith.constant 3.200000e+01 : f32
    %102 = vector.broadcast %cst_37 : f32 to vector<32x1xf32>
    %103 = arith.divf %101, %102 : vector<32x1xf32>
    %104 = vector.broadcast %96 : vector<32x1xf32> to vector<32x32xf32>
    %105 = arith.subf %88, %104 : vector<32x32xf32>
    %cst_38 = arith.constant 9.99999974E-6 : f32
    %106 = vector.broadcast %cst_38 : f32 to vector<32x1xf32>
    %107 = arith.addf %103, %106 : vector<32x1xf32>
    %108 = math.rsqrt %107 : vector<32x1xf32>
    %109 = vector.broadcast %108 : vector<32x1xf32> to vector<32x32xf32>
    %110 = arith.mulf %105, %109 : vector<32x32xf32>
    %111 = vector.broadcast %90 : vector<1x32xf32> to vector<32x32xf32>
    %112 = arith.mulf %110, %111 : vector<32x32xf32>
    %113 = vector.broadcast %92 : vector<1x32xf32> to vector<32x32xf32>
    %114 = arith.addf %112, %113 : vector<32x32xf32>
    %c0_39 = arith.constant 0 : index
    %c0_40 = arith.constant 0 : index
    %c0_41 = arith.constant 0 : index
    %115 = vector.load %arg7[%c0_39, %c0_40, %c0_41] : memref<1x32x64xbf16, #tpu.memory_space<vmem>>, vector<1x32x64xbf16>
    %116 = vector.shape_cast %115 : vector<1x32x64xbf16> to vector<32x64xbf16>
    %117 = arith.truncf %114 : vector<32x32xf32> to vector<32x32xbf16>
    %cst_42 = arith.constant dense<0.000000e+00> : vector<32x64xf32>
    %118 = tpu.matmul %117, %116, %cst_42 {dimension_numbers = #tpu.dot_dimension_numbers<[1], [0], [0], [1], [0, 0, 1, 1], [], []>} : vector<32x32xbf16>, vector<32x64xbf16>, vector<32x64xf32> -> vector<32x64xf32>
    %c0_43 = arith.constant 0 : index
    %c2 = arith.constant 2 : index
    %c0_44 = arith.constant 0 : index
    %119 = vector.load %arg9[%c0_43, %c2, %c0_44] : memref<1x8x96xf32, #tpu.memory_space<vmem>>, vector<1x1x64xf32>
    %120 = vector.shape_cast %119 : vector<1x1x64xf32> to vector<1x64xf32>
    %121 = vector.broadcast %120 : vector<1x64xf32> to vector<32x64xf32>
    %122 = arith.addf %118, %121 : vector<32x64xf32>
    %cst_45 = arith.constant 0.000000e+00 : f32
    %123 = vector.broadcast %cst_45 : f32 to vector<32x64xf32>
    %124 = arith.maximumf %122, %123 : vector<32x64xf32>
    %c0_46 = arith.constant 0 : index
    %c0_47 = arith.constant 0 : index
    %c0_48 = arith.constant 0 : index
    %125 = vector.load %arg8[%c0_46, %c0_47, %c0_48] : memref<1x64x32xbf16, #tpu.memory_space<vmem>>, vector<1x64x32xbf16>
    %126 = vector.shape_cast %125 : vector<1x64x32xbf16> to vector<64x32xbf16>
    %127 = arith.truncf %124 : vector<32x64xf32> to vector<32x64xbf16>
    %cst_49 = arith.constant dense<0.000000e+00> : vector<32x32xf32>
    %128 = tpu.matmul %127, %126, %cst_49 {dimension_numbers = #tpu.dot_dimension_numbers<[1], [0], [0], [1], [0, 0, 1, 1], [], []>} : vector<32x64xbf16>, vector<64x32xbf16>, vector<32x32xf32> -> vector<32x32xf32>
    %c0_50 = arith.constant 0 : index
    %c3 = arith.constant 3 : index
    %c0_51 = arith.constant 0 : index
    %129 = vector.load %arg9[%c0_50, %c3, %c0_51] : memref<1x8x96xf32, #tpu.memory_space<vmem>>, vector<1x1x32xf32>
    %130 = vector.shape_cast %129 : vector<1x1x32xf32> to vector<1x32xf32>
    %131 = vector.broadcast %130 : vector<1x32xf32> to vector<32x32xf32>
    %132 = arith.addf %128, %131 : vector<32x32xf32>
    %133 = arith.addf %114, %132 : vector<32x32xf32>
    %c0_52 = arith.constant 0 : index
    %c6 = arith.constant 6 : index
    %c0_53 = arith.constant 0 : index
    %134 = vector.load %arg9[%c0_52, %c6, %c0_53] : memref<1x8x96xf32, #tpu.memory_space<vmem>>, vector<1x1x32xf32>
    %135 = vector.shape_cast %134 : vector<1x1x32xf32> to vector<1x32xf32>
    %c0_54 = arith.constant 0 : index
    %c7 = arith.constant 7 : index
    %c0_55 = arith.constant 0 : index
    %136 = vector.load %arg9[%c0_54, %c7, %c0_55] : memref<1x8x96xf32, #tpu.memory_space<vmem>>, vector<1x1x32xf32>
    %137 = vector.shape_cast %136 : vector<1x1x32xf32> to vector<1x32xf32>
    %cst_56 = arith.constant dense<0.000000e+00> : vector<32xf32>
    %138 = vector.multi_reduction <add>, %133, %cst_56 [1] : vector<32x32xf32> to vector<32xf32>
    %139 = vector.shape_cast %138 : vector<32xf32> to vector<32x1xf32>
    %cst_57 = arith.constant 3.200000e+01 : f32
    %140 = vector.broadcast %cst_57 : f32 to vector<32x1xf32>
    %141 = arith.divf %139, %140 : vector<32x1xf32>
    %142 = vector.broadcast %141 : vector<32x1xf32> to vector<32x32xf32>
    %143 = arith.subf %133, %142 : vector<32x32xf32>
    %144 = arith.mulf %143, %143 : vector<32x32xf32>
    %cst_58 = arith.constant dense<0.000000e+00> : vector<32xf32>
    %145 = vector.multi_reduction <add>, %144, %cst_58 [1] : vector<32x32xf32> to vector<32xf32>
    %146 = vector.shape_cast %145 : vector<32xf32> to vector<32x1xf32>
    %cst_59 = arith.constant 3.200000e+01 : f32
    %147 = vector.broadcast %cst_59 : f32 to vector<32x1xf32>
    %148 = arith.divf %146, %147 : vector<32x1xf32>
    %149 = vector.broadcast %141 : vector<32x1xf32> to vector<32x32xf32>
    %150 = arith.subf %133, %149 : vector<32x32xf32>
    %cst_60 = arith.constant 9.99999974E-6 : f32
    %151 = vector.broadcast %cst_60 : f32 to vector<32x1xf32>
    %152 = arith.addf %148, %151 : vector<32x1xf32>
    %153 = math.rsqrt %152 : vector<32x1xf32>
    %154 = vector.broadcast %153 : vector<32x1xf32> to vector<32x32xf32>
    %155 = arith.mulf %150, %154 : vector<32x32xf32>
    %156 = vector.broadcast %135 : vector<1x32xf32> to vector<32x32xf32>
    %157 = arith.mulf %155, %156 : vector<32x32xf32>
    %158 = vector.broadcast %137 : vector<1x32xf32> to vector<32x32xf32>
    %159 = arith.addf %157, %158 : vector<32x32xf32>
    %c0_61 = arith.constant 0 : index
    %c0_62 = arith.constant 0 : index
    %160 = vector.load %arg13[%c0_61, %c0_62] : memref<32x32xf32, #tpu.memory_space<vmem>>, vector<32x32xf32>
    tpu.vector_store %arg13[%c0_61, %c0_62], %159 {strides = array<i32>} : memref<32x32xf32, #tpu.memory_space<vmem>>, vector<32x32xf32>,
    %c1_i32 = arith.constant 1 : i32
    %161 = arith.cmpi eq, %arg0, %c1_i32 : i32
    %162 = arith.extui %161 : i1 to i32
    %c0_i32_63 = arith.constant 0 : i32
    %163 = arith.cmpi ne, %162, %c0_i32_63 : i32
    scf.if %163 {
      %164 = tpu.iota {dimensions = array<i32: 1>} : vector<2x32xi32>
      %165 = tpu.iota {dimensions = array<i32: 0>} : vector<2x32xi32>
      %c16_i32 = arith.constant 16 : i32
      %166 = vector.broadcast %c16_i32 : i32 to vector<2x32xi32>
      %167 = arith.muli %165, %166 : vector<2x32xi32>
      %c15_i32 = arith.constant 15 : i32
      %168 = vector.broadcast %c15_i32 : i32 to vector<2x32xi32>
      %169 = arith.addi %167, %168 : vector<2x32xi32>
      %170 = arith.cmpi eq, %164, %169 : vector<2x32xi32>
      %171 = arith.extui %170 : vector<2x32xi1> to vector<2x32xi32>
      %172 = arith.sitofp %171 : vector<2x32xi32> to vector<2x32xf32>
      %173 = arith.truncf %172 : vector<2x32xf32> to vector<2x32xbf16>
      %174 = arith.truncf %159 : vector<32x32xf32> to vector<32x32xbf16>
      %cst_64 = arith.constant dense<0.000000e+00> : vector<2x32xf32>
      %175 = tpu.matmul %173, %174, %cst_64 {dimension_numbers = #tpu.dot_dimension_numbers<[1], [0], [0], [1], [0, 0, 1, 1], [], []>} : vector<2x32xbf16>, vector<32x32xbf16>, vector<2x32xf32> -> vector<2x32xf32>
      %c0_65 = arith.constant 0 : index
      %c0_66 = arith.constant 0 : index
      %176 = vector.load %arg10[%c0_65, %c0_66] : memref<32x1xbf16, #tpu.memory_space<vmem>>, vector<32x1xbf16>
      %177 = arith.truncf %175 : vector<2x32xf32> to vector<2x32xbf16>
      %cst_67 = arith.constant dense<0.000000e+00> : vector<2x1xf32>
      %178 = tpu.matmul %177, %176, %cst_67 {dimension_numbers = #tpu.dot_dimension_numbers<[1], [0], [0], [1], [0, 0, 1, 1], [], []>} : vector<2x32xbf16>, vector<32x1xbf16>, vector<2x1xf32> -> vector<2x1xf32>
      %c0_68 = arith.constant 0 : index
      %c0_69 = arith.constant 0 : index
      %179 = vector.load %arg11[%c0_68, %c0_69] : memref<1x1xf32, #tpu.memory_space<vmem>>, vector<1x1xf32>
      %180 = vector.broadcast %179 : vector<1x1xf32> to vector<2x1xf32>
      %181 = arith.addf %178, %180 : vector<2x1xf32>
      %c0_70 = arith.constant 0 : index
      %c0_71 = arith.constant 0 : index
      %182 = vector.load %arg12[%c0_70, %c0_71] : memref<2x1xf32, #tpu.memory_space<vmem>>, vector<2x1xf32>
      tpu.vector_store %arg12[%c0_70, %c0_71], %181 {strides = array<i32>} : memref<2x1xf32, #tpu.memory_space<vmem>>, vector<2x1xf32>,
    } else {
    }
    return
  }
  func.func @transform_0(%arg0: i32) -> (i32, i32) {
    %c0_i32 = arith.constant 0 : i32
    %c0_i32_0 = arith.constant 0 : i32
    %c0_i32_1 = arith.constant 0 : i32
    return %c0_i32, %c0_i32_0 : i32, i32
  }
  func.func @transform_1(%arg0: i32) -> (i32, i32) {
    %c0_i32 = arith.constant 0 : i32
    %c0_i32_0 = arith.constant 0 : i32
    %c0_i32_1 = arith.constant 0 : i32
    return %c0_i32, %c0_i32_0 : i32, i32
  }
  func.func @transform_2(%arg0: i32) -> (i32, i32) {
    %c0_i32 = arith.constant 0 : i32
    %c0_i32_0 = arith.constant 0 : i32
    %c0_i32_1 = arith.constant 0 : i32
    return %c0_i32, %c0_i32_0 : i32, i32
  }
  func.func @transform_3(%arg0: i32) -> (i32, i32) {
    %c0_i32 = arith.constant 0 : i32
    %c0_i32_0 = arith.constant 0 : i32
    %c0_i32_1 = arith.constant 0 : i32
    return %c0_i32, %c0_i32_0 : i32, i32
  }
  func.func @transform_4(%arg0: i32) -> (i32, i32, i32) {
    %c0_i32 = arith.constant 0 : i32
    %c0_i32_0 = arith.constant 0 : i32
    %c0_i32_1 = arith.constant 0 : i32
    return %arg0, %c0_i32, %c0_i32_0 : i32, i32, i32
  }
  func.func @transform_5(%arg0: i32) -> (i32, i32, i32) {
    %c0_i32 = arith.constant 0 : i32
    %c0_i32_0 = arith.constant 0 : i32
    %c0_i32_1 = arith.constant 0 : i32
    return %arg0, %c0_i32, %c0_i32_0 : i32, i32, i32
  }
  func.func @transform_6(%arg0: i32) -> (i32, i32, i32) {
    %c0_i32 = arith.constant 0 : i32
    %c0_i32_0 = arith.constant 0 : i32
    %c0_i32_1 = arith.constant 0 : i32
    return %arg0, %c0_i32, %c0_i32_0 : i32, i32, i32
  }
  func.func @transform_7(%arg0: i32) -> (i32, i32, i32) {
    %c0_i32 = arith.constant 0 : i32
    %c0_i32_0 = arith.constant 0 : i32
    %c0_i32_1 = arith.constant 0 : i32
    return %arg0, %c0_i32, %c0_i32_0 : i32, i32, i32
  }
  func.func @transform_8(%arg0: i32) -> (i32, i32, i32) {
    %c0_i32 = arith.constant 0 : i32
    %c0_i32_0 = arith.constant 0 : i32
    %c0_i32_1 = arith.constant 0 : i32
    return %arg0, %c0_i32, %c0_i32_0 : i32, i32, i32
  }
  func.func @transform_9(%arg0: i32) -> (i32, i32) {
    %c0_i32 = arith.constant 0 : i32
    %c0_i32_0 = arith.constant 0 : i32
    %c0_i32_1 = arith.constant 0 : i32
    return %c0_i32, %c0_i32_0 : i32, i32
  }
  func.func @transform_10(%arg0: i32) -> (i32, i32) {
    %c0_i32 = arith.constant 0 : i32
    %c0_i32_0 = arith.constant 0 : i32
    %c0_i32_1 = arith.constant 0 : i32
    return %c0_i32, %c0_i32_0 : i32, i32
  }
  func.func @transform_11(%arg0: i32) -> (i32, i32) {
    %c0_i32 = arith.constant 0 : i32
    %c0_i32_0 = arith.constant 0 : i32
    %c0_i32_1 = arith.constant 0 : i32
    return %c0_i32, %c0_i32_0 : i32, i32
  }
}

</mosaic_0001>

<llo_original>
// kernel: tcn_transformer_forward.2
$region0: #{tcn_transformer_forward.2}
  #allocation0 [shape = 'u32[]', space=smem, size = 0x4, offset = 0x4, fixed_abs, tag = 'smem constant byte address 0x4 - core index']
  #allocation1 [shape = 'u32[72,128]{1,0:T(1,128)}', space=vmem, size = 0x9000, scoped, tag = 'internal scratch']
  %s0 = inlined_call_operand.vmem [shape: f32[32,4], index: 0, kind: input, shape index: {}]
  %s1 = inlined_call_operand.hbm [shape: bf16[3,4,8], index: 1, kind: input, shape index: {}]
  %s2 = inlined_call_operand.vmem [shape: f32[1,8], index: 2, kind: input, shape index: {}]
  %s3 = inlined_call_operand.hbm [shape: bf16[3,8,8], index: 3, kind: input, shape index: {}]
  %s4 = inlined_call_operand.hbm [shape: f32[1,8], index: 4, kind: input, shape index: {}]
  %s5 = inlined_call_operand.vmem [shape: bf16[4,8], index: 5, kind: input, shape index: {}]
  %s6 = inlined_call_operand.hbm [shape: f32[1,8], index: 6, kind: input, shape index: {}]
  %s7 = inlined_call_operand.hbm [shape: bf16[3,8,16], index: 7, kind: input, shape index: {}]
  %s8 = inlined_call_operand.hbm [shape: f32[1,16], index: 8, kind: input, shape index: {}]
  %s9 = inlined_call_operand.vmem [shape: bf16[3,16,16], index: 9, kind: input, shape index: {}]
  %s10 = inlined_call_operand.hbm [shape: f32[1,16], index: 10, kind: input, shape index: {}]
  %s11 = inlined_call_operand.hbm [shape: bf16[8,16], index: 11, kind: input, shape index: {}]
  %s12 = inlined_call_operand.hbm [shape: f32[1,16], index: 12, kind: input, shape index: {}]
  %s13 = inlined_call_operand.vmem [shape: f32[32,16], index: 13, kind: output, shape index: {}]
  %s14 = sld [smem:[#allocation0]]
  $region98: #{tcn_transformer_forward.2} parent=0
    _
  %s16 = ssub.s32 1, %s14
  %s17 = scalar_select 0, %s16, %s14
  $region1: #{tcn_transformer_forward.2} parent=0
    #allocation2 [shape = 'u8[3072]{0}', space=vmem, size = 0xc00, scoped, tag = 'input window, operand 1, single buffered']
    #allocation3 [shape = 's32[1]{0}', space=sflag, size = 0x4, scoped, tag = 'scoped memory for tcn_transformer_forward.2']
    #allocation4 [shape = 'u8[6144]{0}', space=vmem, size = 0x1800, scoped, tag = 'input window, operand 3, single buffered']
    #allocation5 [shape = 's32[1]{0}', space=sflag, size = 0x4, scoped, tag = 'scoped memory for tcn_transformer_forward.2']
    #allocation6 [shape = 'u8[512]{0}', space=vmem, size = 0x400, scoped, tag = 'input window, operand 4, single buffered']
    #allocation7 [shape = 'u8[512]{0}', space=vmem, size = 0x400, scoped, tag = 'input window, operand 6, single buffered']
    #allocation8 [shape = 's32[1]{0}', space=sflag, size = 0x4, scoped, tag = 'scoped memory for tcn_transformer_forward.2']
    #allocation9 [shape = 'u8[6144]{0}', space=vmem, size = 0x1800, scoped, tag = 'input window, operand 7, single buffered']
    #allocation10 [shape = 'u8[512]{0}', space=vmem, size = 0x400, scoped, tag = 'input window, operand 8, single buffered']
    #allocation11 [shape = 's32[1]{0}', space=sflag, size = 0x4, scoped, tag = 'scoped memory for tcn_transformer_forward.2']
    #allocation12 [shape = 'u8[512]{0}', space=vmem, size = 0x400, scoped, tag = 'input window, operand 10, single buffered']
    #allocation13 [shape = 'u8[2048]{0}', space=vmem, size = 0x800, scoped, tag = 'input window, operand 11, single buffered']
    #allocation14 [shape = 's32[1]{0}', space=sflag, size = 0x4, scoped, tag = 'scoped memory for tcn_transformer_forward.2']
    #allocation15 [shape = 'u8[512]{0}', space=vmem, size = 0x400, scoped, tag = 'input window, operand 12, single buffered']
    %18 = vsyncpa [#allocation3], 0
    %19 = vsyncpa [#allocation5], 0
    %20 = vsyncpa [#allocation8], 0
    %21 = vsyncpa [#allocation11], 0
    %22 = vsyncpa [#allocation14], 0
    // Predicated region
    $region2: #{tcn_transformer_forward.2} parent=1 // pred_check
      _
    $region3: #{tcn_transformer_forward.2} parent=1 // pred_check_branch
      %24 = sbr.rel (0) target = $region5
    $region4: #{tcn_transformer_forward.2} parent=1 // pred_region
      _
    $region5: #{tcn_transformer_forward.2} parent=1 // pred_fallthru
      _
    // Predicated region
    $region6: #{tcn_transformer_forward.2} parent=1 // pred_check
      _
    $region7: #{tcn_transformer_forward.2} parent=1 // pred_check_branch
      %26 = sbr.rel (0) target = $region9
    $region8: #{tcn_transformer_forward.2} parent=1 // pred_region
      %28 = vsyncadd [#allocation3], 0
      %s29 = sshll.u32 %s1, 4
      %s30 = int_to_ptr.hbm [resolvable:$true] %s29
      %s31 = sshll.u32 [#allocation2], 4
      %s32 = int_to_ptr.vmem [resolvable:$true] %s31
      %37 = dma.hbm_to_vmem [thread:$0]  %s30, 96, %s32, [#allocation3], 32, 32, 2
    $region9: #{tcn_transformer_forward.2} parent=1 // pred_fallthru
      _
    // Predicated region
    $region10: #{tcn_transformer_forward.2} parent=1 // pred_check
      _
    $region11: #{tcn_transformer_forward.2} parent=1 // pred_check_branch
      %39 = sbr.rel (0) target = $region13
    $region12: #{tcn_transformer_forward.2} parent=1 // pred_region
      _
    $region13: #{tcn_transformer_forward.2} parent=1 // pred_fallthru
      _
    // Predicated region
    $region14: #{tcn_transformer_forward.2} parent=1 // pred_check
      _
    $region15: #{tcn_transformer_forward.2} parent=1 // pred_check_branch
      %41 = sbr.rel (0) target = $region17
    $region16: #{tcn_transformer_forward.2} parent=1 // pred_region
      %43 = vsyncadd [#allocation5], 0
      %s44 = sshll.u32 %s3, 4
      %s45 = int_to_ptr.hbm [resolvable:$true] %s44
      %s46 = sshll.u32 [#allocation4], 4
      %s47 = int_to_ptr.vmem [resolvable:$true] %s46
      %52 = dma.hbm_to_vmem [thread:$0]  %s45, 192, %s47, [#allocation5], 64, 64, 4
    $region17: #{tcn_transformer_forward.2} parent=1 // pred_fallthru
      _
    // Predicated region
    $region18: #{tcn_transformer_forward.2} parent=1 // pred_check
      _
    $region19: #{tcn_transformer_forward.2} parent=1 // pred_check_branch
      %54 = sbr.rel (0) target = $region21
    $region20: #{tcn_transformer_forward.2} parent=1 // pred_region
      %56 = vsyncadd [#allocation5], 0
      %s58 = sshll.u32 %s4, 4
      %s59 = int_to_ptr.hbm [resolvable:$true] %s58
      %s60 = sshll.u32 [#allocation6], 4
      %s61 = int_to_ptr.vmem [resolvable:$true] %s60
      %63 = dma.hbm_to_vmem [thread:$0]  %s59, 16, %s61, [#allocation5]
    $region21: #{tcn_transformer_forward.2} parent=1 // pred_fallthru
      _
    // Predicated region
    $region22: #{tcn_transformer_forward.2} parent=1 // pred_check
      _
    $region23: #{tcn_transformer_forward.2} parent=1 // pred_check_branch
      %65 = sbr.rel (0) target = $region25
    $region24: #{tcn_transformer_forward.2} parent=1 // pred_region
      _
    $region25: #{tcn_transformer_forward.2} parent=1 // pred_fallthru
      _
    // Predicated region
    $region26: #{tcn_transformer_forward.2} parent=1 // pred_check
      _
    $region27: #{tcn_transformer_forward.2} parent=1 // pred_check_branch
      %67 = sbr.rel (0) target = $region29
    $region28: #{tcn_transformer_forward.2} parent=1 // pred_region
      %69 = vsyncadd [#allocation8], 0
      %s71 = sshll.u32 %s6, 4
      %s72 = int_to_ptr.hbm [resolvable:$true] %s71
      %s73 = sshll.u32 [#allocation7], 4
      %s74 = int_to_ptr.vmem [resolvable:$true] %s73
      %76 = dma.hbm_to_vmem [thread:$0]  %s72, 16, %s74, [#allocation8]
    $region29: #{tcn_transformer_forward.2} parent=1 // pred_fallthru
      _
    // Predicated region
    $region30: #{tcn_transformer_forward.2} parent=1 // pred_check
      _
    $region31: #{tcn_transformer_forward.2} parent=1 // pred_check_branch
      %78 = sbr.rel (0) target = $region33
    $region32: #{tcn_transformer_forward.2} parent=1 // pred_region
      %80 = vsyncadd [#allocation8], 0
      %s81 = sshll.u32 %s7, 4
      %s82 = int_to_ptr.hbm [resolvable:$true] %s81
      %s83 = sshll.u32 [#allocation9], 4
      %s84 = int_to_ptr.vmem [resolvable:$true] %s83
      %89 = dma.hbm_to_vmem [thread:$0]  %s82, 192, %s84, [#allocation8], 64, 64, 4
    $region33: #{tcn_transformer_forward.2} parent=1 // pred_fallthru
      _
    // Predicated region
    $region34: #{tcn_transformer_forward.2} parent=1 // pred_check
      _
    $region35: #{tcn_transformer_forward.2} parent=1 // pred_check_branch
      %91 = sbr.rel (0) target = $region37
    $region36: #{tcn_transformer_forward.2} parent=1 // pred_region
      %93 = vsyncadd [#allocation11], 0
      %s95 = sshll.u32 %s8, 4
      %s96 = int_to_ptr.hbm [resolvable:$true] %s95
      %s97 = sshll.u32 [#allocation10], 4
      %s98 = int_to_ptr.vmem [resolvable:$true] %s97
      %100 = dma.hbm_to_vmem [thread:$0]  %s96, 16, %s98, [#allocation11]
    $region37: #{tcn_transformer_forward.2} parent=1 // pred_fallthru
      _
    // Predicated region
    $region38: #{tcn_transformer_forward.2} parent=1 // pred_check
      _
    $region39: #{tcn_transformer_forward.2} parent=1 // pred_check_branch
      %102 = sbr.rel (0) target = $region41
    $region40: #{tcn_transformer_forward.2} parent=1 // pred_region
      _
    $region41: #{tcn_transformer_forward.2} parent=1 // pred_fallthru
      _
    // Predicated region
    $region42: #{tcn_transformer_forward.2} parent=1 // pred_check
      _
    $region43: #{tcn_transformer_forward.2} parent=1 // pred_check_branch
      %104 = sbr.rel (0) target = $region45
    $region44: #{tcn_transformer_forward.2} parent=1 // pred_region
      %106 = vsyncadd [#allocation11], 0
      %s108 = sshll.u32 %s10, 4
      %s109 = int_to_ptr.hbm [resolvable:$true] %s108
      %s110 = sshll.u32 [#allocation12], 4
      %s111 = int_to_ptr.vmem [resolvable:$true] %s110
      %113 = dma.hbm_to_vmem [thread:$0]  %s109, 16, %s111, [#allocation11]
    $region45: #{tcn_transformer_forward.2} parent=1 // pred_fallthru
      _
    // Predicated region
    $region46: #{tcn_transformer_forward.2} parent=1 // pred_check
      _
    $region47: #{tcn_transformer_forward.2} parent=1 // pred_check_branch
      %115 = sbr.rel (0) target = $region49
    $region48: #{tcn_transformer_forward.2} parent=1 // pred_region
      %117 = vsyncadd [#allocation14], 0
      %s119 = sshll.u32 %s11, 4
      %s120 = int_to_ptr.hbm [resolvable:$true] %s119
      %s121 = sshll.u32 [#allocation13], 4
      %s122 = int_to_ptr.vmem [resolvable:$true] %s121
      %124 = dma.hbm_to_vmem [thread:$0]  %s120, 64, %s122, [#allocation14]
    $region49: #{tcn_transformer_forward.2} parent=1 // pred_fallthru
      _
    // Predicated region
    $region50: #{tcn_transformer_forward.2} parent=1 // pred_check
      _
    $region51: #{tcn_transformer_forward.2} parent=1 // pred_check_branch
      %126 = sbr.rel (0) target = $region53
    $region52: #{tcn_transformer_forward.2} parent=1 // pred_region
      %128 = vsyncadd [#allocation14], 0
      %s130 = sshll.u32 %s12, 4
      %s131 = int_to_ptr.hbm [resolvable:$true] %s130
      %s132 = sshll.u32 [#allocation15], 4
      %s133 = int_to_ptr.vmem [resolvable:$true] %s132
      %135 = dma.hbm_to_vmem [thread:$0]  %s131, 16, %s133, [#allocation14]
    $region53: #{tcn_transformer_forward.2} parent=1 // pred_fallthru
      _
    // Predicated region
    $region54: #{tcn_transformer_forward.2} parent=1 // pred_check
      _
    $region55: #{tcn_transformer_forward.2} parent=1 // pred_check_branch
      %137 = sbr.rel (0) target = $region57
    $region56: #{tcn_transformer_forward.2} parent=1 // pred_region
      %139 = dma.done [#allocation3], 96
    $region57: #{tcn_transformer_forward.2} parent=1 // pred_fallthru
      _
    // Predicated region
    $region58: #{tcn_transformer_forward.2} parent=1 // pred_check
      _
    $region59: #{tcn_transformer_forward.2} parent=1 // pred_check_branch
      %141 = sbr.rel (0) target = $region61
    $region60: #{tcn_transformer_forward.2} parent=1 // pred_region
      %143 = dma.done [#allocation5], 192
    $region61: #{tcn_transformer_forward.2} parent=1 // pred_fallthru
      _
    // Predicated region
    $region62: #{tcn_transformer_forward.2} parent=1 // pred_check
      _
    $region63: #{tcn_transformer_forward.2} parent=1 // pred_check_branch
      %145 = sbr.rel (0) target = $region65
    $region64: #{tcn_transformer_forward.2} parent=1 // pred_region
      %147 = dma.done [#allocation5], 16
    $region65: #{tcn_transformer_forward.2} parent=1 // pred_fallthru
      _
    // Predicated region
    $region66: #{tcn_transformer_forward.2} parent=1 // pred_check
      _
    $region67: #{tcn_transformer_forward.2} parent=1 // pred_check_branch
      %149 = sbr.rel (0) target = $region69
    $region68: #{tcn_transformer_forward.2} parent=1 // pred_region
      %151 = dma.done [#allocation8], 16
    $region69: #{tcn_transformer_forward.2} parent=1 // pred_fallthru
      _
    // Predicated region
    $region70: #{tcn_transformer_forward.2} parent=1 // pred_check
      _
    $region71: #{tcn_transformer_forward.2} parent=1 // pred_check_branch
      %153 = sbr.rel (0) target = $region73
    $region72: #{tcn_transformer_forward.2} parent=1 // pred_region
      %155 = dma.done [#allocation8], 192
    $region73: #{tcn_transformer_forward.2} parent=1 // pred_fallthru
      _
    // Predicated region
    $region74: #{tcn_transformer_forward.2} parent=1 // pred_check
      _
    $region75: #{tcn_transformer_forward.2} parent=1 // pred_check_branch
      %157 = sbr.rel (0) target = $region77
    $region76: #{tcn_transformer_forward.2} parent=1 // pred_region
      %159 = dma.done [#allocation11], 16
    $region77: #{tcn_transformer_forward.2} parent=1 // pred_fallthru
      _
    // Predicated region
    $region78: #{tcn_transformer_forward.2} parent=1 // pred_check
      _
    $region79: #{tcn_transformer_forward.2} parent=1 // pred_check_branch
      %161 = sbr.rel (0) target = $region81
    $region80: #{tcn_transformer_forward.2} parent=1 // pred_region
      %163 = dma.done [#allocation11], 16
    $region81: #{tcn_transformer_forward.2} parent=1 // pred_fallthru
      _
    // Predicated region
    $region82: #{tcn_transformer_forward.2} parent=1 // pred_check
      _
    $region83: #{tcn_transformer_forward.2} parent=1 // pred_check_branch
      %165 = sbr.rel (0) target = $region85
    $region84: #{tcn_transformer_forward.2} parent=1 // pred_region
      %167 = dma.done [#allocation14], 64
    $region85: #{tcn_transformer_forward.2} parent=1 // pred_fallthru
      _
    // Predicated region
    $region86: #{tcn_transformer_forward.2} parent=1 // pred_check
      _
    $region87: #{tcn_transformer_forward.2} parent=1 // pred_check_branch
      %169 = sbr.rel (0) target = $region89
    $region88: #{tcn_transformer_forward.2} parent=1 // pred_region
      %171 = dma.done [#allocation14], 16
    $region89: #{tcn_transformer_forward.2} parent=1 // pred_fallthru
      _
    %v173 = vld [vmem:[%s0] sm:$0xff]
    %v174 = vld [vmem:[%s0 + $0x8] sm:$0xff]
    %v175 = vld [vmem:[%s0 + $0x10] sm:$0xff]
    %v176 = vld [vmem:[%s0 + $0x18] sm:$0xff]
    %v177 = vlaneseq
    %v178 = vshrl.u32 %v177, 7
    %v179 = vadd.s32 %v178, 8
    %v180 = vadd.s32 %v178, 16
    %v181 = vadd.s32 %v178, 24
    %vm182 = vcmp.lt.s32.totalorder %v178, 0
    %v183 = vsub.s32 0, %v178
    %v184 = vsel %vm182, %v183, %v178
    %v185 = vshrl.u32 %v184, 4
    %v186 = vand.u32 %v184, 15
    %v187 = vsub.s32 0, %v186
    %v188 = vsel %vm182, %v187, %v186
    %vm189 = vcmp.lt.s32.totalorder %v179, 0
    %v190 = vsub.s32 0, %v179
    %v191 = vsel %vm189, %v190, %v179
    %v192 = vshrl.u32 %v191, 4
    %v193 = vand.u32 %v191, 15
    %v194 = vsub.s32 0, %v193
    %v195 = vsel %vm189, %v194, %v193
    %vm196 = vcmp.lt.s32.totalorder %v180, 0
    %v197 = vsub.s32 0, %v180
    %v198 = vsel %vm196, %v197, %v180
    %v199 = vshrl.u32 %v198, 4
    %v200 = vand.u32 %v198, 15
    %v201 = vsub.s32 0, %v200
    %v202 = vsel %vm196, %v201, %v200
    %vm203 = vcmp.lt.s32.totalorder %v181, 0
    %v204 = vsub.s32 0, %v181
    %v205 = vsel %vm203, %v204, %v181
    %v206 = vshrl.u32 %v205, 4
    %v207 = vand.u32 %v205, 15
    %v208 = vsub.s32 0, %v207
    %v209 = vsel %vm203, %v208, %v207
    %vm210 = vcmp.ne.s32.totalorder %v188, 0
    %vm211 = vcmp.ne.s32.totalorder %v195, 0
    %vm212 = vcmp.ne.s32.totalorder %v202, 0
    %vm213 = vcmp.ne.s32.totalorder %v209, 0
    %vm214 = vcmp.lt.s32.totalorder %v188, 0
    %vm215 = vcmp.lt.s32.totalorder %v195, 0
    %vm216 = vcmp.lt.s32.totalorder %v202, 0
    %vm217 = vcmp.lt.s32.totalorder %v209, 0
    %vm218 = vmand %vm214, %vm210
    %vm219 = vmand %vm215, %vm211
    %vm220 = vmand %vm216, %vm212
    %vm221 = vmand %vm217, %vm213
    %v222 = vadd.s32 %v188, 16
    %v223 = vadd.s32 %v195, 16
    %v224 = vadd.s32 %v202, 16
    %v225 = vadd.s32 %v209, 16
    %v226 = vsel %vm218, %v222, %v188
    %v227 = vsel %vm219, %v223, %v195
    %v228 = vsel %vm220, %v224, %v202
    %v229 = vsel %vm221, %v225, %v209
    %v230 = vpack.c.bf16 %v174, %v173
    %v231 = vpack.c.bf16 %v176, %v175
    %s232 = scalar_lea.vmem [#allocation2], 4
    %v233 = vld [vmem:[%s232] sm:$0x3]
    %v234 = vld [vmem:[#allocation2] sm:$0x3]
    %vm235 = vcmask 31744
    %v237 = vsel %vm235, %v230, 0
    %v240 = vsel %vm235, %v231, 0
    %vm242 = vcmask 1041408
    %v244 = vsel %vm242, %v234, 0
    %246 = vmatpush.bf16.msra.mxu0 0
    %247 = vmatpush.bf16.msra.mxu0 0
    %248 = vmatpush.bf16.msra.mxu0 0
    %249 = vmatpush.bf16.msra.mxu0 0
    %250 = vmatpush.bf16.msra.mxu0 0
    %251 = vmatpush.bf16.msra.mxu0 0
    %252 = vmatpush.bf16.msra.mxu0 0
    %253 = vmatpush.bf16.msra.mxu0 %v244
    %254 = vmatmul.bf16.gmra.mxu0 %v237
    %v255 = vpop.f32.mrf.mxu0
    %v256 = vadd.f32 0.0, %v255
    %v257 = vpop.f32.mrf.mxu0
    %v258 = vadd.f32 0.0, %v257
    %259 = vmatmul.bf16.gmra.mxu0 %v240
    %v260 = vpop.f32.mrf.mxu0
    %v261 = vadd.f32 0.0, %v260
    %v262 = vpop.f32.mrf.mxu0
    %v263 = vadd.f32 0.0, %v262
    %264 = vdwg.mxu0
    %v266 = vrot.slane %v263, 6
    %v271 = vrot.slane %v256, 6
    %v272 = vrot.slane %v258, 6
    %v273 = vsel %vm242, %v271, %v272
    %v274 = vrot.slane %v261, 6
    %v275 = vsel %vm242, %v272, %v274
    %v276 = vsel %vm242, %v274, %v266
    %v281 = vsel %vm242, %v266, %v271
    %vm282 = vcmp.ge.s32.totalorder %v226, 2
    %vm283 = vcmp.ge.s32.totalorder %v227, 2
    %vm284 = vcmp.ge.s32.totalorder %v228, 2
    %vm285 = vcmp.ge.s32.totalorder %v229, 2
    %v286 = vsel %vm282, 1, 0
    %v287 = vsel %vm283, 1, 0
    %v288 = vsel %vm284, 1, 0
    %v289 = vsel %vm285, 1, 0
    %vm290 = vcmp.eq.s32.totalorder %v286, 1
    %vm291 = vcmp.eq.s32.totalorder %v287, 1
    %vm292 = vcmp.eq.s32.totalorder %v288, 1
    %vm293 = vcmp.eq.s32.totalorder %v289, 1
    %v294 = vsel %vm290, %v281, 0.0
    %v295 = vsel %vm291, %v273, 0.0
    %v296 = vsel %vm292, %v275, 0.0
    %v297 = vsel %vm293, %v276, 0.0
    %v299 = vsel %vm242, %v233, 0
    %301 = vmatpush.bf16.msra.mxu0 0
    %302 = vmatpush.bf16.msra.mxu0 0
    %303 = vmatpush.bf16.msra.mxu0 0
    %304 = vmatpush.bf16.msra.mxu0 0
    %305 = vmatpush.bf16.msra.mxu0 0
    %306 = vmatpush.bf16.msra.mxu0 0
    %307 = vmatpush.bf16.msra.mxu0 0
    %308 = vmatpush.bf16.msra.mxu0 %v299
    %309 = vmatmul.bf16.gmra.mxu0 %v237
    %v310 = vpop.f32.mrf.mxu0
    %v311 = vadd.f32 %v294, %v310
    %v312 = vpop.f32.mrf.mxu0
    %v313 = vadd.f32 %v295, %v312
    %314 = vmatmul.bf16.gmra.mxu0 %v240
    %v315 = vpop.f32.mrf.mxu0
    %v316 = vadd.f32 %v296, %v315
    %v317 = vpop.f32.mrf.mxu0
    %v318 = vadd.f32 %v297, %v317
    %319 = vdwg.mxu0
    %s320 = scalar_lea.vmem [#allocation2], 2
    %v321 = vld [vmem:[%s320] sm:$0x3]
    %v323 = vsel %vm242, %v321, 0
    %325 = vmatpush.bf16.msra.mxu0 0
    %326 = vmatpush.bf16.msra.mxu0 0
    %327 = vmatpush.bf16.msra.mxu0 0
    %328 = vmatpush.bf16.msra.mxu0 0
    %329 = vmatpush.bf16.msra.mxu0 0
    %330 = vmatpush.bf16.msra.mxu0 0
    %331 = vmatpush.bf16.msra.mxu0 0
    %332 = vmatpush.bf16.msra.mxu0 %v323
    %333 = vmatmul.bf16.gmra.mxu0 %v237
    %v334 = vpop.f32.mrf.mxu0
    %v335 = vadd.f32 0.0, %v334
    %v336 = vpop.f32.mrf.mxu0
    %v337 = vadd.f32 0.0, %v336
    %338 = vmatmul.bf16.gmra.mxu0 %v240
    %v339 = vpop.f32.mrf.mxu0
    %v340 = vadd.f32 0.0, %v339
    %v341 = vpop.f32.mrf.mxu0
    %v342 = vadd.f32 0.0, %v341
    %343 = vdwg.mxu0
    %v345 = vrot.slane %v342, 7
    %vm350 = vcmask 1040384
    %v351 = vrot.slane %v335, 7
    %v352 = vrot.slane %v337, 7
    %v353 = vsel %vm350, %v351, %v352
    %v354 = vrot.slane %v340, 7
    %v355 = vsel %vm350, %v352, %v354
    %v356 = vsel %vm350, %v354, %v345
    %v361 = vsel %vm350, %v345, %v351
    %vm362 = vcmp.ge.s32.totalorder %v226, 1
    %vm363 = vcmp.ge.s32.totalorder %v227, 1
    %vm364 = vcmp.ge.s32.totalorder %v228, 1
    %vm365 = vcmp.ge.s32.totalorder %v229, 1
    %v366 = vsel %vm362, 1, 0
    %v367 = vsel %vm363, 1, 0
    %v368 = vsel %vm364, 1, 0
    %v369 = vsel %vm365, 1, 0
    %vm370 = vcmp.eq.s32.totalorder %v366, 1
    %vm371 = vcmp.eq.s32.totalorder %v367, 1
    %vm372 = vcmp.eq.s32.totalorder %v368, 1
    %vm373 = vcmp.eq.s32.totalorder %v369, 1
    %v374 = vsel %vm370, %v361, 0.0
    %v375 = vsel %vm371, %v353, 0.0
    %v376 = vsel %vm372, %v355, 0.0
    %v377 = vsel %vm373, %v356, 0.0
    %v378 = vadd.f32 %v311, %v374
    %v379 = vadd.f32 %v313, %v375
    %v380 = vadd.f32 %v316, %v376
    %v381 = vadd.f32 %v318, %v377
    %v382 = vld [vmem:[%s2] sm:$0x1]
    %v384 = vperm.slane %v382, 0
    %v386 = vadd.f32 %v378, %v384
    %v387 = vadd.f32 %v379, %v384
    %v388 = vadd.f32 %v380, %v384
    %v389 = vadd.f32 %v381, %v384
    %v390 = vmax.f32 %v386, 0.0
    %v391 = vmax.f32 %v387, 0.0
    %v392 = vmax.f32 %v388, 0.0
    %v393 = vmax.f32 %v389, 0.0
    %v394 = vpack.c.bf16 %v391, %v390
    %v395 = vpack.c.bf16 %v393, %v392
    %s396 = scalar_lea.vmem [#allocation4], 8
    %v397 = vld [vmem:[%s396] sm:$0xf]
    %v398 = vld [vmem:[#allocation4] sm:$0xf]
    %vm399 = vcmask 64512
    %v401 = vsel %vm399, %v394, 0
    %v404 = vsel %vm399, %v395, 0
    %vm406 = vcmask 1043456
    %v408 = vsel %vm406, %v398, 0
    %410 = vmatpush.bf16.msra.mxu0 0
    %411 = vmatpush.bf16.msra.mxu0 0
    %412 = vmatpush.bf16.msra.mxu0 0
    %413 = vmatpush.bf16.msra.mxu0 0
    %414 = vmatpush.bf16.msra.mxu0 0
    %415 = vmatpush.bf16.msra.mxu0 0
    %416 = vmatpush.bf16.msra.mxu0 0
    %417 = vmatpush.bf16.msra.mxu0 %v408
    %418 = vmatmul.bf16.gmra.mxu0 %v401
    %v419 = vpop.f32.mrf.mxu0
    %v420 = vadd.f32 0.0, %v419
    %v421 = vpop.f32.mrf.mxu0
    %v422 = vadd.f32 0.0, %v421
    %423 = vmatmul.bf16.gmra.mxu0 %v404
    %v424 = vpop.f32.mrf.mxu0
    %v425 = vadd.f32 0.0, %v424
    %v426 = vpop.f32.mrf.mxu0
    %v427 = vadd.f32 0.0, %v426
    %428 = vdwg.mxu0
    %v430 = vrot.slane %v427, 6
    %v435 = vrot.slane %v420, 6
    %v436 = vrot.slane %v422, 6
    %v437 = vsel %vm242, %v435, %v436
    %v438 = vrot.slane %v425, 6
    %v439 = vsel %vm242, %v436, %v438
    %v440 = vsel %vm242, %v438, %v430
    %v445 = vsel %vm242, %v430, %v435
    %v446 = vsel %vm290, %v445, 0.0
    %v447 = vsel %vm291, %v437, 0.0
    %v448 = vsel %vm292, %v439, 0.0
    %v449 = vsel %vm293, %v440, 0.0
    %v451 = vsel %vm406, %v397, 0
    %453 = vmatpush.bf16.msra.mxu0 0
    %454 = vmatpush.bf16.msra.mxu0 0
    %455 = vmatpush.bf16.msra.mxu0 0
    %456 = vmatpush.bf16.msra.mxu0 0
    %457 = vmatpush.bf16.msra.mxu0 0
    %458 = vmatpush.bf16.msra.mxu0 0
    %459 = vmatpush.bf16.msra.mxu0 0
    %460 = vmatpush.bf16.msra.mxu0 %v451
    %461 = vmatmul.bf16.gmra.mxu0 %v401
    %v462 = vpop.f32.mrf.mxu0
    %v463 = vadd.f32 %v446, %v462
    %v464 = vpop.f32.mrf.mxu0
    %v465 = vadd.f32 %v447, %v464
    %466 = vmatmul.bf16.gmra.mxu0 %v404
    %v467 = vpop.f32.mrf.mxu0
    %v468 = vadd.f32 %v448, %v467
    %v469 = vpop.f32.mrf.mxu0
    %v470 = vadd.f32 %v449, %v469
    %471 = vdwg.mxu0
    %s472 = scalar_lea.vmem [#allocation4], 4
    %v473 = vld [vmem:[%s472] sm:$0xf]
    %v475 = vsel %vm406, %v473, 0
    %477 = vmatpush.bf16.msra.mxu0 0
    %478 = vmatpush.bf16.msra.mxu0 0
    %479 = vmatpush.bf16.msra.mxu0 0
    %480 = vmatpush.bf16.msra.mxu0 0
    %481 = vmatpush.bf16.msra.mxu0 0
    %482 = vmatpush.bf16.msra.mxu0 0
    %483 = vmatpush.bf16.msra.mxu0 0
    %484 = vmatpush.bf16.msra.mxu0 %v475
    %485 = vmatmul.bf16.gmra.mxu0 %v401
    %v486 = vpop.f32.mrf.mxu0
    %v487 = vadd.f32 0.0, %v486
    %v488 = vpop.f32.mrf.mxu0
    %v489 = vadd.f32 0.0, %v488
    %490 = vmatmul.bf16.gmra.mxu0 %v404
    %v491 = vpop.f32.mrf.mxu0
    %v492 = vadd.f32 0.0, %v491
    %v493 = vpop.f32.mrf.mxu0
    %v494 = vadd.f32 0.0, %v493
    %495 = vdwg.mxu0
    %v497 = vrot.slane %v494, 7
    %v502 = vrot.slane %v487, 7
    %v503 = vrot.slane %v489, 7
    %v504 = vsel %vm350, %v502, %v503
    %v505 = vrot.slane %v492, 7
    %v506 = vsel %vm350, %v503, %v505
    %v507 = vsel %vm350, %v505, %v497
    %v512 = vsel %vm350, %v497, %v502
    %v513 = vsel %vm370, %v512, 0.0
    %v514 = vsel %vm371, %v504, 0.0
    %v515 = vsel %vm372, %v506, 0.0
    %v516 = vsel %vm373, %v507, 0.0
    %v517 = vadd.f32 %v463, %v513
    %v518 = vadd.f32 %v465, %v514
    %v519 = vadd.f32 %v468, %v515
    %v520 = vadd.f32 %v470, %v516
    %v521 = vld [vmem:[#allocation6] sm:$0x1]
    %v523 = vperm.slane %v521, 0
    %v525 = vadd.f32 %v517, %v523
    %v526 = vadd.f32 %v518, %v523
    %v527 = vadd.f32 %v519, %v523
    %v528 = vadd.f32 %v520, %v523
    %v529 = vmax.f32 %v525, 0.0
    %v530 = vmax.f32 %v526, 0.0
    %v531 = vmax.f32 %v527, 0.0
    %v532 = vmax.f32 %v528, 0.0
    %v533 = vld [vmem:[%s5] sm:$0x3]
    %v534 = vld [vmem:[#allocation7] sm:$0x1]
    %v536 = vperm.slane %v534, 0
    %v539 = vsel %vm242, %v533, 0
    %541 = vmatpush.bf16.msra.mxu0 0
    %542 = vmatpush.bf16.msra.mxu0 0
    %543 = vmatpush.bf16.msra.mxu0 0
    %544 = vmatpush.bf16.msra.mxu0 0
    %545 = vmatpush.bf16.msra.mxu0 0
    %546 = vmatpush.bf16.msra.mxu0 0
    %547 = vmatpush.bf16.msra.mxu0 0
    %548 = vmatpush.bf16.msra.mxu0 %v539
    %549 = vmatmul.bf16.gmra.mxu0 %v237
    %v550 = vpop.f32.mrf.mxu0
    %v551 = vadd.f32 %v536, %v550
    %v552 = vpop.f32.mrf.mxu0
    %v553 = vadd.f32 %v536, %v552
    %554 = vmatmul.bf16.gmra.mxu0 %v240
    %v555 = vpop.f32.mrf.mxu0
    %v556 = vadd.f32 %v536, %v555
    %v557 = vpop.f32.mrf.mxu0
    %v558 = vadd.f32 %v536, %v557
    %559 = vdwg.mxu0
    %v560 = vadd.f32 %v529, %v551
    %v561 = vadd.f32 %v530, %v553
    %v562 = vadd.f32 %v531, %v556
    %v563 = vadd.f32 %v532, %v558
    %v564 = vmax.f32 %v560, 0.0
    %v565 = vmax.f32 %v561, 0.0
    %v566 = vmax.f32 %v562, 0.0
    %v567 = vmax.f32 %v563, 0.0
    %v568 = vpack.c.bf16 %v565, %v564
    %v569 = vpack.c.bf16 %v567, %v566
    %s570 = scalar_lea.vmem [#allocation9], 8
    %v571 = vld [vmem:[%s570] sm:$0xf]
    %v572 = vld [vmem:[#allocation9] sm:$0xf]
    %v574 = vsel %vm399, %v568, 0
    %v577 = vsel %vm399, %v569, 0
    %v580 = vsel %vm406, %v572, 0
    %582 = vmatpush.bf16.msra.mxu0 0
    %583 = vmatpush.bf16.msra.mxu0 0
    %584 = vmatpush.bf16.msra.mxu0 0
    %585 = vmatpush.bf16.msra.mxu0 0
    %586 = vmatpush.bf16.msra.mxu0 0
    %587 = vmatpush.bf16.msra.mxu0 0
    %588 = vmatpush.bf16.msra.mxu0 0
    %589 = vmatpush.bf16.msra.mxu0 %v580
    %590 = vmatmul.bf16.gmra.mxu0 %v574
    %v591 = vpop.f32.mrf.mxu0
    %v592 = vadd.f32 0.0, %v591
    %v593 = vpop.f32.mrf.mxu0
    %v594 = vadd.f32 0.0, %v593
    %595 = vmatmul.bf16.gmra.mxu0 %v577
    %v596 = vpop.f32.mrf.mxu0
    %v597 = vadd.f32 0.0, %v596
    %v598 = vpop.f32.mrf.mxu0
    %v599 = vadd.f32 0.0, %v598
    %600 = vdwg.mxu0
    %v602 = vrot.slane %v599, 4
    %v607 = vrot.slane %v592, 4
    %v608 = vrot.slane %v594, 4
    %v609 = vsel %vm406, %v607, %v608
    %v610 = vrot.slane %v597, 4
    %v611 = vsel %vm406, %v608, %v610
    %v612 = vsel %vm406, %v610, %v602
    %v617 = vsel %vm406, %v602, %v607
    %vm618 = vcmp.ge.s32.totalorder %v226, 4
    %vm619 = vcmp.ge.s32.totalorder %v227, 4
    %vm620 = vcmp.ge.s32.totalorder %v228, 4
    %vm621 = vcmp.ge.s32.totalorder %v229, 4
    %v622 = vsel %vm618, 1, 0
    %v623 = vsel %vm619, 1, 0
    %v624 = vsel %vm620, 1, 0
    %v625 = vsel %vm621, 1, 0
    %vm626 = vcmp.eq.s32.totalorder %v622, 1
    %vm627 = vcmp.eq.s32.totalorder %v623, 1
    %vm628 = vcmp.eq.s32.totalorder %v624, 1
    %vm629 = vcmp.eq.s32.totalorder %v625, 1
    %v630 = vsel %vm626, %v617, 0.0
    %v631 = vsel %vm627, %v609, 0.0
    %v632 = vsel %vm628, %v611, 0.0
    %v633 = vsel %vm629, %v612, 0.0
    %v635 = vsel %vm406, %v571, 0
    %637 = vmatpush.bf16.msra.mxu0 0
    %638 = vmatpush.bf16.msra.mxu0 0
    %639 = vmatpush.bf16.msra.mxu0 0
    %640 = vmatpush.bf16.msra.mxu0 0
    %641 = vmatpush.bf16.msra.mxu0 0
    %642 = vmatpush.bf16.msra.mxu0 0
    %643 = vmatpush.bf16.msra.mxu0 0
    %644 = vmatpush.bf16.msra.mxu0 %v635
    %645 = vmatmul.bf16.gmra.mxu0 %v574
    %v646 = vpop.f32.mrf.mxu0
    %v647 = vadd.f32 %v630, %v646
    %v648 = vpop.f32.mrf.mxu0
    %v649 = vadd.f32 %v631, %v648
    %650 = vmatmul.bf16.gmra.mxu0 %v577
    %v651 = vpop.f32.mrf.mxu0
    %v652 = vadd.f32 %v632, %v651
    %v653 = vpop.f32.mrf.mxu0
    %v654 = vadd.f32 %v633, %v653
    %655 = vdwg.mxu0
    %s656 = scalar_lea.vmem [#allocation9], 4
    %v657 = vld [vmem:[%s656] sm:$0xf]
    %v659 = vsel %vm406, %v657, 0
    %661 = vmatpush.bf16.msra.mxu0 0
    %662 = vmatpush.bf16.msra.mxu0 0
    %663 = vmatpush.bf16.msra.mxu0 0
    %664 = vmatpush.bf16.msra.mxu0 0
    %665 = vmatpush.bf16.msra.mxu0 0
    %666 = vmatpush.bf16.msra.mxu0 0
    %667 = vmatpush.bf16.msra.mxu0 0
    %668 = vmatpush.bf16.msra.mxu0 %v659
    %669 = vmatmul.bf16.gmra.mxu0 %v574
    %v670 = vpop.f32.mrf.mxu0
    %v671 = vadd.f32 0.0, %v670
    %v672 = vpop.f32.mrf.mxu0
    %v673 = vadd.f32 0.0, %v672
    %674 = vmatmul.bf16.gmra.mxu0 %v577
    %v675 = vpop.f32.mrf.mxu0
    %v676 = vadd.f32 0.0, %v675
    %v677 = vpop.f32.mrf.mxu0
    %v678 = vadd.f32 0.0, %v677
    %679 = vdwg.mxu0
    %v681 = vrot.slane %v678, 6
    %v686 = vrot.slane %v671, 6
    %v687 = vrot.slane %v673, 6
    %v688 = vsel %vm242, %v686, %v687
    %v689 = vrot.slane %v676, 6
    %v690 = vsel %vm242, %v687, %v689
    %v691 = vsel %vm242, %v689, %v681
    %v696 = vsel %vm242, %v681, %v686
    %v697 = vsel %vm290, %v696, 0.0
    %v698 = vsel %vm291, %v688, 0.0
    %v699 = vsel %vm292, %v690, 0.0
    %v700 = vsel %vm293, %v691, 0.0
    %v701 = vadd.f32 %v647, %v697
    %v702 = vadd.f32 %v649, %v698
    %v703 = vadd.f32 %v652, %v699
    %v704 = vadd.f32 %v654, %v700
    %v705 = vld [vmem:[#allocation10] sm:$0x1]
    %v707 = vperm.slane %v705, 0
    %v709 = vadd.f32 %v701, %v707
    %v710 = vadd.f32 %v702, %v707
    %v711 = vadd.f32 %v703, %v707
    %v712 = vadd.f32 %v704, %v707
    %v713 = vmax.f32 %v709, 0.0
    %v714 = vmax.f32 %v710, 0.0
    %v715 = vmax.f32 %v711, 0.0
    %v716 = vmax.f32 %v712, 0.0
    %v717 = vpack.c.bf16 %v714, %v713
    %v718 = vpack.c.bf16 %v716, %v715
    %s719 = scalar_lea.vmem %s9, 16
    %v720 = vld [vmem:[%s719] sm:$0xf]
    %v721 = vld [vmem:[%s719 + $0x4] sm:$0xf]
    %v722 = vld [vmem:[%s9] sm:$0xf]
    %v723 = vld [vmem:[%s9 + $0x4] sm:$0xf]
    %v726 = vunpack.c.l.b16 %v722
    %v727 = vunpack.c.l.b16 %v723
    %v728 = vpack.c.b16 %v727, %v726
    %vm730 = vcmask 130048
    %v732 = vsel %vm730, %v717, 0
    %v735 = vsel %vm730, %v718, 0
    %737 = vmatpush.bf16.msra.mxu0 0
    %738 = vmatpush.bf16.msra.mxu0 0
    %739 = vmatpush.bf16.msra.mxu0 0
    %740 = vmatpush.bf16.msra.mxu0 0
    %741 = vmatpush.bf16.msra.mxu0 0
    %742 = vmatpush.bf16.msra.mxu0 0
    %743 = vmatpush.bf16.msra.mxu0 0
    %744 = vmatpush.bf16.msra.mxu0 %v728
    %745 = vmatmul.bf16.gmra.mxu0 %v732
    %v746 = vpop.f32.mrf.mxu0
    %v747 = vadd.f32 0.0, %v746
    %v748 = vpop.f32.mrf.mxu0
    %v749 = vadd.f32 0.0, %v748
    %750 = vmatmul.bf16.gmra.mxu0 %v735
    %v751 = vpop.f32.mrf.mxu0
    %v752 = vadd.f32 0.0, %v751
    %v753 = vpop.f32.mrf.mxu0
    %v754 = vadd.f32 0.0, %v753
    %755 = vdwg.mxu0
    %v757 = vrot.slane %v754, 4
    %v762 = vrot.slane %v747, 4
    %v763 = vrot.slane %v749, 4
    %v764 = vsel %vm406, %v762, %v763
    %v765 = vrot.slane %v752, 4
    %v766 = vsel %vm406, %v763, %v765
    %v767 = vsel %vm406, %v765, %v757
    %v772 = vsel %vm406, %v757, %v762
    %v773 = vsel %vm626, %v772, 0.0
    %v774 = vsel %vm627, %v764, 0.0
    %v775 = vsel %vm628, %v766, 0.0
    %v776 = vsel %vm629, %v767, 0.0
    %v779 = vunpack.c.l.b16 %v720
    %v780 = vunpack.c.l.b16 %v721
    %v781 = vpack.c.b16 %v780, %v779
    %783 = vmatpush.bf16.msra.mxu0 0
    %784 = vmatpush.bf16.msra.mxu0 0
    %785 = vmatpush.bf16.msra.mxu0 0
    %786 = vmatpush.bf16.msra.mxu0 0
    %787 = vmatpush.bf16.msra.mxu0 0
    %788 = vmatpush.bf16.msra.mxu0 0
    %789 = vmatpush.bf16.msra.mxu0 0
    %790 = vmatpush.bf16.msra.mxu0 %v781
    %791 = vmatmul.bf16.gmra.mxu0 %v732
    %v792 = vpop.f32.mrf.mxu0
    %v793 = vadd.f32 %v773, %v792
    %v794 = vpop.f32.mrf.mxu0
    %v795 = vadd.f32 %v774, %v794
    %796 = vmatmul.bf16.gmra.mxu0 %v735
    %v797 = vpop.f32.mrf.mxu0
    %v798 = vadd.f32 %v775, %v797
    %v799 = vpop.f32.mrf.mxu0
    %v800 = vadd.f32 %v776, %v799
    %801 = vdwg.mxu0
    %s802 = scalar_lea.vmem %s9, 8
    %v803 = vld [vmem:[%s802] sm:$0xf]
    %v804 = vld [vmem:[%s802 + $0x4] sm:$0xf]
    %v807 = vunpack.c.l.b16 %v803
    %v808 = vunpack.c.l.b16 %v804
    %v809 = vpack.c.b16 %v808, %v807
    %811 = vmatpush.bf16.msra.mxu0 0
    %812 = vmatpush.bf16.msra.mxu0 0
    %813 = vmatpush.bf16.msra.mxu0 0
    %814 = vmatpush.bf16.msra.mxu0 0
    %815 = vmatpush.bf16.msra.mxu0 0
    %816 = vmatpush.bf16.msra.mxu0 0
    %817 = vmatpush.bf16.msra.mxu0 0
    %818 = vmatpush.bf16.msra.mxu0 %v809
    %819 = vmatmul.bf16.gmra.mxu0 %v732
    %v820 = vpop.f32.mrf.mxu0
    %v821 = vadd.f32 0.0, %v820
    %v822 = vpop.f32.mrf.mxu0
    %v823 = vadd.f32 0.0, %v822
    %824 = vmatmul.bf16.gmra.mxu0 %v735
    %v825 = vpop.f32.mrf.mxu0
    %v826 = vadd.f32 0.0, %v825
    %v827 = vpop.f32.mrf.mxu0
    %v828 = vadd.f32 0.0, %v827
    %829 = vdwg.mxu0
    %v831 = vrot.slane %v828, 6
    %v836 = vrot.slane %v821, 6
    %v837 = vrot.slane %v823, 6
    %v838 = vsel %vm242, %v836, %v837
    %v839 = vrot.slane %v826, 6
    %v840 = vsel %vm242, %v837, %v839
    %v841 = vsel %vm242, %v839, %v831
    %v846 = vsel %vm242, %v831, %v836
    %v847 = vsel %vm290, %v846, 0.0
    %v848 = vsel %vm291, %v838, 0.0
    %v849 = vsel %vm292, %v840, 0.0
    %v850 = vsel %vm293, %v841, 0.0
    %v851 = vadd.f32 %v793, %v847
    %v852 = vadd.f32 %v795, %v848
    %v853 = vadd.f32 %v798, %v849
    %v854 = vadd.f32 %v800, %v850
    %v855 = vld [vmem:[#allocation12] sm:$0x1]
    %v857 = vperm.slane %v855, 0
    %v859 = vadd.f32 %v851, %v857
    %v860 = vadd.f32 %v852, %v857
    %v861 = vadd.f32 %v853, %v857
    %v862 = vadd.f32 %v854, %v857
    %v863 = vmax.f32 %v859, 0.0
    %v864 = vmax.f32 %v860, 0.0
    %v865 = vmax.f32 %v861, 0.0
    %v866 = vmax.f32 %v862, 0.0
    %v867 = vld [vmem:[#allocation13] sm:$0xf]
    %v868 = vld [vmem:[#allocation15] sm:$0x1]
    %v870 = vperm.slane %v868, 0
    %v873 = vsel %vm406, %v867, 0
    %875 = vmatpush.bf16.msra.mxu0 0
    %876 = vmatpush.bf16.msra.mxu0 0
    %877 = vmatpush.bf16.msra.mxu0 0
    %878 = vmatpush.bf16.msra.mxu0 0
    %879 = vmatpush.bf16.msra.mxu0 0
    %880 = vmatpush.bf16.msra.mxu0 0
    %881 = vmatpush.bf16.msra.mxu0 0
    %882 = vmatpush.bf16.msra.mxu0 %v873
    %883 = vmatmul.bf16.gmra.mxu0 %v574
    %v884 = vpop.f32.mrf.mxu0
    %v885 = vadd.f32 %v870, %v884
    %v886 = vpop.f32.mrf.mxu0
    %v887 = vadd.f32 %v870, %v886
    %888 = vmatmul.bf16.gmra.mxu0 %v577
    %v889 = vpop.f32.mrf.mxu0
    %v890 = vadd.f32 %v870, %v889
    %v891 = vpop.f32.mrf.mxu0
    %v892 = vadd.f32 %v870, %v891
    %893 = vdwg.mxu0
    %v894 = vadd.f32 %v863, %v885
    %v895 = vadd.f32 %v864, %v887
    %v896 = vadd.f32 %v865, %v890
    %v897 = vadd.f32 %v866, %v892
    %v898 = vmax.f32 %v894, 0.0
    %v899 = vmax.f32 %v895, 0.0
    %v900 = vmax.f32 %v896, 0.0
    %v901 = vmax.f32 %v897, 0.0
    %902 = vst.msk [vmem:[%s13] sm:$0xff] %vm730, %v898
    %903 = vst.msk [vmem:[%s13 + $0x8] sm:$0xff] %vm730, %v899
    %904 = vst.msk [vmem:[%s13 + $0x10] sm:$0xff] %vm730, %v900
    %905 = vst.msk [vmem:[%s13 + $0x18] sm:$0xff] %vm730, %v901
    // Predicated region
    $region90: #{tcn_transformer_forward.2} parent=1 // pred_check
      _
    $region91: #{tcn_transformer_forward.2} parent=1 // pred_check_branch
      %907 = sbr.rel (0) target = $region93
    $region92: #{tcn_transformer_forward.2} parent=1 // pred_region
      _
    $region93: #{tcn_transformer_forward.2} parent=1 // pred_fallthru
      _
    // Predicated region
    $region94: #{tcn_transformer_forward.2} parent=1 // pred_check
      _
    $region95: #{tcn_transformer_forward.2} parent=1 // pred_check_branch
      %909 = sbr.rel (0) target = $region97
    $region96: #{tcn_transformer_forward.2} parent=1 // pred_region
      _
    $region97: #{tcn_transformer_forward.2} parent=1 // pred_fallthru
      _
    %910 = vsyncpa [#allocation3], 1
    %911 = vsyncpa [#allocation5], 1
    %912 = vsyncpa [#allocation8], 1
    %913 = vsyncpa [#allocation11], 1
    %914 = vsyncpa [#allocation14], 1

// kernel: tcn_transformer_forward.3
$region0: #{tcn_transformer_forward.3}
  #allocation0 [shape = 'u32[]', space=smem, size = 0x4, offset = 0x4, fixed_abs, tag = 'smem constant byte address 0x4 - core index']
  #allocation1 [shape = 'u32[72,128]{1,0:T(1,128)}', space=vmem, size = 0x9000, scoped, tag = 'internal scratch']
  #allocation2 [shape = 'f32[32,32]{1,0:T(8,128)}', space=vmem, size = 0x4000, scoped, tag = 'scratch operand']
  #allocation3 [shape = 'f32[1,1]{1,0:T(1,128)S(1)}', space=vmem, size = 0x200, scoped, tag = 'scoped memory for tcn_transformer_forward.3']
  %s0 = inlined_call_operand.vmem [shape: f32[32,16], index: 0, kind: input, shape index: {}]
  %s1 = inlined_call_operand.hbm [shape: bf16[16,32], index: 1, kind: input, shape index: {}]
  %s2 = inlined_call_operand.vmem [shape: f32[1,32], index: 2, kind: input, shape index: {}]
  %s3 = inlined_call_operand.vmem [shape: f32[16,32], index: 3, kind: input, shape index: {}]
  %s4 = inlined_call_operand.vmem [shape: bf16[2,32,96], index: 4, kind: input, shape index: {}]
  %s5 = inlined_call_operand.vmem [shape: bf16[2,32,32], index: 5, kind: input, shape index: {}]
  %s6 = inlined_call_operand.vmem [shape: bf16[2,32,64], index: 6, kind: input, shape index: {}]
  %s7 = inlined_call_operand.vmem [shape: bf16[2,64,32], index: 7, kind: input, shape index: {}]
  %s8 = inlined_call_operand.hbm [shape: f32[2,8,96], index: 8, kind: input, shape index: {}]
  %s9 = inlined_call_operand.vmem [shape: bf16[32,1], index: 9, kind: input, shape index: {}]
  %s10 = inlined_call_operand.<no memory space> [shape: f32[1,1], index: 10, kind: input, shape index: {}]
  %s11 = inlined_call_operand.vmem [shape: f32[2,1], index: 11, kind: output, shape index: {}]
  %s12 = sld [smem:[#allocation0]]
  $region93: #{tcn_transformer_forward.3} parent=0
    _
  %s14 = ssub.s32 1, %s12
  %s15 = scalar_select 0, %s14, %s12
  %v16 = vstv %s10
  %17 = vst [vmem:[#allocation3] sm:$0x1] %v16
  $region1: #{tcn_transformer_forward.3} parent=0
    #allocation4 [shape = 'u8[4096]{0}', space=vmem, size = 0x1000, scoped, tag = 'input window, operand 1, single buffered']
    #allocation5 [shape = 's32[2]{0}', space=sflag, size = 0x8, scoped, tag = 'scoped memory for tcn_transformer_forward.3']
    #allocation6 [shape = 'u8[8192]{0}', space=vmem, size = 0x2000, scoped, tag = 'input window, operand 8']
    #allocation7 [shape = 's32[2]{0}', space=sflag, size = 0x8, scoped, tag = 'scoped memory for tcn_transformer_forward.3']
    %18 = vsyncpa [#allocation5], 0
    %19 = vsyncpa [#allocation7], 0
    %s20 = scalar_lea.sflag [#allocation7], 1
    %21 = vsyncpa %s20, 0
    loop: start=0, step=1, limit=4
    $region2: #{tcn_transformer_forward.3} parent=1 // loop_pre_header
      _
    $region3: #{tcn_transformer_forward.3} parent=1 // loop_header
      %s23 = sphi 0, %s27
      %p24 = scmp.ge.s32.totalorder %s23, 4
      %s31 = sphi 0, %s31
      %s33 = sphi 0, %s31
      %s34 = sphi 0, %s33
      %s48 = sphi 0, %s34
      %s52 = sphi 0, %s52
      %s54 = sphi 0, %s52
      %s55 = sphi 0, %s54
      %s69 = sphi 0, %s55
      %s73 = sphi 0, %s73
      %s75 = sphi 0, %s73
      %s76 = sphi 0, %s75
      %s90 = sphi 0, %s76
      %s94 = sphi 0, %s94
      %s96 = sphi 0, %s94
      %s97 = sphi 0, %s96
      %s111 = sphi 0, %s97
      %s117 = sphi 0, %s119
      %s120 = sphi 0, %s117
      %s121 = sphi 0, %s120
      %s137 = sphi 0, %s121
      %s143 = sphi 0, %s145
      %s146 = sphi 0, %s143
      %s147 = sphi 0, %s146
      %s163 = sphi 0, %s147
      %s169 = sphi 0, %s171
      %s172 = sphi 0, %s169
      %s173 = sphi 0, %s172
      %s189 = sphi 0, %s173
      %s195 = sphi 0, %s197
      %s198 = sphi 0, %s195
      %s199 = sphi 0, %s198
      %s215 = sphi 0, %s199
      %s221 = sphi 0, %s223
      %s224 = sphi 0, %s221
      %s225 = sphi 0, %s224
      %s241 = sphi 0, %s225
      %s245 = sphi 0, %s245
      %s247 = sphi 0, %s245
      %s248 = sphi 0, %s247
      %s262 = sphi 0, %s248
      %s266 = sphi 0, %s266
      %s268 = sphi 0, %s266
      %s269 = sphi 0, %s268
      %s283 = sphi 0, %s269
      %s287 = sphi 0, %s287
      %s289 = sphi 0, %s287
      %s290 = sphi 0, %s289
      %s304 = sphi 0, %s290
    $region4: #{tcn_transformer_forward.3} parent=1 // loop_header_branch
      %26 = sbr.rel (%p24) target = $region8
    $region5: #{tcn_transformer_forward.3} parent=1 // loop_body
      %s28 = ssub.s32 %s23, 1
      %s29 = ssub.s32 %s23, 2
      %s30 = sadd.s32 %s23, 1
      %s32 = sadd.s32 %s31, 1
      %p35 = scmp.eq.s32.totalorder %s23, 1
      %p36 = scmp.ne.s32.totalorder %s31, %s33
      %p37 = scmp.eq.s32.totalorder %s23, 0
      %p38 = por %p36, %p37
      %p39 = scmp.ne.s32.totalorder %s31, %s33
      %p40 = scmp.eq.s32.totalorder %s28, 1
      %p41 = por %p39, %p40
      %p42 = scmp.ne.s32.totalorder %s33, %s34
      %p43 = scmp.eq.s32.totalorder %s28, 0
      %p44 = por %p42, %p43
      %p45 = scmp.ne.s32.totalorder %s33, %s34
      %p46 = scmp.eq.s32.totalorder %s29, 1
      %p47 = por %p45, %p46
      %p49 = scmp.ne.s32.totalorder %s34, %s48
      %p50 = scmp.eq.s32.totalorder %s29, 0
      %p51 = por %p49, %p50
      %s53 = sadd.s32 %s52, 1
      %p56 = scmp.eq.s32.totalorder %s23, 1
      %p57 = scmp.ne.s32.totalorder %s52, %s54
      %p58 = scmp.eq.s32.totalorder %s23, 0
      %p59 = por %p57, %p58
      %p60 = scmp.ne.s32.totalorder %s52, %s54
      %p61 = scmp.eq.s32.totalorder %s28, 1
      %p62 = por %p60, %p61
      %p63 = scmp.ne.s32.totalorder %s54, %s55
      %p64 = scmp.eq.s32.totalorder %s28, 0
      %p65 = por %p63, %p64
      %p66 = scmp.ne.s32.totalorder %s54, %s55
      %p67 = scmp.eq.s32.totalorder %s29, 1
      %p68 = por %p66, %p67
      %p70 = scmp.ne.s32.totalorder %s55, %s69
      %p71 = scmp.eq.s32.totalorder %s29, 0
      %p72 = por %p70, %p71
      %s74 = sadd.s32 %s73, 1
      %p77 = scmp.eq.s32.totalorder %s23, 1
      %p78 = scmp.ne.s32.totalorder %s73, %s75
      %p79 = scmp.eq.s32.totalorder %s23, 0
      %p80 = por %p78, %p79
      %p81 = scmp.ne.s32.totalorder %s73, %s75
      %p82 = scmp.eq.s32.totalorder %s28, 1
      %p83 = por %p81, %p82
      %p84 = scmp.ne.s32.totalorder %s75, %s76
      %p85 = scmp.eq.s32.totalorder %s28, 0
      %p86 = por %p84, %p85
      %p87 = scmp.ne.s32.totalorder %s75, %s76
      %p88 = scmp.eq.s32.totalorder %s29, 1
      %p89 = por %p87, %p88
      %p91 = scmp.ne.s32.totalorder %s76, %s90
      %p92 = scmp.eq.s32.totalorder %s29, 0
      %p93 = por %p91, %p92
      %s95 = sadd.s32 %s94, 1
      %p98 = scmp.eq.s32.totalorder %s23, 1
      %p99 = scmp.ne.s32.totalorder %s94, %s96
      %p100 = scmp.eq.s32.totalorder %s23, 0
      %p101 = por %p99, %p100
      %p102 = scmp.ne.s32.totalorder %s94, %s96
      %p103 = scmp.eq.s32.totalorder %s28, 1
      %p104 = por %p102, %p103
      %p105 = scmp.ne.s32.totalorder %s96, %s97
      %p106 = scmp.eq.s32.totalorder %s28, 0
      %p107 = por %p105, %p106
      %p108 = scmp.ne.s32.totalorder %s96, %s97
      %p109 = scmp.eq.s32.totalorder %s29, 1
      %p110 = por %p108, %p109
      %p112 = scmp.ne.s32.totalorder %s97, %s111
      %p113 = scmp.eq.s32.totalorder %s29, 0
      %p114 = por %p112, %p113
      %s115 = ssub.s32 %s23, %s30
      %p116 = scmp.eq.s32.totalorder %s115, 0
      %s118 = sadd.s32 %s117, 1
      %s119 = scalar_select %p116, %s117, %s118
      %p122 = pneg %p116
      %p123 = scmp.eq.s32.totalorder %s23, 1
      %p124 = por %p122, %p123
      %p125 = scmp.ne.s32.totalorder %s117, %s120
      %p126 = scmp.eq.s32.totalorder %s23, 0
      %p127 = por %p125, %p126
      %p128 = scmp.ne.s32.totalorder %s117, %s120
      %p129 = scmp.eq.s32.totalorder %s28, 1
      %p130 = por %p128, %p129
      %p131 = scmp.ne.s32.totalorder %s120, %s121
      %p132 = scmp.eq.s32.totalorder %s28, 0
      %p133 = por %p131, %p132
      %p134 = scmp.ne.s32.totalorder %s120, %s121
      %p135 = scmp.eq.s32.totalorder %s29, 1
      %p136 = por %p134, %p135
      %p138 = scmp.ne.s32.totalorder %s121, %s137
      %p139 = scmp.eq.s32.totalorder %s29, 0
      %p140 = por %p138, %p139
      %s141 = ssub.s32 %s23, %s30
      %p142 = scmp.eq.s32.totalorder %s141, 0
      %s144 = sadd.s32 %s143, 1
      %s145 = scalar_select %p142, %s143, %s144
      %p148 = pneg %p142
      %p149 = scmp.eq.s32.totalorder %s23, 1
      %p150 = por %p148, %p149
      %p151 = scmp.ne.s32.totalorder %s143, %s146
      %p152 = scmp.eq.s32.totalorder %s23, 0
      %p153 = por %p151, %p152
      %p154 = scmp.ne.s32.totalorder %s143, %s146
      %p155 = scmp.eq.s32.totalorder %s28, 1
      %p156 = por %p154, %p155
      %p157 = scmp.ne.s32.totalorder %s146, %s147
      %p158 = scmp.eq.s32.totalorder %s28, 0
      %p159 = por %p157, %p158
      %p160 = scmp.ne.s32.totalorder %s146, %s147
      %p161 = scmp.eq.s32.totalorder %s29, 1
      %p162 = por %p160, %p161
      %p164 = scmp.ne.s32.totalorder %s147, %s163
      %p165 = scmp.eq.s32.totalorder %s29, 0
      %p166 = por %p164, %p165
      %s167 = ssub.s32 %s23, %s30
      %p168 = scmp.eq.s32.totalorder %s167, 0
      %s170 = sadd.s32 %s169, 1
      %s171 = scalar_select %p168, %s169, %s170
      %p174 = pneg %p168
      %p175 = scmp.eq.s32.totalorder %s23, 1
      %p176 = por %p174, %p175
      %p177 = scmp.ne.s32.totalorder %s169, %s172
      %p178 = scmp.eq.s32.totalorder %s23, 0
      %p179 = por %p177, %p178
      %p180 = scmp.ne.s32.totalorder %s169, %s172
      %p181 = scmp.eq.s32.totalorder %s28, 1
      %p182 = por %p180, %p181
      %p183 = scmp.ne.s32.totalorder %s172, %s173
      %p184 = scmp.eq.s32.totalorder %s28, 0
      %p185 = por %p183, %p184
      %p186 = scmp.ne.s32.totalorder %s172, %s173
      %p187 = scmp.eq.s32.totalorder %s29, 1
      %p188 = por %p186, %p187
      %p190 = scmp.ne.s32.totalorder %s173, %s189
      %p191 = scmp.eq.s32.totalorder %s29, 0
      %p192 = por %p190, %p191
      %s193 = ssub.s32 %s23, %s30
      %p194 = scmp.eq.s32.totalorder %s193, 0
      %s196 = sadd.s32 %s195, 1
      %s197 = scalar_select %p194, %s195, %s196
      %p200 = pneg %p194
      %p201 = scmp.eq.s32.totalorder %s23, 1
      %p202 = por %p200, %p201
      %p203 = scmp.ne.s32.totalorder %s195, %s198
      %p204 = scmp.eq.s32.totalorder %s23, 0
      %p205 = por %p203, %p204
      %p206 = scmp.ne.s32.totalorder %s195, %s198
      %p207 = scmp.eq.s32.totalorder %s28, 1
      %p208 = por %p206, %p207
      %p209 = scmp.ne.s32.totalorder %s198, %s199
      %p210 = scmp.eq.s32.totalorder %s28, 0
      %p211 = por %p209, %p210
      %p212 = scmp.ne.s32.totalorder %s198, %s199
      %p213 = scmp.eq.s32.totalorder %s29, 1
      %p214 = por %p212, %p213
      %p216 = scmp.ne.s32.totalorder %s199, %s215
      %p217 = scmp.eq.s32.totalorder %s29, 0
      %p218 = por %p216, %p217
      %s219 = ssub.s32 %s23, %s30
      %p220 = scmp.eq.s32.totalorder %s219, 0
      %s222 = sadd.s32 %s221, 1
      %s223 = scalar_select %p220, %s221, %s222
      %p226 = pneg %p220
      %p227 = scmp.eq.s32.totalorder %s23, 1
      %p228 = por %p226, %p227
      %p229 = scmp.ne.s32.totalorder %s221, %s224
      %p230 = scmp.eq.s32.totalorder %s23, 0
      %p231 = por %p229, %p230
      %p232 = scmp.ne.s32.totalorder %s221, %s224
      %p233 = scmp.eq.s32.totalorder %s28, 1
      %p234 = por %p232, %p233
      %p235 = scmp.ne.s32.totalorder %s224, %s225
      %p236 = scmp.eq.s32.totalorder %s28, 0
      %p237 = por %p235, %p236
      %p238 = scmp.ne.s32.totalorder %s224, %s225
      %p239 = scmp.eq.s32.totalorder %s29, 1
      %p240 = por %p238, %p239
      %p242 = scmp.ne.s32.totalorder %s225, %s241
      %p243 = scmp.eq.s32.totalorder %s29, 0
      %p244 = por %p242, %p243
      %s246 = sadd.s32 %s245, 1
      %p249 = scmp.eq.s32.totalorder %s23, 1
      %p250 = scmp.ne.s32.totalorder %s245, %s247
      %p251 = scmp.eq.s32.totalorder %s23, 0
      %p252 = por %p250, %p251
      %p253 = scmp.ne.s32.totalorder %s245, %s247
      %p254 = scmp.eq.s32.totalorder %s28, 1
      %p255 = por %p253, %p254
      %p256 = scmp.ne.s32.totalorder %s247, %s248
      %p257 = scmp.eq.s32.totalorder %s28, 0
      %p258 = por %p256, %p257
      %p259 = scmp.ne.s32.totalorder %s247, %s248
      %p260 = scmp.eq.s32.totalorder %s29, 1
      %p261 = por %p259, %p260
      %p263 = scmp.ne.s32.totalorder %s248, %s262
      %p264 = scmp.eq.s32.totalorder %s29, 0
      %p265 = por %p263, %p264
      %s267 = sadd.s32 %s266, 1
      %p270 = scmp.eq.s32.totalorder %s23, 1
      %p271 = scmp.ne.s32.totalorder %s266, %s268
      %p272 = scmp.eq.s32.totalorder %s23, 0
      %p273 = por %p271, %p272
      %p274 = scmp.ne.s32.totalorder %s266, %s268
      %p275 = scmp.eq.s32.totalorder %s28, 1
      %p276 = por %p274, %p275
      %p277 = scmp.ne.s32.totalorder %s268, %s269
      %p278 = scmp.eq.s32.totalorder %s28, 0
      %p279 = por %p277, %p278
      %p280 = scmp.ne.s32.totalorder %s268, %s269
      %p281 = scmp.eq.s32.totalorder %s29, 1
      %p282 = por %p280, %p281
      %p284 = scmp.ne.s32.totalorder %s269, %s283
      %p285 = scmp.eq.s32.totalorder %s29, 0
      %p286 = por %p284, %p285
      %s288 = sadd.s32 %s287, 1
      %p291 = scmp.eq.s32.totalorder %s23, 1
      %p292 = scmp.ne.s32.totalorder %s287, %s289
      %p293 = scmp.eq.s32.totalorder %s23, 0
      %p294 = por %p292, %p293
      %p295 = scmp.ne.s32.totalorder %s287, %s289
      %p296 = scmp.eq.s32.totalorder %s28, 1
      %p297 = por %p295, %p296
      %p298 = scmp.ne.s32.totalorder %s289, %s290
      %p299 = scmp.eq.s32.totalorder %s28, 0
      %p300 = por %p298, %p299
      %p301 = scmp.ne.s32.totalorder %s289, %s290
      %p302 = scmp.eq.s32.totalorder %s29, 1
      %p303 = por %p301, %p302
      %p305 = scmp.ne.s32.totalorder %s290, %s304
      %p306 = scmp.eq.s32.totalorder %s29, 0
      %p307 = por %p305, %p306
      %p308 = scmp.le.s32.totalorder 1, %s23
      %p309 = scmp.lt.s32.totalorder %s23, 3
      %p310 = pnand %p308, %p309
      %p311 = pneg %p310
      // Predicated region
      $region9: #{tcn_transformer_forward.3} parent=5 // pred_check
        _
      $region10: #{tcn_transformer_forward.3} parent=5 // pred_check_branch
        %313 = sbr.rel (%p310) target = $region12
      $region11: #{tcn_transformer_forward.3} parent=5 // pred_region
        %s314 = ssub.s32 %s23, 1
        // Predicated region
        $region13: #{tcn_transformer_forward.3} parent=11 // pred_check
          %p315 = pneg %p44
        $region14: #{tcn_transformer_forward.3} parent=11 // pred_check_branch
          %317 = sbr.rel (%p315) target = $region16
        $region15: #{tcn_transformer_forward.3} parent=11 // pred_region
          _
        $region16: #{tcn_transformer_forward.3} parent=11 // pred_fallthru
          _
        // Predicated region
        $region17: #{tcn_transformer_forward.3} parent=11 // pred_check
          %p318 = pneg %p65
        $region18: #{tcn_transformer_forward.3} parent=11 // pred_check_branch
          %320 = sbr.rel (%p318) target = $region20
        $region19: #{tcn_transformer_forward.3} parent=11 // pred_region
          %322 = vsyncadd [#allocation5], 0
          %s323 = sshll.u32 %s1, 4
          %s324 = int_to_ptr.hbm [resolvable:$true] %s323
          %s325 = sshll.u32 [#allocation4], 4
          %s326 = int_to_ptr.vmem [resolvable:$true] %s325
          %331 = dma.hbm_to_vmem [thread:$0]  %s324, 128, %s326, [#allocation5], 64, 64, 4
        $region20: #{tcn_transformer_forward.3} parent=11 // pred_fallthru
          _
        // Predicated region
        $region21: #{tcn_transformer_forward.3} parent=11 // pred_check
          %p332 = pneg %p86
        $region22: #{tcn_transformer_forward.3} parent=11 // pred_check_branch
          %334 = sbr.rel (%p332) target = $region24
        $region23: #{tcn_transformer_forward.3} parent=11 // pred_region
          _
        $region24: #{tcn_transformer_forward.3} parent=11 // pred_fallthru
          _
        // Predicated region
        $region25: #{tcn_transformer_forward.3} parent=11 // pred_check
          %p335 = pneg %p107
        $region26: #{tcn_transformer_forward.3} parent=11 // pred_check_branch
          %337 = sbr.rel (%p335) target = $region28
        $region27: #{tcn_transformer_forward.3} parent=11 // pred_region
          _
        $region28: #{tcn_transformer_forward.3} parent=11 // pred_fallthru
          _
        // Predicated region
        $region29: #{tcn_transformer_forward.3} parent=11 // pred_check
          %p338 = pneg %p258
        $region30: #{tcn_transformer_forward.3} parent=11 // pred_check_branch
          %340 = sbr.rel (%p338) target = $region32
        $region31: #{tcn_transformer_forward.3} parent=11 // pred_region
          _
        $region32: #{tcn_transformer_forward.3} parent=11 // pred_fallthru
          _
        // Predicated region
        $region33: #{tcn_transformer_forward.3} parent=11 // pred_check
          %p341 = pneg %p279
        $region34: #{tcn_transformer_forward.3} parent=11 // pred_check_branch
          %343 = sbr.rel (%p341) target = $region36
        $region35: #{tcn_transformer_forward.3} parent=11 // pred_region
          _
        $region36: #{tcn_transformer_forward.3} parent=11 // pred_fallthru
          _
      $region12: #{tcn_transformer_forward.3} parent=5 // pred_fallthru
        _
      %p344 = scmp.lt.s32.totalorder %s23, 2
      // Predicated region
      $region37: #{tcn_transformer_forward.3} parent=5 // pred_check
        %p345 = pneg %p344
      $region38: #{tcn_transformer_forward.3} parent=5 // pred_check_branch
        %347 = sbr.rel (%p345) target = $region40
      $region39: #{tcn_transformer_forward.3} parent=5 // pred_region
        // Predicated region
        $region41: #{tcn_transformer_forward.3} parent=39 // pred_check
          %p348 = pneg %p127
        $region42: #{tcn_transformer_forward.3} parent=39 // pred_check_branch
          %350 = sbr.rel (%p348) target = $region44
        $region43: #{tcn_transformer_forward.3} parent=39 // pred_region
          %p351 = scmp.lt.s32.totalorder %s23, 1
          %s352 = scalar_select %p351, %s23, 1
          %s353 = smul.addr %s352, 4
          %s354 = smul.addr %s353, 4
          %s355 = scalar_lea.vmem %s4, %s354
        $region44: #{tcn_transformer_forward.3} parent=39 // pred_fallthru
          _
        // Predicated region
        $region45: #{tcn_transformer_forward.3} parent=39 // pred_check
          %p356 = pneg %p153
        $region46: #{tcn_transformer_forward.3} parent=39 // pred_check_branch
          %358 = sbr.rel (%p356) target = $region48
        $region47: #{tcn_transformer_forward.3} parent=39 // pred_region
          %p359 = scmp.lt.s32.totalorder %s23, 1
          %s360 = scalar_select %p359, %s23, 1
          %s361 = smul.addr %s360, 4
          %s362 = smul.addr %s361, 4
          %s363 = scalar_lea.vmem %s5, %s362
        $region48: #{tcn_transformer_forward.3} parent=39 // pred_fallthru
          _
        // Predicated region
        $region49: #{tcn_transformer_forward.3} parent=39 // pred_check
          %p364 = pneg %p179
        $region50: #{tcn_transformer_forward.3} parent=39 // pred_check_branch
          %366 = sbr.rel (%p364) target = $region52
        $region51: #{tcn_transformer_forward.3} parent=39 // pred_region
          %p367 = scmp.lt.s32.totalorder %s23, 1
          %s368 = scalar_select %p367, %s23, 1
          %s369 = smul.addr %s368, 4
          %s370 = smul.addr %s369, 4
          %s371 = scalar_lea.vmem %s6, %s370
        $region52: #{tcn_transformer_forward.3} parent=39 // pred_fallthru
          _
        // Predicated region
        $region53: #{tcn_transformer_forward.3} parent=39 // pred_check
          %p372 = pneg %p205
        $region54: #{tcn_transformer_forward.3} parent=39 // pred_check_branch
          %374 = sbr.rel (%p372) target = $region56
        $region55: #{tcn_transformer_forward.3} parent=39 // pred_region
          %p375 = scmp.lt.s32.totalorder %s23, 1
          %s376 = scalar_select %p375, %s23, 1
          %s377 = smul.addr %s376, 8
          %s378 = smul.addr %s377, 4
          %s379 = scalar_lea.vmem %s7, %s378
        $region56: #{tcn_transformer_forward.3} parent=39 // pred_fallthru
          _
        // Predicated region
        $region57: #{tcn_transformer_forward.3} parent=39 // pred_check
          %p380 = pneg %p231
        $region58: #{tcn_transformer_forward.3} parent=39 // pred_check_branch
          %382 = sbr.rel (%p380) target = $region60
        $region59: #{tcn_transformer_forward.3} parent=39 // pred_region
          %s383 = sand.u32 %s221, 1
          %s384 = scalar_lea.sflag [#allocation7], %s383
          %s385 = sand.u32 %s221, 1
          %s386 = smul.addr %s385, 8
          %s387 = scalar_lea.vmem [#allocation6], %s386
          %389 = vsyncadd %s384, 0
          %s390 = smul.addr %s23, 8
          %s391 = scalar_lea.hbm %s8, %s390
          %s393 = sshll.u32 %s391, 4
          %s394 = int_to_ptr.hbm [resolvable:$true] %s393
          %s395 = sshll.u32 %s387, 4
          %s396 = int_to_ptr.vmem [resolvable:$true] %s395
          %398 = dma.hbm_to_vmem [thread:$0]  %s394, 128, %s396, %s384
        $region60: #{tcn_transformer_forward.3} parent=39 // pred_fallthru
          _
      $region40: #{tcn_transformer_forward.3} parent=5 // pred_fallthru
        _
      %p399 = scmp.le.s32.totalorder 1, %s23
      %p400 = scmp.lt.s32.totalorder %s23, 3
      %p401 = pnand %p399, %p400
      %p402 = pneg %p401
      // Predicated region
      $region61: #{tcn_transformer_forward.3} parent=5 // pred_check
        _
      $region62: #{tcn_transformer_forward.3} parent=5 // pred_check_branch
        %404 = sbr.rel (%p401) target = $region64
      $region63: #{tcn_transformer_forward.3} parent=5 // pred_region
        %s405 = ssub.s32 %s23, 1
        // Predicated region
        $region65: #{tcn_transformer_forward.3} parent=63 // pred_check
          %p406 = pneg %p65
        $region66: #{tcn_transformer_forward.3} parent=63 // pred_check_branch
          %408 = sbr.rel (%p406) target = $region68
        $region67: #{tcn_transformer_forward.3} parent=63 // pred_region
          %410 = dma.done [#allocation5], 128
        $region68: #{tcn_transformer_forward.3} parent=63 // pred_fallthru
          _
        %s411 = sand.u32 %s224, 1
        %s412 = scalar_lea.sflag [#allocation7], %s411
        %s413 = sand.u32 %s224, 1
        %s414 = smul.addr %s413, 8
        %s415 = scalar_lea.vmem [#allocation6], %s414
        // Predicated region
        $region69: #{tcn_transformer_forward.3} parent=63 // pred_check
          %p416 = pneg %p237
        $region70: #{tcn_transformer_forward.3} parent=63 // pred_check_branch
          %418 = sbr.rel (%p416) target = $region72
        $region71: #{tcn_transformer_forward.3} parent=63 // pred_region
          %420 = dma.done %s412, 128
        $region72: #{tcn_transformer_forward.3} parent=63 // pred_fallthru
          _
        %p421 = pneg %p44
        %p422 = pneg %p41
        %p423 = pneg %p65
        %p424 = pneg %p62
        %p425 = pneg %p86
        %p426 = pneg %p83
        %p427 = pneg %p107
        %p428 = pneg %p104
        %p429 = scmp.lt.s32.totalorder %s28, 1
        %s430 = scalar_select %p429, %s28, 1
        %s431 = smul.addr %s430, 4
        %s432 = smul.addr %s431, 4
        %s433 = scalar_lea.vmem %s4, %s432
        %p434 = pneg %p133
        %p435 = pneg %p130
        %p436 = scmp.lt.s32.totalorder %s28, 1
        %s437 = scalar_select %p436, %s28, 1
        %s438 = smul.addr %s437, 4
        %s439 = smul.addr %s438, 4
        %s440 = scalar_lea.vmem %s5, %s439
        %p441 = pneg %p159
        %p442 = pneg %p156
        %p443 = scmp.lt.s32.totalorder %s28, 1
        %s444 = scalar_select %p443, %s28, 1
        %s445 = smul.addr %s444, 4
        %s446 = smul.addr %s445, 4
        %s447 = scalar_lea.vmem %s6, %s446
        %p448 = pneg %p185
        %p449 = pneg %p182
        %p450 = scmp.lt.s32.totalorder %s28, 1
        %s451 = scalar_select %p450, %s28, 1
        %s452 = smul.addr %s451, 8
        %s453 = smul.addr %s452, 4
        %s454 = scalar_lea.vmem %s7, %s453
        %p455 = pneg %p211
        %p456 = pneg %p208
        %s457 = sand.u32 %s224, 1
        %s458 = scalar_lea.sflag [#allocation7], %s457
        %s459 = sand.u32 %s224, 1
        %s460 = smul.addr %s459, 8
        %s461 = scalar_lea.vmem [#allocation6], %s460
        %p462 = pneg %p237
        %p463 = pneg %p234
        %p464 = pneg %p258
        %p465 = pneg %p255
        %p466 = pneg %p279
        %p467 = pneg %p276
        %p468 = pneg %p300
        %p469 = pneg %p297
        %p470 = scmp.lt.s32.totalorder %s28, 1
        %s471 = scalar_select %p470, %s28, 1
        %s472 = smul.addr %s471, 4
        %s473 = smul.addr %s472, 4
        %s474 = scalar_lea.vmem %s4, %s473
        %p475 = scmp.lt.s32.totalorder %s28, 1
        %s476 = scalar_select %p475, %s28, 1
        %s477 = smul.addr %s476, 4
        %s478 = smul.addr %s477, 4
        %s479 = scalar_lea.vmem %s5, %s478
        %p480 = scmp.lt.s32.totalorder %s28, 1
        %s481 = scalar_select %p480, %s28, 1
        %s482 = smul.addr %s481, 4
        %s483 = smul.addr %s482, 4
        %s484 = scalar_lea.vmem %s6, %s483
        %p485 = scmp.lt.s32.totalorder %s28, 1
        %s486 = scalar_select %p485, %s28, 1
        %s487 = smul.addr %s486, 8
        %s488 = smul.addr %s487, 4
        %s489 = scalar_lea.vmem %s7, %s488
        %p491 = scmp.eq.s32.totalorder %s28, 0
        // Predicated region
        $region73: #{tcn_transformer_forward.3} parent=63 // pred_check
          %p492 = pneg %p491
        $region74: #{tcn_transformer_forward.3} parent=63 // pred_check_branch
          %494 = sbr.rel (%p492) target = $region76
        $region75: #{tcn_transformer_forward.3} parent=63 // pred_region
          %v495 = vld [vmem:[%s0] sm:$0xff]
          %v496 = vld [vmem:[%s0 + $0x8] sm:$0xff]
          %v497 = vld [vmem:[%s0 + $0x10] sm:$0xff]
          %v498 = vld [vmem:[%s0 + $0x18] sm:$0xff]
          %v499 = vld [vmem:[#allocation4] sm:$0xf]
          %v500 = vld [vmem:[#allocation4 + $0x4] sm:$0xf]
          %v501 = vpack.c.bf16 %v496, %v495
          %v502 = vpack.c.bf16 %v498, %v497
          %v503 = vld [vmem:[%s2] sm:$0x1]
          %v505 = vperm.slane %v503, 0
          %v509 = vunpack.c.l.b16 %v499
          %v510 = vunpack.c.l.b16 %v500
          %v511 = vpack.c.b16 %v510, %v509
          %vm513 = vcmask 130048
          %v515 = vsel %vm513, %v501, 0
          %v518 = vsel %vm513, %v502, 0
          %520 = vmatpush.bf16.msra.mxu0 0
          %521 = vmatpush.bf16.msra.mxu0 0
          %522 = vmatpush.bf16.msra.mxu0 0
          %523 = vmatpush.bf16.msra.mxu0 0
          %524 = vmatpush.bf16.msra.mxu0 0
          %525 = vmatpush.bf16.msra.mxu0 0
          %526 = vmatpush.bf16.msra.mxu0 0
          %527 = vmatpush.bf16.msra.mxu0 %v511
          %528 = vmatmul.bf16.gmra.mxu0 %v515
          %v529 = vpop.f32.mrf.mxu0
          %v530 = vadd.f32 %v505, %v529
          %v531 = vpop.f32.mrf.mxu0
          %v532 = vadd.f32 %v505, %v531
          %533 = vmatmul.bf16.gmra.mxu0 %v518
          %v534 = vpop.f32.mrf.mxu0
          %v535 = vadd.f32 %v505, %v534
          %v536 = vpop.f32.mrf.mxu0
          %v537 = vadd.f32 %v505, %v536
          %538 = vdwg.mxu0
          %v539 = vld [vmem:[%s3] sm:$0xff]
          %v540 = vld [vmem:[%s3 + $0x8] sm:$0xff]
          %v541 = vadd.f32 %v530, %v539
          %v542 = vadd.f32 %v532, %v540
          %v543 = vadd.f32 %v535, %v539
          %v544 = vadd.f32 %v537, %v540
          %vm545 = vcmask 261120
          %546 = vst.msk [vmem:[#allocation2] sm:$0xff] %vm545, %v541
          %547 = vst.msk [vmem:[#allocation2 + $0x8] sm:$0xff] %vm545, %v542
          %548 = vst.msk [vmem:[#allocation2 + $0x10] sm:$0xff] %vm545, %v543
          %549 = vst.msk [vmem:[#allocation2 + $0x18] sm:$0xff] %vm545, %v544
        $region76: #{tcn_transformer_forward.3} parent=63 // pred_fallthru
          _
        %v550 = vld [vmem:[#allocation2] sm:$0xff]
        %v551 = vld [vmem:[#allocation2 + $0x8] sm:$0xff]
        %v552 = vld [vmem:[#allocation2 + $0x10] sm:$0xff]
        %v553 = vld [vmem:[#allocation2 + $0x18] sm:$0xff]
        %v554 = vpack.c.bf16 %v551, %v550
        %v555 = vpack.c.bf16 %v553, %v552
        %v556 = vld [vmem:[%s474] sm:$0xf]
        %v557 = vld [vmem:[%s474 + $0x4] sm:$0xf]
        %v558 = vld [vmem:[%s474 + $0x8] sm:$0xf]
        %v559 = vld [vmem:[%s474 + $0xc] sm:$0xf]
        %v560 = vld [vmem:[%s415] sm:$0x1]
        %v561 = vperm.slane %v560, 0
        %v566 = vunpack.c.l.b16 %v556
        %v567 = vunpack.c.l.b16 %v557
        %v568 = vunpack.c.l.b16 %v558
        %v569 = vunpack.c.l.b16 %v559
        %v570 = vpack.c.b16 %v567, %v566
        %v571 = vpack.c.b16 %v569, %v568
        %vm574 = vcmask 261120
        %v576 = vsel %vm574, %v554, 0
        %v579 = vsel %vm574, %v555, 0
        %581 = vmatpush.bf16.msra.mxu0 0
        %582 = vmatpush.bf16.msra.mxu0 0
        %583 = vmatpush.bf16.msra.mxu0 0
        %584 = vmatpush.bf16.msra.mxu0 0
        %585 = vmatpush.bf16.msra.mxu0 0
        %586 = vmatpush.bf16.msra.mxu0 0
        %587 = vmatpush.bf16.msra.mxu0 %v571
        %588 = vmatpush.bf16.msra.mxu0 %v570
        %589 = vmatmul.bf16.gmra.mxu0 %v576
        %v590 = vpop.f32.mrf.mxu0
        %v591 = vadd.f32 %v561, %v590
        %v592 = vpop.f32.mrf.mxu0
        %v593 = vadd.f32 %v561, %v592
        %594 = vmatmul.bf16.gmra.mxu0 %v579
        %v595 = vpop.f32.mrf.mxu0
        %v596 = vadd.f32 %v561, %v595
        %v597 = vpop.f32.mrf.mxu0
        %v598 = vadd.f32 %v561, %v597
        %599 = vdwg.mxu0
        %v600 = vpack.c.bf16 %v591, %v591
        %v601 = vpack.c.bf16 %v593, %v593
        %v602 = vpack.c.bf16 %v596, %v596
        %v603 = vpack.c.bf16 %v598, %v598
        %v606 = vunpack.c.l.b16 %v600
        %v607 = vunpack.c.l.b16 %v601
        %v608 = vpack.c.b16 %v607, %v606
        %609 = vrot.lane.b32.xlu0 %v608, 96
        %v610 = vpop.permute.xlu0 %609
        %vm611 = vcmask 64512
        %v613 = vsel %vm611, %v608, 0
        %v616 = vsel %vm611, %v610, 0
        %618 = vmatpush.bf16.xpose.msra.mxu0 0
        %619 = vmatpush.bf16.xpose.msra.mxu0 0
        %620 = vmatpush.bf16.xpose.msra.mxu0 0
        %621 = vmatpush.bf16.xpose.msra.mxu0 0
        %622 = vmatpush.bf16.xpose.msra.mxu0 0
        %623 = vmatpush.bf16.xpose.msra.mxu0 0
        %624 = vmatpush.bf16.xpose.msra.mxu0 0
        %625 = vmatpush.bf16.xpose.msra.mxu0 %v616
        %626 = vmatmul.bf16.gmra.mxu0 %v613
        %v627 = vpop.f32.mrf.mxu0
        %v628 = vadd.f32 0.0, %v627
        %v629 = vpop.f32.mrf.mxu0
        %v630 = vadd.f32 0.0, %v629
        %631 = vdwg.mxu0
        %v634 = vunpack.c.l.b16 %v602
        %v635 = vunpack.c.l.b16 %v603
        %v636 = vpack.c.b16 %v635, %v634
        %637 = vrot.lane.b32.xlu0 %v636, 96
        %v638 = vpop.permute.xlu0 %637
        %v640 = vsel %vm611, %v636, 0
        %v643 = vsel %vm611, %v638, 0
        %645 = vmatpush.bf16.xpose.msra.mxu0 0
        %646 = vmatpush.bf16.xpose.msra.mxu0 0
        %647 = vmatpush.bf16.xpose.msra.mxu0 0
        %648 = vmatpush.bf16.xpose.msra.mxu0 0
        %649 = vmatpush.bf16.xpose.msra.mxu0 0
        %650 = vmatpush.bf16.xpose.msra.mxu0 0
        %651 = vmatpush.bf16.xpose.msra.mxu0 0
        %652 = vmatpush.bf16.xpose.msra.mxu0 %v643
        %653 = vmatmul.bf16.gmra.mxu0 %v640
        %v654 = vpop.f32.mrf.mxu0
        %v655 = vadd.f32 0.0, %v654
        %v656 = vpop.f32.mrf.mxu0
        %v657 = vadd.f32 0.0, %v656
        %658 = vdwg.mxu0
        %vm659 = vcmask 130048
        %v660 = vsel %vm659, %v628, -inf
        %661 = vmax.xlane.f32.xlu0 %v660
        %v662 = vpop.xlane.xlu0 %661
        %v663 = vsel %vm659, %v630, -inf
        %664 = vmax.xlane.f32.xlu0 %v663
        %v665 = vpop.xlane.xlu0 %664
        %v666 = vsel %vm659, %v655, -inf
        %667 = vmax.xlane.f32.xlu0 %v666
        %v668 = vpop.xlane.xlu0 %667
        %v669 = vsel %vm659, %v657, -inf
        %670 = vmax.xlane.f32.xlu0 %v669
        %v671 = vpop.xlane.xlu0 %670
        %v672 = vsub.f32 %v628, %v662
        %v673 = vsub.f32 %v630, %v665
        %v674 = vsub.f32 %v655, %v668
        %v675 = vsub.f32 %v657, %v671
        %v676 = vmul.f32 %v672, 1.442695
        %v677 = vpow.pop %v676
        %v678 = vmul.f32 %v673, 1.442695
        %v679 = vpow.pop %v678
        %v680 = vmul.f32 %v674, 1.442695
        %v681 = vpow.pop %v680
        %v682 = vmul.f32 %v675, 1.442695
        %v683 = vpow.pop %v682
        %v684 = vsel %vm659, %v677, 0.0
        %685 = vadd.xlane.f32.xlu0 %v684
        %v686 = vpop.xlane.xlu0 %685
        %v687 = vsel %vm659, %v679, 0.0
        %688 = vadd.xlane.f32.xlu0 %v687
        %v689 = vpop.xlane.xlu0 %688
        %v690 = vsel %vm659, %v681, 0.0
        %691 = vadd.xlane.f32.xlu0 %v690
        %v692 = vpop.xlane.xlu0 %691
        %v693 = vsel %vm659, %v683, 0.0
        %694 = vadd.xlane.f32.xlu0 %v693
        %v695 = vpop.xlane.xlu0 %694
        %v696 = vrcp.pop %v686
        %v697 = vrcp.pop %v689
        %v698 = vrcp.pop %v692
        %v699 = vrcp.pop %v695
        %v700 = vmul.f32 %v677, %v696
        %v701 = vmul.f32 %v679, %v697
        %v702 = vmul.f32 %v681, %v698
        %v703 = vmul.f32 %v683, %v699
        %v704 = vpack.c.bf16 %v700, %v700
        %v705 = vpack.c.bf16 %v701, %v701
        %v706 = vpack.c.bf16 %v702, %v702
        %v707 = vpack.c.bf16 %v703, %v703
        %v710 = vunpack.c.l.b16 %v704
        %v711 = vunpack.c.l.b16 %v705
        %v712 = vpack.c.b16 %v711, %v710
        %713 = vrot.lane.b32.xlu0 %v608, 64
        %v714 = vpop.permute.xlu0 %713
        %v717 = vsel %vm659, %v712, 0
        %719 = vmatpush.bf16.msra.mxu0 0
        %720 = vmatpush.bf16.msra.mxu0 0
        %721 = vmatpush.bf16.msra.mxu0 0
        %722 = vmatpush.bf16.msra.mxu0 0
        %723 = vmatpush.bf16.msra.mxu0 0
        %724 = vmatpush.bf16.msra.mxu0 0
        %725 = vmatpush.bf16.msra.mxu0 0
        %726 = vmatpush.bf16.msra.mxu0 %v714
        %727 = vmatmul.bf16.gmra.mxu0 %v717
        %v728 = vpop.f32.mrf.mxu0
        %v729 = vadd.f32 0.0, %v728
        %v730 = vpop.f32.mrf.mxu0
        %v731 = vadd.f32 0.0, %v730
        %732 = vdwg.mxu0
        %v735 = vunpack.c.l.b16 %v706
        %v736 = vunpack.c.l.b16 %v707
        %v737 = vpack.c.b16 %v736, %v735
        %738 = vrot.lane.b32.xlu0 %v636, 64
        %v739 = vpop.permute.xlu0 %738
        %v742 = vsel %vm659, %v737, 0
        %744 = vmatpush.bf16.msra.mxu0 0
        %745 = vmatpush.bf16.msra.mxu0 0
        %746 = vmatpush.bf16.msra.mxu0 0
        %747 = vmatpush.bf16.msra.mxu0 0
        %748 = vmatpush.bf16.msra.mxu0 0
        %749 = vmatpush.bf16.msra.mxu0 0
        %750 = vmatpush.bf16.msra.mxu0 0
        %751 = vmatpush.bf16.msra.mxu0 %v739
        %752 = vmatmul.bf16.gmra.mxu0 %v742
        %v753 = vpop.f32.mrf.mxu0
        %v754 = vadd.f32 0.0, %v753
        %v755 = vpop.f32.mrf.mxu0
        %v756 = vadd.f32 0.0, %v755
        %757 = vdwg.mxu0
        %758 = vrot.lane.b32.xlu0 %v608, 120
        %v759 = vpop.permute.xlu0 %758
        %760 = vrot.lane.b32.xlu0 %v608, 88
        %v761 = vpop.permute.xlu0 %760
        %v763 = vsel %vm611, %v759, 0
        %v766 = vsel %vm611, %v761, 0
        %768 = vmatpush.bf16.xpose.msra.mxu0 0
        %769 = vmatpush.bf16.xpose.msra.mxu0 0
        %770 = vmatpush.bf16.xpose.msra.mxu0 0
        %771 = vmatpush.bf16.xpose.msra.mxu0 0
        %772 = vmatpush.bf16.xpose.msra.mxu0 0
        %773 = vmatpush.bf16.xpose.msra.mxu0 0
        %774 = vmatpush.bf16.xpose.msra.mxu0 0
        %775 = vmatpush.bf16.xpose.msra.mxu0 %v766
        %776 = vmatmul.bf16.gmra.mxu0 %v763
        %v777 = vpop.f32.mrf.mxu0
        %v778 = vadd.f32 0.0, %v777
        %v779 = vpop.f32.mrf.mxu0
        %v780 = vadd.f32 0.0, %v779
        %781 = vdwg.mxu0
        %782 = vrot.lane.b32.xlu0 %v636, 120
        %v783 = vpop.permute.xlu0 %782
        %784 = vrot.lane.b32.xlu0 %v636, 88
        %v785 = vpop.permute.xlu0 %784
        %v787 = vsel %vm611, %v783, 0
        %v790 = vsel %vm611, %v785, 0
        %792 = vmatpush.bf16.xpose.msra.mxu0 0
        %793 = vmatpush.bf16.xpose.msra.mxu0 0
        %794 = vmatpush.bf16.xpose.msra.mxu0 0
        %795 = vmatpush.bf16.xpose.msra.mxu0 0
        %796 = vmatpush.bf16.xpose.msra.mxu0 0
        %797 = vmatpush.bf16.xpose.msra.mxu0 0
        %798 = vmatpush.bf16.xpose.msra.mxu0 0
        %799 = vmatpush.bf16.xpose.msra.mxu0 %v790
        %800 = vmatmul.bf16.gmra.mxu0 %v787
        %v801 = vpop.f32.mrf.mxu0
        %v802 = vadd.f32 0.0, %v801
        %v803 = vpop.f32.mrf.mxu0
        %v804 = vadd.f32 0.0, %v803
        %805 = vdwg.mxu0
        %v806 = vsel %vm659, %v778, -inf
        %807 = vmax.xlane.f32.xlu0 %v806
        %v808 = vpop.xlane.xlu0 %807
        %v809 = vsel %vm659, %v780, -inf
        %810 = vmax.xlane.f32.xlu0 %v809
        %v811 = vpop.xlane.xlu0 %810
        %v812 = vsel %vm659, %v802, -inf
        %813 = vmax.xlane.f32.xlu0 %v812
        %v814 = vpop.xlane.xlu0 %813
        %v815 = vsel %vm659, %v804, -inf
        %816 = vmax.xlane.f32.xlu0 %v815
        %v817 = vpop.xlane.xlu0 %816
        %v818 = vsub.f32 %v778, %v808
        %v819 = vsub.f32 %v780, %v811
        %v820 = vsub.f32 %v802, %v814
        %v821 = vsub.f32 %v804, %v817
        %v822 = vmul.f32 %v818, 1.442695
        %v823 = vpow.pop %v822
        %v824 = vmul.f32 %v819, 1.442695
        %v825 = vpow.pop %v824
        %v826 = vmul.f32 %v820, 1.442695
        %v827 = vpow.pop %v826
        %v828 = vmul.f32 %v821, 1.442695
        %v829 = vpow.pop %v828
        %v830 = vsel %vm659, %v823, 0.0
        %831 = vadd.xlane.f32.xlu0 %v830
        %v832 = vpop.xlane.xlu0 %831
        %v833 = vsel %vm659, %v825, 0.0
        %834 = vadd.xlane.f32.xlu0 %v833
        %v835 = vpop.xlane.xlu0 %834
        %v836 = vsel %vm659, %v827, 0.0
        %837 = vadd.xlane.f32.xlu0 %v836
        %v838 = vpop.xlane.xlu0 %837
        %v839 = vsel %vm659, %v829, 0.0
        %840 = vadd.xlane.f32.xlu0 %v839
        %v841 = vpop.xlane.xlu0 %840
        %v842 = vrcp.pop %v832
        %v843 = vrcp.pop %v835
        %v844 = vrcp.pop %v838
        %v845 = vrcp.pop %v841
        %v846 = vmul.f32 %v823, %v842
        %v847 = vmul.f32 %v825, %v843
        %v848 = vmul.f32 %v827, %v844
        %v849 = vmul.f32 %v829, %v845
        %v850 = vpack.c.bf16 %v846, %v846
        %v851 = vpack.c.bf16 %v847, %v847
        %v852 = vpack.c.bf16 %v848, %v848
        %v853 = vpack.c.bf16 %v849, %v849
        %v856 = vunpack.c.l.b16 %v850
        %v857 = vunpack.c.l.b16 %v851
        %v858 = vpack.c.b16 %v857, %v856
        %859 = vrot.lane.b32.xlu0 %v608, 56
        %v860 = vpop.permute.xlu0 %859
        %v863 = vsel %vm659, %v858, 0
        %865 = vmatpush.bf16.msra.mxu0 0
        %866 = vmatpush.bf16.msra.mxu0 0
        %867 = vmatpush.bf16.msra.mxu0 0
        %868 = vmatpush.bf16.msra.mxu0 0
        %869 = vmatpush.bf16.msra.mxu0 0
        %870 = vmatpush.bf16.msra.mxu0 0
        %871 = vmatpush.bf16.msra.mxu0 0
        %872 = vmatpush.bf16.msra.mxu0 %v860
        %873 = vmatmul.bf16.gmra.mxu0 %v863
        %v874 = vpop.f32.mrf.mxu0
        %v875 = vadd.f32 0.0, %v874
        %v876 = vpop.f32.mrf.mxu0
        %v877 = vadd.f32 0.0, %v876
        %878 = vdwg.mxu0
        %v881 = vunpack.c.l.b16 %v852
        %v882 = vunpack.c.l.b16 %v853
        %v883 = vpack.c.b16 %v882, %v881
        %884 = vrot.lane.b32.xlu0 %v636, 56
        %v885 = vpop.permute.xlu0 %884
        %v888 = vsel %vm659, %v883, 0
        %890 = vmatpush.bf16.msra.mxu0 0
        %891 = vmatpush.bf16.msra.mxu0 0
        %892 = vmatpush.bf16.msra.mxu0 0
        %893 = vmatpush.bf16.msra.mxu0 0
        %894 = vmatpush.bf16.msra.mxu0 0
        %895 = vmatpush.bf16.msra.mxu0 0
        %896 = vmatpush.bf16.msra.mxu0 0
        %897 = vmatpush.bf16.msra.mxu0 %v885
        %898 = vmatmul.bf16.gmra.mxu0 %v888
        %v899 = vpop.f32.mrf.mxu0
        %v900 = vadd.f32 0.0, %v899
        %v901 = vpop.f32.mrf.mxu0
        %v902 = vadd.f32 0.0, %v901
        %903 = vdwg.mxu0
        %904 = vrot.lane.b32.xlu0 %v608, 112
        %v905 = vpop.permute.xlu0 %904
        %906 = vrot.lane.b32.xlu0 %v608, 80
        %v907 = vpop.permute.xlu0 %906
        %v909 = vsel %vm611, %v905, 0
        %v912 = vsel %vm611, %v907, 0
        %914 = vmatpush.bf16.xpose.msra.mxu0 0
        %915 = vmatpush.bf16.xpose.msra.mxu0 0
        %916 = vmatpush.bf16.xpose.msra.mxu0 0
        %917 = vmatpush.bf16.xpose.msra.mxu0 0
        %918 = vmatpush.bf16.xpose.msra.mxu0 0
        %919 = vmatpush.bf16.xpose.msra.mxu0 0
        %920 = vmatpush.bf16.xpose.msra.mxu0 0
        %921 = vmatpush.bf16.xpose.msra.mxu0 %v912
        %922 = vmatmul.bf16.gmra.mxu0 %v909
        %v923 = vpop.f32.mrf.mxu0
        %v924 = vadd.f32 0.0, %v923
        %v925 = vpop.f32.mrf.mxu0
        %v926 = vadd.f32 0.0, %v925
        %927 = vdwg.mxu0
        %928 = vrot.lane.b32.xlu0 %v636, 112
        %v929 = vpop.permute.xlu0 %928
        %930 = vrot.lane.b32.xlu0 %v636, 80
        %v931 = vpop.permute.xlu0 %930
        %v933 = vsel %vm611, %v929, 0
        %v936 = vsel %vm611, %v931, 0
        %938 = vmatpush.bf16.xpose.msra.mxu0 0
        %939 = vmatpush.bf16.xpose.msra.mxu0 0
        %940 = vmatpush.bf16.xpose.msra.mxu0 0
        %941 = vmatpush.bf16.xpose.msra.mxu0 0
        %942 = vmatpush.bf16.xpose.msra.mxu0 0
        %943 = vmatpush.bf16.xpose.msra.mxu0 0
        %944 = vmatpush.bf16.xpose.msra.mxu0 0
        %945 = vmatpush.bf16.xpose.msra.mxu0 %v936
        %946 = vmatmul.bf16.gmra.mxu0 %v933
        %v947 = vpop.f32.mrf.mxu0
        %v948 = vadd.f32 0.0, %v947
        %v949 = vpop.f32.mrf.mxu0
        %v950 = vadd.f32 0.0, %v949
        %951 = vdwg.mxu0
        %v952 = vsel %vm659, %v924, -inf
        %953 = vmax.xlane.f32.xlu0 %v952
        %v954 = vpop.xlane.xlu0 %953
        %v955 = vsel %vm659, %v926, -inf
        %956 = vmax.xlane.f32.xlu0 %v955
        %v957 = vpop.xlane.xlu0 %956
        %v958 = vsel %vm659, %v948, -inf
        %959 = vmax.xlane.f32.xlu0 %v958
        %v960 = vpop.xlane.xlu0 %959
        %v961 = vsel %vm659, %v950, -inf
        %962 = vmax.xlane.f32.xlu0 %v961
        %v963 = vpop.xlane.xlu0 %962
        %v964 = vsub.f32 %v924, %v954
        %v965 = vsub.f32 %v926, %v957
        %v966 = vsub.f32 %v948, %v960
        %v967 = vsub.f32 %v950, %v963
        %v968 = vmul.f32 %v964, 1.442695
        %v969 = vpow.pop %v968
        %v970 = vmul.f32 %v965, 1.442695
        %v971 = vpow.pop %v970
        %v972 = vmul.f32 %v966, 1.442695
        %v973 = vpow.pop %v972
        %v974 = vmul.f32 %v967, 1.442695
        %v975 = vpow.pop %v974
        %v976 = vsel %vm659, %v969, 0.0
        %977 = vadd.xlane.f32.xlu0 %v976
        %v978 = vpop.xlane.xlu0 %977
        %v979 = vsel %vm659, %v971, 0.0
        %980 = vadd.xlane.f32.xlu0 %v979
        %v981 = vpop.xlane.xlu0 %980
        %v982 = vsel %vm659, %v973, 0.0
        %983 = vadd.xlane.f32.xlu0 %v982
        %v984 = vpop.xlane.xlu0 %983
        %v985 = vsel %vm659, %v975, 0.0
        %986 = vadd.xlane.f32.xlu0 %v985
        %v987 = vpop.xlane.xlu0 %986
        %v988 = vrcp.pop %v978
        %v989 = vrcp.pop %v981
        %v990 = vrcp.pop %v984
        %v991 = vrcp.pop %v987
        %v992 = vmul.f32 %v969, %v988
        %v993 = vmul.f32 %v971, %v989
        %v994 = vmul.f32 %v973, %v990
        %v995 = vmul.f32 %v975, %v991
        %v996 = vpack.c.bf16 %v992, %v992
        %v997 = vpack.c.bf16 %v993, %v993
        %v998 = vpack.c.bf16 %v994, %v994
        %v999 = vpack.c.bf16 %v995, %v995
        %v1002 = vunpack.c.l.b16 %v996
        %v1003 = vunpack.c.l.b16 %v997
        %v1004 = vpack.c.b16 %v1003, %v1002
        %1005 = vrot.lane.b32.xlu0 %v608, 48
        %v1006 = vpop.permute.xlu0 %1005
        %v1009 = vsel %vm659, %v1004, 0
        %1011 = vmatpush.bf16.msra.mxu0 0
        %1012 = vmatpush.bf16.msra.mxu0 0
        %1013 = vmatpush.bf16.msra.mxu0 0
        %1014 = vmatpush.bf16.msra.mxu0 0
        %1015 = vmatpush.bf16.msra.mxu0 0
        %1016 = vmatpush.bf16.msra.mxu0 0
        %1017 = vmatpush.bf16.msra.mxu0 0
        %1018 = vmatpush.bf16.msra.mxu0 %v1006
        %1019 = vmatmul.bf16.gmra.mxu0 %v1009
        %v1020 = vpop.f32.mrf.mxu0
        %v1021 = vadd.f32 0.0, %v1020
        %v1022 = vpop.f32.mrf.mxu0
        %v1023 = vadd.f32 0.0, %v1022
        %1024 = vdwg.mxu0
        %v1027 = vunpack.c.l.b16 %v998
        %v1028 = vunpack.c.l.b16 %v999
        %v1029 = vpack.c.b16 %v1028, %v1027
        %1030 = vrot.lane.b32.xlu0 %v636, 48
        %v1031 = vpop.permute.xlu0 %1030
        %v1034 = vsel %vm659, %v1029, 0
        %1036 = vmatpush.bf16.msra.mxu0 0
        %1037 = vmatpush.bf16.msra.mxu0 0
        %1038 = vmatpush.bf16.msra.mxu0 0
        %1039 = vmatpush.bf16.msra.mxu0 0
        %1040 = vmatpush.bf16.msra.mxu0 0
        %1041 = vmatpush.bf16.msra.mxu0 0
        %1042 = vmatpush.bf16.msra.mxu0 0
        %1043 = vmatpush.bf16.msra.mxu0 %v1031
        %1044 = vmatmul.bf16.gmra.mxu0 %v1034
        %v1045 = vpop.f32.mrf.mxu0
        %v1046 = vadd.f32 0.0, %v1045
        %v1047 = vpop.f32.mrf.mxu0
        %v1048 = vadd.f32 0.0, %v1047
        %1049 = vdwg.mxu0
        %1050 = vrot.lane.b32.xlu0 %v608, 104
        %v1051 = vpop.permute.xlu0 %1050
        %1052 = vrot.lane.b32.xlu0 %v608, 72
        %v1053 = vpop.permute.xlu0 %1052
        %v1055 = vsel %vm611, %v1051, 0
        %v1058 = vsel %vm611, %v1053, 0
        %1060 = vmatpush.bf16.xpose.msra.mxu0 0
        %1061 = vmatpush.bf16.xpose.msra.mxu0 0
        %1062 = vmatpush.bf16.xpose.msra.mxu0 0
        %1063 = vmatpush.bf16.xpose.msra.mxu0 0
        %1064 = vmatpush.bf16.xpose.msra.mxu0 0
        %1065 = vmatpush.bf16.xpose.msra.mxu0 0
        %1066 = vmatpush.bf16.xpose.msra.mxu0 0
        %1067 = vmatpush.bf16.xpose.msra.mxu0 %v1058
        %1068 = vmatmul.bf16.gmra.mxu0 %v1055
        %v1069 = vpop.f32.mrf.mxu0
        %v1070 = vadd.f32 0.0, %v1069
        %v1071 = vpop.f32.mrf.mxu0
        %v1072 = vadd.f32 0.0, %v1071
        %1073 = vdwg.mxu0
        %1074 = vrot.lane.b32.xlu0 %v636, 104
        %v1075 = vpop.permute.xlu0 %1074
        %1076 = vrot.lane.b32.xlu0 %v636, 72
        %v1077 = vpop.permute.xlu0 %1076
        %v1079 = vsel %vm611, %v1075, 0
        %v1082 = vsel %vm611, %v1077, 0
        %1084 = vmatpush.bf16.xpose.msra.mxu0 0
        %1085 = vmatpush.bf16.xpose.msra.mxu0 0
        %1086 = vmatpush.bf16.xpose.msra.mxu0 0
        %1087 = vmatpush.bf16.xpose.msra.mxu0 0
        %1088 = vmatpush.bf16.xpose.msra.mxu0 0
        %1089 = vmatpush.bf16.xpose.msra.mxu0 0
        %1090 = vmatpush.bf16.xpose.msra.mxu0 0
        %1091 = vmatpush.bf16.xpose.msra.mxu0 %v1082
        %1092 = vmatmul.bf16.gmra.mxu0 %v1079
        %v1093 = vpop.f32.mrf.mxu0
        %v1094 = vadd.f32 0.0, %v1093
        %v1095 = vpop.f32.mrf.mxu0
        %v1096 = vadd.f32 0.0, %v1095
        %1097 = vdwg.mxu0
        %v1098 = vsel %vm659, %v1070, -inf
        %1099 = vmax.xlane.f32.xlu0 %v1098
        %v1100 = vpop.xlane.xlu0 %1099
        %v1101 = vsel %vm659, %v1072, -inf
        %1102 = vmax.xlane.f32.xlu0 %v1101
        %v1103 = vpop.xlane.xlu0 %1102
        %v1104 = vsel %vm659, %v1094, -inf
        %1105 = vmax.xlane.f32.xlu0 %v1104
        %v1106 = vpop.xlane.xlu0 %1105
        %v1107 = vsel %vm659, %v1096, -inf
        %1108 = vmax.xlane.f32.xlu0 %v1107
        %v1109 = vpop.xlane.xlu0 %1108
        %v1110 = vsub.f32 %v1070, %v1100
        %v1111 = vsub.f32 %v1072, %v1103
        %v1112 = vsub.f32 %v1094, %v1106
        %v1113 = vsub.f32 %v1096, %v1109
        %v1114 = vmul.f32 %v1110, 1.442695
        %v1115 = vpow.pop %v1114
        %v1116 = vmul.f32 %v1111, 1.442695
        %v1117 = vpow.pop %v1116
        %v1118 = vmul.f32 %v1112, 1.442695
        %v1119 = vpow.pop %v1118
        %v1120 = vmul.f32 %v1113, 1.442695
        %v1121 = vpow.pop %v1120
        %v1122 = vsel %vm659, %v1115, 0.0
        %1123 = vadd.xlane.f32.xlu0 %v1122
        %v1124 = vpop.xlane.xlu0 %1123
        %v1125 = vsel %vm659, %v1117, 0.0
        %1126 = vadd.xlane.f32.xlu0 %v1125
        %v1127 = vpop.xlane.xlu0 %1126
        %v1128 = vsel %vm659, %v1119, 0.0
        %1129 = vadd.xlane.f32.xlu0 %v1128
        %v1130 = vpop.xlane.xlu0 %1129
        %v1131 = vsel %vm659, %v1121, 0.0
        %1132 = vadd.xlane.f32.xlu0 %v1131
        %v1133 = vpop.xlane.xlu0 %1132
        %v1134 = vrcp.pop %v1124
        %v1135 = vrcp.pop %v1127
        %v1136 = vrcp.pop %v1130
        %v1137 = vrcp.pop %v1133
        %v1138 = vmul.f32 %v1115, %v1134
        %v1139 = vmul.f32 %v1117, %v1135
        %v1140 = vmul.f32 %v1119, %v1136
        %v1141 = vmul.f32 %v1121, %v1137
        %v1142 = vpack.c.bf16 %v1138, %v1138
        %v1143 = vpack.c.bf16 %v1139, %v1139
        %v1144 = vpack.c.bf16 %v1140, %v1140
        %v1145 = vpack.c.bf16 %v1141, %v1141
        %v1148 = vunpack.c.l.b16 %v1142
        %v1149 = vunpack.c.l.b16 %v1143
        %v1150 = vpack.c.b16 %v1149, %v1148
        %1151 = vrot.lane.b32.xlu0 %v608, 40
        %v1152 = vpop.permute.xlu0 %1151
        %v1155 = vsel %vm659, %v1150, 0
        %1157 = vmatpush.bf16.msra.mxu0 0
        %1158 = vmatpush.bf16.msra.mxu0 0
        %1159 = vmatpush.bf16.msra.mxu0 0
        %1160 = vmatpush.bf16.msra.mxu0 0
        %1161 = vmatpush.bf16.msra.mxu0 0
        %1162 = vmatpush.bf16.msra.mxu0 0
        %1163 = vmatpush.bf16.msra.mxu0 0
        %1164 = vmatpush.bf16.msra.mxu0 %v1152
        %1165 = vmatmul.bf16.gmra.mxu0 %v1155
        %v1166 = vpop.f32.mrf.mxu0
        %v1167 = vadd.f32 0.0, %v1166
        %v1168 = vpop.f32.mrf.mxu0
        %v1169 = vadd.f32 0.0, %v1168
        %1170 = vdwg.mxu0
        %v1173 = vunpack.c.l.b16 %v1144
        %v1174 = vunpack.c.l.b16 %v1145
        %v1175 = vpack.c.b16 %v1174, %v1173
        %1176 = vrot.lane.b32.xlu0 %v636, 40
        %v1177 = vpop.permute.xlu0 %1176
        %v1180 = vsel %vm659, %v1175, 0
        %1182 = vmatpush.bf16.msra.mxu0 0
        %1183 = vmatpush.bf16.msra.mxu0 0
        %1184 = vmatpush.bf16.msra.mxu0 0
        %1185 = vmatpush.bf16.msra.mxu0 0
        %1186 = vmatpush.bf16.msra.mxu0 0
        %1187 = vmatpush.bf16.msra.mxu0 0
        %1188 = vmatpush.bf16.msra.mxu0 0
        %1189 = vmatpush.bf16.msra.mxu0 %v1177
        %1190 = vmatmul.bf16.gmra.mxu0 %v1180
        %v1191 = vpop.f32.mrf.mxu0
        %v1192 = vadd.f32 0.0, %v1191
        %v1193 = vpop.f32.mrf.mxu0
        %v1194 = vadd.f32 0.0, %v1193
        %1195 = vdwg.mxu0
        %1200 = vrot.lane.b32.xlu0 %v875, 8
        %v1201 = vpop.permute.xlu0 %1200
        %1202 = vrot.lane.b32.xlu0 %v877, 8
        %v1203 = vpop.permute.xlu0 %1202
        %1204 = vrot.lane.b32.xlu0 %v900, 8
        %v1205 = vpop.permute.xlu0 %1204
        %1206 = vrot.lane.b32.xlu0 %v902, 8
        %v1207 = vpop.permute.xlu0 %1206
        %1216 = vrot.lane.b32.xlu0 %v1021, 16
        %v1217 = vpop.permute.xlu0 %1216
        %1218 = vrot.lane.b32.xlu0 %v1023, 16
        %v1219 = vpop.permute.xlu0 %1218
        %1220 = vrot.lane.b32.xlu0 %v1046, 16
        %v1221 = vpop.permute.xlu0 %1220
        %1222 = vrot.lane.b32.xlu0 %v1048, 16
        %v1223 = vpop.permute.xlu0 %1222
        %1232 = vrot.lane.b32.xlu0 %v1167, 24
        %v1233 = vpop.permute.xlu0 %1232
        %1234 = vrot.lane.b32.xlu0 %v1169, 24
        %v1235 = vpop.permute.xlu0 %1234
        %1236 = vrot.lane.b32.xlu0 %v1192, 24
        %v1237 = vpop.permute.xlu0 %1236
        %1238 = vrot.lane.b32.xlu0 %v1194, 24
        %v1239 = vpop.permute.xlu0 %1238
        %v1244 = vsel %vm611, %v729, %v1201
        %v1245 = vsel %vm611, %v731, %v1203
        %v1246 = vsel %vm611, %v754, %v1205
        %v1247 = vsel %vm611, %v756, %v1207
        %v1248 = vsel %vm659, %v1244, %v1217
        %v1249 = vsel %vm659, %v1245, %v1219
        %v1250 = vsel %vm659, %v1246, %v1221
        %v1251 = vsel %vm659, %v1247, %v1223
        %vm1252 = vcmask 195584
        %v1253 = vsel %vm1252, %v1248, %v1233
        %v1254 = vsel %vm1252, %v1249, %v1235
        %v1255 = vsel %vm1252, %v1250, %v1237
        %v1256 = vsel %vm1252, %v1251, %v1239
        %v1257 = vld [vmem:[%s479] sm:$0xf]
        %v1258 = vld [vmem:[%s479 + $0x4] sm:$0xf]
        %v1259 = vld [vmem:[%s479 + $0x8] sm:$0xf]
        %v1260 = vld [vmem:[%s479 + $0xc] sm:$0xf]
        %v1261 = vpack.c.bf16 %v1254, %v1253
        %v1262 = vpack.c.bf16 %v1256, %v1255
        %v1263 = vld [vmem:[%s415 + $0x1] sm:$0x1]
        %v1264 = vperm.slane %v1263, 0
        %v1269 = vunpack.c.l.b16 %v1257
        %v1270 = vunpack.c.l.b16 %v1258
        %v1271 = vunpack.c.l.b16 %v1259
        %v1272 = vunpack.c.l.b16 %v1260
        %v1273 = vpack.c.b16 %v1270, %v1269
        %v1274 = vpack.c.b16 %v1272, %v1271
        %v1278 = vsel %vm574, %v1261, 0
        %v1281 = vsel %vm574, %v1262, 0
        %1283 = vmatpush.bf16.msra.mxu0 0
        %1284 = vmatpush.bf16.msra.mxu0 0
        %1285 = vmatpush.bf16.msra.mxu0 0
        %1286 = vmatpush.bf16.msra.mxu0 0
        %1287 = vmatpush.bf16.msra.mxu0 0
        %1288 = vmatpush.bf16.msra.mxu0 0
        %1289 = vmatpush.bf16.msra.mxu0 %v1274
        %1290 = vmatpush.bf16.msra.mxu0 %v1273
        %1291 = vmatmul.bf16.gmra.mxu0 %v1278
        %v1292 = vpop.f32.mrf.mxu0
        %v1293 = vadd.f32 %v1264, %v1292
        %v1294 = vpop.f32.mrf.mxu0
        %v1295 = vadd.f32 %v1264, %v1294
        %1296 = vmatmul.bf16.gmra.mxu0 %v1281
        %v1297 = vpop.f32.mrf.mxu0
        %v1298 = vadd.f32 %v1264, %v1297
        %v1299 = vpop.f32.mrf.mxu0
        %v1300 = vadd.f32 %v1264, %v1299
        %1301 = vdwg.mxu0
        %v1302 = vadd.f32 %v550, %v1293
        %v1303 = vadd.f32 %v551, %v1295
        %v1304 = vadd.f32 %v552, %v1298
        %v1305 = vadd.f32 %v553, %v1300
        %v1306 = vld [vmem:[%s415 + $0x4] sm:$0x1]
        %v1307 = vld [vmem:[%s415 + $0x5] sm:$0x1]
        %v1308 = vsel %vm574, %v1302, 0.0
        %1309 = vadd.xlane.f32.xlu0 %v1308
        %v1310 = vpop.xlane.xlu0 %1309
        %v1311 = vsel %vm574, %v1303, 0.0
        %1312 = vadd.xlane.f32.xlu0 %v1311
        %v1313 = vpop.xlane.xlu0 %1312
        %v1314 = vsel %vm574, %v1304, 0.0
        %1315 = vadd.xlane.f32.xlu0 %v1314
        %v1316 = vpop.xlane.xlu0 %1315
        %v1317 = vsel %vm574, %v1305, 0.0
        %1318 = vadd.xlane.f32.xlu0 %v1317
        %v1319 = vpop.xlane.xlu0 %1318
        %v1320 = vrcp.pop 32.0
        %v1321 = vmul.f32 32.0, %v1320
        %v1322 = vsub.f32 1.0, %v1321
        %v1323 = vmul.f32 %v1320, %v1322
        %v1324 = vadd.f32 %v1320, %v1323
        %vm1325 = vweird.f32 %v1320
        %v1326 = vsel %vm1325, %v1320, %v1324
        %v1327 = vmul.f32 %v1310, %v1326
        %v1328 = vmul.f32 %v1313, %v1326
        %v1329 = vmul.f32 %v1316, %v1326
        %v1330 = vmul.f32 %v1319, %v1326
        %v1331 = vsub.f32 %v1302, %v1327
        %v1332 = vsub.f32 %v1303, %v1328
        %v1333 = vsub.f32 %v1304, %v1329
        %v1334 = vsub.f32 %v1305, %v1330
        %v1335 = vmul.f32 %v1331, %v1331
        %v1336 = vmul.f32 %v1332, %v1332
        %v1337 = vmul.f32 %v1333, %v1333
        %v1338 = vmul.f32 %v1334, %v1334
        %v1339 = vsel %vm574, %v1335, 0.0
        %1340 = vadd.xlane.f32.xlu0 %v1339
        %v1341 = vpop.xlane.xlu0 %1340
        %v1342 = vsel %vm574, %v1336, 0.0
        %1343 = vadd.xlane.f32.xlu0 %v1342
        %v1344 = vpop.xlane.xlu0 %1343
        %v1345 = vsel %vm574, %v1337, 0.0
        %1346 = vadd.xlane.f32.xlu0 %v1345
        %v1347 = vpop.xlane.xlu0 %1346
        %v1348 = vsel %vm574, %v1338, 0.0
        %1349 = vadd.xlane.f32.xlu0 %v1348
        %v1350 = vpop.xlane.xlu0 %1349
        %v1351 = vmul.f32 %v1341, %v1326
        %v1352 = vmul.f32 %v1344, %v1326
        %v1353 = vmul.f32 %v1347, %v1326
        %v1354 = vmul.f32 %v1350, %v1326
        %v1355 = vadd.f32 %v1351, 1e-05
        %v1356 = vadd.f32 %v1352, 1e-05
        %v1357 = vadd.f32 %v1353, 1e-05
        %v1358 = vadd.f32 %v1354, 1e-05
        %v1359 = vrsqrt.pop %v1355
        %v1360 = vmul.f32 %v1359, %v1355
        %v1361 = vmul.f32 %v1360, %v1359
        %v1362 = vmul.f32 0.5, %v1361
        %v1363 = vsub.f32 1.5, %v1362
        %v1364 = vmul.f32 %v1359, %v1363
        %vm1365 = vweird.f32 %v1355
        %vm1366 = vweird.f32 %v1359
        %vm1367 = vmor %vm1365, %vm1366
        %v1368 = vsel %vm1367, %v1359, %v1364
        %v1369 = vrsqrt.pop %v1356
        %v1370 = vmul.f32 %v1369, %v1356
        %v1371 = vmul.f32 %v1370, %v1369
        %v1372 = vmul.f32 0.5, %v1371
        %v1373 = vsub.f32 1.5, %v1372
        %v1374 = vmul.f32 %v1369, %v1373
        %vm1375 = vweird.f32 %v1356
        %vm1376 = vweird.f32 %v1369
        %vm1377 = vmor %vm1375, %vm1376
        %v1378 = vsel %vm1377, %v1369, %v1374
        %v1379 = vrsqrt.pop %v1357
        %v1380 = vmul.f32 %v1379, %v1357
        %v1381 = vmul.f32 %v1380, %v1379
        %v1382 = vmul.f32 0.5, %v1381
        %v1383 = vsub.f32 1.5, %v1382
        %v1384 = vmul.f32 %v1379, %v1383
        %vm1385 = vweird.f32 %v1357
        %vm1386 = vweird.f32 %v1379
        %vm1387 = vmor %vm1385, %vm1386
        %v1388 = vsel %vm1387, %v1379, %v1384
        %v1389 = vrsqrt.pop %v1358
        %v1390 = vmul.f32 %v1389, %v1358
        %v1391 = vmul.f32 %v1390, %v1389
        %v1392 = vmul.f32 0.5, %v1391
        %v1393 = vsub.f32 1.5, %v1392
        %v1394 = vmul.f32 %v1389, %v1393
        %vm1395 = vweird.f32 %v1358
        %vm1396 = vweird.f32 %v1389
        %vm1397 = vmor %vm1395, %vm1396
        %v1398 = vsel %vm1397, %v1389, %v1394
        %v1399 = vmul.f32 %v1331, %v1368
        %v1400 = vmul.f32 %v1332, %v1378
        %v1401 = vmul.f32 %v1333, %v1388
        %v1402 = vmul.f32 %v1334, %v1398
        %v1403 = vperm.slane %v1306, 0
        %v1404 = vmul.f32 %v1399, %v1403
        %v1405 = vmul.f32 %v1400, %v1403
        %v1406 = vmul.f32 %v1401, %v1403
        %v1407 = vmul.f32 %v1402, %v1403
        %v1408 = vperm.slane %v1307, 0
        %v1409 = vadd.f32 %v1404, %v1408
        %v1410 = vadd.f32 %v1405, %v1408
        %v1411 = vadd.f32 %v1406, %v1408
        %v1412 = vadd.f32 %v1407, %v1408
        %v1413 = vld [vmem:[%s484] sm:$0xf]
        %v1414 = vld [vmem:[%s484 + $0x4] sm:$0xf]
        %v1415 = vld [vmem:[%s484 + $0x8] sm:$0xf]
        %v1416 = vld [vmem:[%s484 + $0xc] sm:$0xf]
        %v1417 = vpack.c.bf16 %v1410, %v1409
        %v1418 = vpack.c.bf16 %v1412, %v1411
        %v1419 = vld [vmem:[%s415 + $0x2] sm:$0x1]
        %v1420 = vperm.slane %v1419, 0
        %v1425 = vunpack.c.l.b16 %v1413
        %v1426 = vunpack.c.l.b16 %v1414
        %v1427 = vunpack.c.l.b16 %v1415
        %v1428 = vunpack.c.l.b16 %v1416
        %v1429 = vpack.c.b16 %v1426, %v1425
        %v1430 = vpack.c.b16 %v1428, %v1427
        %v1434 = vsel %vm574, %v1417, 0
        %v1437 = vsel %vm574, %v1418, 0
        %1439 = vmatpush.bf16.msra.mxu0 0
        %1440 = vmatpush.bf16.msra.mxu0 0
        %1441 = vmatpush.bf16.msra.mxu0 0
        %1442 = vmatpush.bf16.msra.mxu0 0
        %1443 = vmatpush.bf16.msra.mxu0 0
        %1444 = vmatpush.bf16.msra.mxu0 0
        %1445 = vmatpush.bf16.msra.mxu0 %v1430
        %1446 = vmatpush.bf16.msra.mxu0 %v1429
        %1447 = vmatmul.bf16.gmra.mxu0 %v1434
        %v1448 = vpop.f32.mrf.mxu0
        %v1449 = vadd.f32 %v1420, %v1448
        %v1450 = vpop.f32.mrf.mxu0
        %v1451 = vadd.f32 %v1420, %v1450
        %1452 = vmatmul.bf16.gmra.mxu0 %v1437
        %v1453 = vpop.f32.mrf.mxu0
        %v1454 = vadd.f32 %v1420, %v1453
        %v1455 = vpop.f32.mrf.mxu0
        %v1456 = vadd.f32 %v1420, %v1455
        %1457 = vdwg.mxu0
        %v1458 = vmax.f32 %v1449, 0.0
        %v1459 = vmax.f32 %v1451, 0.0
        %v1460 = vmax.f32 %v1454, 0.0
        %v1461 = vmax.f32 %v1456, 0.0
        %v1462 = vld [vmem:[%s489] sm:$0xf]
        %v1463 = vld [vmem:[%s489 + $0x4] sm:$0xf]
        %v1464 = vld [vmem:[%s489 + $0x8] sm:$0xf]
        %v1465 = vld [vmem:[%s489 + $0xc] sm:$0xf]
        %v1466 = vld [vmem:[%s489 + $0x10] sm:$0xf]
        %v1467 = vld [vmem:[%s489 + $0x14] sm:$0xf]
        %v1468 = vld [vmem:[%s489 + $0x18] sm:$0xf]
        %v1469 = vld [vmem:[%s489 + $0x1c] sm:$0xf]
        %v1470 = vpack.c.bf16 %v1459, %v1458
        %v1471 = vpack.c.bf16 %v1461, %v1460
        %v1472 = vld [vmem:[%s415 + $0x3] sm:$0x1]
        %v1473 = vperm.slane %v1472, 0
        %v1482 = vunpack.c.l.b16 %v1462
        %v1483 = vunpack.c.l.b16 %v1463
        %v1484 = vunpack.c.l.b16 %v1464
        %v1485 = vunpack.c.l.b16 %v1465
        %v1486 = vunpack.c.l.b16 %v1466
        %v1487 = vunpack.c.l.b16 %v1467
        %v1488 = vunpack.c.l.b16 %v1468
        %v1489 = vunpack.c.l.b16 %v1469
        %v1490 = vpack.c.b16 %v1483, %v1482
        %v1491 = vpack.c.b16 %v1485, %v1484
        %v1492 = vpack.c.b16 %v1487, %v1486
        %v1493 = vpack.c.b16 %v1489, %v1488
        %vm1498 = vcmask 523264
        %v1500 = vsel %vm1498, %v1470, 0
        %v1503 = vsel %vm1498, %v1471, 0
        %1505 = vmatpush.bf16.msra.mxu0 0
        %1506 = vmatpush.bf16.msra.mxu0 0
        %1507 = vmatpush.bf16.msra.mxu0 0
        %1508 = vmatpush.bf16.msra.mxu0 0
        %1509 = vmatpush.bf16.msra.mxu0 %v1493
        %1510 = vmatpush.bf16.msra.mxu0 %v1492
        %1511 = vmatpush.bf16.msra.mxu0 %v1491
        %1512 = vmatpush.bf16.msra.mxu0 %v1490
        %1513 = vmatmul.bf16.gmra.mxu0 %v1500
        %v1514 = vpop.f32.mrf.mxu0
        %v1515 = vadd.f32 %v1473, %v1514
        %v1516 = vpop.f32.mrf.mxu0
        %v1517 = vadd.f32 %v1473, %v1516
        %1518 = vmatmul.bf16.gmra.mxu0 %v1503
        %v1519 = vpop.f32.mrf.mxu0
        %v1520 = vadd.f32 %v1473, %v1519
        %v1521 = vpop.f32.mrf.mxu0
        %v1522 = vadd.f32 %v1473, %v1521
        %1523 = vdwg.mxu0
        %v1524 = vadd.f32 %v1409, %v1515
        %v1525 = vadd.f32 %v1410, %v1517
        %v1526 = vadd.f32 %v1411, %v1520
        %v1527 = vadd.f32 %v1412, %v1522
        %v1528 = vld [vmem:[%s415 + $0x6] sm:$0x1]
        %v1529 = vld [vmem:[%s415 + $0x7] sm:$0x1]
        %v1530 = vsel %vm574, %v1524, 0.0
        %1531 = vadd.xlane.f32.xlu0 %v1530
        %v1532 = vpop.xlane.xlu0 %1531
        %v1533 = vsel %vm574, %v1525, 0.0
        %1534 = vadd.xlane.f32.xlu0 %v1533
        %v1535 = vpop.xlane.xlu0 %1534
        %v1536 = vsel %vm574, %v1526, 0.0
        %1537 = vadd.xlane.f32.xlu0 %v1536
        %v1538 = vpop.xlane.xlu0 %1537
        %v1539 = vsel %vm574, %v1527, 0.0
        %1540 = vadd.xlane.f32.xlu0 %v1539
        %v1541 = vpop.xlane.xlu0 %1540
        %v1542 = vmul.f32 %v1532, %v1326
        %v1543 = vmul.f32 %v1535, %v1326
        %v1544 = vmul.f32 %v1538, %v1326
        %v1545 = vmul.f32 %v1541, %v1326
        %v1546 = vsub.f32 %v1524, %v1542
        %v1547 = vsub.f32 %v1525, %v1543
        %v1548 = vsub.f32 %v1526, %v1544
        %v1549 = vsub.f32 %v1527, %v1545
        %v1550 = vmul.f32 %v1546, %v1546
        %v1551 = vmul.f32 %v1547, %v1547
        %v1552 = vmul.f32 %v1548, %v1548
        %v1553 = vmul.f32 %v1549, %v1549
        %v1554 = vsel %vm574, %v1550, 0.0
        %1555 = vadd.xlane.f32.xlu0 %v1554
        %v1556 = vpop.xlane.xlu0 %1555
        %v1557 = vsel %vm574, %v1551, 0.0
        %1558 = vadd.xlane.f32.xlu0 %v1557
        %v1559 = vpop.xlane.xlu0 %1558
        %v1560 = vsel %vm574, %v1552, 0.0
        %1561 = vadd.xlane.f32.xlu0 %v1560
        %v1562 = vpop.xlane.xlu0 %1561
        %v1563 = vsel %vm574, %v1553, 0.0
        %1564 = vadd.xlane.f32.xlu0 %v1563
        %v1565 = vpop.xlane.xlu0 %1564
        %v1566 = vmul.f32 %v1556, %v1326
        %v1567 = vmul.f32 %v1559, %v1326
        %v1568 = vmul.f32 %v1562, %v1326
        %v1569 = vmul.f32 %v1565, %v1326
        %v1570 = vadd.f32 %v1566, 1e-05
        %v1571 = vadd.f32 %v1567, 1e-05
        %v1572 = vadd.f32 %v1568, 1e-05
        %v1573 = vadd.f32 %v1569, 1e-05
        %v1574 = vrsqrt.pop %v1570
        %v1575 = vmul.f32 %v1574, %v1570
        %v1576 = vmul.f32 %v1575, %v1574
        %v1577 = vmul.f32 0.5, %v1576
        %v1578 = vsub.f32 1.5, %v1577
        %v1579 = vmul.f32 %v1574, %v1578
        %vm1580 = vweird.f32 %v1570
        %vm1581 = vweird.f32 %v1574
        %vm1582 = vmor %vm1580, %vm1581
        %v1583 = vsel %vm1582, %v1574, %v1579
        %v1584 = vrsqrt.pop %v1571
        %v1585 = vmul.f32 %v1584, %v1571
        %v1586 = vmul.f32 %v1585, %v1584
        %v1587 = vmul.f32 0.5, %v1586
        %v1588 = vsub.f32 1.5, %v1587
        %v1589 = vmul.f32 %v1584, %v1588
        %vm1590 = vweird.f32 %v1571
        %vm1591 = vweird.f32 %v1584
        %vm1592 = vmor %vm1590, %vm1591
        %v1593 = vsel %vm1592, %v1584, %v1589
        %v1594 = vrsqrt.pop %v1572
        %v1595 = vmul.f32 %v1594, %v1572
        %v1596 = vmul.f32 %v1595, %v1594
        %v1597 = vmul.f32 0.5, %v1596
        %v1598 = vsub.f32 1.5, %v1597
        %v1599 = vmul.f32 %v1594, %v1598
        %vm1600 = vweird.f32 %v1572
        %vm1601 = vweird.f32 %v1594
        %vm1602 = vmor %vm1600, %vm1601
        %v1603 = vsel %vm1602, %v1594, %v1599
        %v1604 = vrsqrt.pop %v1573
        %v1605 = vmul.f32 %v1604, %v1573
        %v1606 = vmul.f32 %v1605, %v1604
        %v1607 = vmul.f32 0.5, %v1606
        %v1608 = vsub.f32 1.5, %v1607
        %v1609 = vmul.f32 %v1604, %v1608
        %vm1610 = vweird.f32 %v1573
        %vm1611 = vweird.f32 %v1604
        %vm1612 = vmor %vm1610, %vm1611
        %v1613 = vsel %vm1612, %v1604, %v1609
        %v1614 = vmul.f32 %v1546, %v1583
        %v1615 = vmul.f32 %v1547, %v1593
        %v1616 = vmul.f32 %v1548, %v1603
        %v1617 = vmul.f32 %v1549, %v1613
        %v1618 = vperm.slane %v1528, 0
        %v1619 = vmul.f32 %v1614, %v1618
        %v1620 = vmul.f32 %v1615, %v1618
        %v1621 = vmul.f32 %v1616, %v1618
        %v1622 = vmul.f32 %v1617, %v1618
        %v1623 = vperm.slane %v1529, 0
        %v1624 = vadd.f32 %v1619, %v1623
        %v1625 = vadd.f32 %v1620, %v1623
        %v1626 = vadd.f32 %v1621, %v1623
        %v1627 = vadd.f32 %v1622, %v1623
        %1628 = vst.msk [vmem:[#allocation2] sm:$0xff] %vm574, %v1624
        %1629 = vst.msk [vmem:[#allocation2 + $0x8] sm:$0xff] %vm574, %v1625
        %1630 = vst.msk [vmem:[#allocation2 + $0x10] sm:$0xff] %vm574, %v1626
        %1631 = vst.msk [vmem:[#allocation2 + $0x18] sm:$0xff] %vm574, %v1627
        %p1632 = scmp.eq.s32.totalorder %s28, 1
        // Predicated region
        $region77: #{tcn_transformer_forward.3} parent=63 // pred_check
          %p1633 = pneg %p1632
        $region78: #{tcn_transformer_forward.3} parent=63 // pred_check_branch
          %1635 = sbr.rel (%p1633) target = $region80
        $region79: #{tcn_transformer_forward.3} parent=63 // pred_region
          %v1636 = vlaneseq
          %v1637 = vand.u32 %v1636, 127
          %v1638 = vlaneseq
          %v1639 = vshrl.u32 %v1638, 7
          %v1640 = vmul.u32 %v1639, 16
          %v1641 = vadd.s32 %v1640, 15
          %vm1642 = vcmp.eq.s32.totalorder %v1637, %v1641
          %v1643 = vsel %vm1642, 1, 0
          %v1644 = vcvt.s32.f32 %v1643
          %v1645 = vpack.c.bf16 %v1644, %v1644
          %v1646 = vpack.c.bf16 %v1625, %v1624
          %v1647 = vpack.c.bf16 %v1627, %v1626
          %v1649 = vsel %vm574, %v1645, 0
          %1651 = vmatpush.bf16.msra.mxu0 0
          %1652 = vmatpush.bf16.msra.mxu0 0
          %1653 = vmatpush.bf16.msra.mxu0 0
          %1654 = vmatpush.bf16.msra.mxu0 0
          %1655 = vmatpush.bf16.msra.mxu0 0
          %1656 = vmatpush.bf16.msra.mxu0 0
          %1657 = vmatpush.bf16.msra.mxu0 %v1647
          %1658 = vmatpush.bf16.msra.mxu0 %v1646
          %1659 = vmatmul.bf16.gmra.mxu0 %v1649
          %v1660 = vpop.f32.mrf.mxu0
          %v1661 = vadd.f32 0.0, %v1660
          %v1662 = vpop.f32.mrf.mxu0
          %1663 = vdwg.mxu0
          %v1664 = vld [vmem:[%s9] sm:$0xf]
          %v1665 = vld [vmem:[%s9 + $0x4] sm:$0xf]
          %v1666 = vld [vmem:[%s9 + $0x8] sm:$0xf]
          %v1667 = vld [vmem:[%s9 + $0xc] sm:$0xf]
          %v1668 = vpack.c.bf16 %v1661, %v1661
          %v1669 = vld [vmem:[#allocation3] sm:$0x1]
          %v1671 = vperm.slane %v1669, 0
          %v1677 = vunpack.c.l.b16 %v1664
          %v1678 = vunpack.c.l.b16 %v1665
          %v1679 = vunpack.c.l.b16 %v1666
          %v1680 = vunpack.c.l.b16 %v1667
          %v1681 = vpack.c.b16 %v1678, %v1677
          %v1682 = vpack.c.b16 %v1680, %v1679
          %v1686 = vsel %vm574, %v1668, 0
          %1688 = vmatpush.bf16.msra.mxu0 0
          %1689 = vmatpush.bf16.msra.mxu0 0
          %1690 = vmatpush.bf16.msra.mxu0 0
          %1691 = vmatpush.bf16.msra.mxu0 0
          %1692 = vmatpush.bf16.msra.mxu0 0
          %1693 = vmatpush.bf16.msra.mxu0 0
          %1694 = vmatpush.bf16.msra.mxu0 %v1682
          %1695 = vmatpush.bf16.msra.mxu0 %v1681
          %1696 = vmatmul.bf16.gmra.mxu0 %v1686
          %v1697 = vpop.f32.mrf.mxu0
          %v1698 = vadd.f32 %v1671, %v1697
          %v1699 = vpop.f32.mrf.mxu0
          %1700 = vdwg.mxu0
          %vm1701 = vcmask 1024
          %1702 = vst.msk [vmem:[%s11] sm:$0x3] %vm1701, %v1698
        $region80: #{tcn_transformer_forward.3} parent=63 // pred_fallthru
          _
        // Predicated region
        $region81: #{tcn_transformer_forward.3} parent=63 // pred_check
          %p1703 = pneg %p297
        $region82: #{tcn_transformer_forward.3} parent=63 // pred_check_branch
          %1705 = sbr.rel (%p1703) target = $region84
        $region83: #{tcn_transformer_forward.3} parent=63 // pred_region
          _
        $region84: #{tcn_transformer_forward.3} parent=63 // pred_fallthru
          _
        // Predicated region
        $region85: #{tcn_transformer_forward.3} parent=63 // pred_check
          %p1706 = pneg %p297
        $region86: #{tcn_transformer_forward.3} parent=63 // pred_check_branch
          %1708 = sbr.rel (%p1706) target = $region88
        $region87: #{tcn_transformer_forward.3} parent=63 // pred_region
          _
        $region88: #{tcn_transformer_forward.3} parent=63 // pred_fallthru
          _
      $region64: #{tcn_transformer_forward.3} parent=5 // pred_fallthru
        _
      %p1709 = scmp.le.s32.totalorder 2, %s23
      // Predicated region
      $region89: #{tcn_transformer_forward.3} parent=5 // pred_check
        %p1710 = pneg %p1709
      $region90: #{tcn_transformer_forward.3} parent=5 // pred_check_branch
        %1712 = sbr.rel (%p1710) target = $region92
      $region91: #{tcn_transformer_forward.3} parent=5 // pred_region
        %s1713 = ssub.s32 %s23, 2
      $region92: #{tcn_transformer_forward.3} parent=5 // pred_fallthru
        _
    $region6: #{tcn_transformer_forward.3} parent=1 // loop_footer
      %s27 = sadd.s32 1, %s23
    $region7: #{tcn_transformer_forward.3} parent=1 // loop_footer_branch
      %22 = sbr.rel target = $region3
    $region8: #{tcn_transformer_forward.3} parent=1 // loop_exit
      _
    %1714 = vsyncpa [#allocation5], 1
    %s1715 = scalar_lea.sflag [#allocation5], 1
    %1716 = vsyncpa %s1715, 1
    %1717 = vsyncpa [#allocation7], 1
    %s1718 = scalar_lea.sflag [#allocation7], 1
    %1719 = vsyncpa %s1718, 1

</llo_original>
